<compile_context>
chip_gen: v6e
topology: v6e:2x2x1
jax: 0.10.0
libtpu: 0.0.40
codegen_flags: <defaults>
</compile_context>

<pallas_src>
import functools

import jax
import jax.numpy as jnp
from jax.experimental import pallas as pl
from jax.experimental.pallas import tpu as pltpu

MXU_DTYPE = jnp.bfloat16  # matmul operand / inter-layer activation dtype

_VMEM_SPEC = pl.BlockSpec(memory_space=pltpu.MemorySpace.VMEM)


# ----------------------------------------------------------------------------
# Pallas kernel: one bidirectional LSTM layer, both directions interleaved.
# No grid: the whole (small) layer is VMEM-resident; h/c live in registers.
# ----------------------------------------------------------------------------
def _bilstm_layer_kernel(gx_ref, whh_ref, out_ref, hn_ref, cn_ref, *,
                         seq_len, flip_out):
    # gx_ref : (T, 2B, 4H) f32  x @ W_ih^T + b, fused gates (i|f|g|o).
    #                           rows [0:B] = forward (original time order),
    #                           rows [B:2B] = reverse (time pre-flipped on XLA side)
    # whh_ref: (2, H, 4H) bf16  recurrent weights, one lane-dense tile per direction
    # out_ref: (T, 2B, H)       per-step hidden states (bf16 for inner layers)
    # hn_ref : (2B, H) f32      final hidden state   (rows [0:B] fwd, [B:2B] rev)
    # cn_ref : (2B, H) f32      final cell state
    T, B2, G = gx_ref.shape
    H = G // 4
    B = B2 // 2

    # Hoist loop-invariants: recurrent weight tiles and the direction row mask.
    w_f = whh_ref[0]                                        # (H, 4H) bf16
    w_r = whh_ref[1]
    fwd_mask = jax.lax.broadcasted_iota(jnp.int32, (B2, G), 0) < B

    h = jnp.zeros((B2, H), jnp.float32)                     # stacked fwd|rev state
    c = jnp.zeros((B2, H), jnp.float32)

    # TODO(synk): for long sequences add a time-chunk grid axis (h/c carried in
    # VMEM scratch, accumulator pattern) and a partially-unrolled fori_loop to
    # bound VMEM and code size; at T=8 a fully static unrolled loop is optimal.
    # TODO(synk): on v7x the two directions (or batch halves) could be split
    # across the two TensorCores with pl.core_map / CORE_PARALLEL.
    for t in range(seq_len):
        rt = seq_len - 1 - t                                # static (Python int)

        hb = h.astype(w_f.dtype)                            # cast only at MXU boundary
        # One fused, lane-dense (2B,H)@(H,4H) dot per direction; the
        # off-direction rows are dropped by the (hoisted) row-mask select.
        rec = jnp.where(
            fwd_mask,
            jnp.dot(hb, w_f, preferred_element_type=jnp.float32),
            jnp.dot(hb, w_r, preferred_element_type=jnp.float32))
        g = gx_ref[t] + rec                                 # (2B, 4H) f32

        # Gate elementwise math in f32 (v5e-safe), once for both directions.
        i_g = jax.nn.sigmoid(g[:, 0 * H:1 * H])
        f_g = jax.nn.sigmoid(g[:, 1 * H:2 * H])
        g_g = jnp.tanh(g[:, 2 * H:3 * H])
        o_g = jax.nn.sigmoid(g[:, 3 * H:4 * H])

        c = f_g * c + i_g * g_g
        h = o_g * jnp.tanh(c)

        h_out = h.astype(out_ref.dtype)
        # forward h belongs to original time t, reverse h to original time rt;
        # flip_out folds torch.flip(output, [1]) into the (static) write index.
        out_ref[rt if flip_out else t, :B] = h_out[:B]
        out_ref[t if flip_out else rt, B:] = h_out[B:]

    hn_ref[...] = h
    cn_ref[...] = c


def bilstm_layer(gx, w_hh, *, flip_out, out_dtype):
    """One bidirectional LSTM layer.

    gx   : (T, 2B, 4H) f32  precomputed x @ W_ih^T + b_ih + b_hh, fused gate order
           (i, f, g, o); rows [0:B] forward (original time), [B:2B] reverse
           (time pre-flipped).
    w_hh : (2, H, 4H) bf16  recurrent weights so that h @ w_hh[d] gives all gates.
    Returns out (T, 2B, H) (time-flipped if flip_out), hn (2B, H), cn (2B, H).
    """
    T, B2, G = gx.shape
    H = w_hh.shape[1]
    assert w_hh.shape == (2, H, 4 * H) and G == 4 * H and B2 % 2 == 0

    kernel = functools.partial(_bilstm_layer_kernel, seq_len=T, flip_out=flip_out)
    return pl.pallas_call(
        kernel,
        out_shape=(
            jax.ShapeDtypeStruct((T, B2, H), out_dtype),
            jax.ShapeDtypeStruct((B2, H), jnp.float32),
            jax.ShapeDtypeStruct((B2, H), jnp.float32),
        ),
        in_specs=[_VMEM_SPEC, _VMEM_SPEC],
        out_specs=(_VMEM_SPEC, _VMEM_SPEC, _VMEM_SPEC),
    )(gx, w_hh)


# ----------------------------------------------------------------------------
# EncoderRNN forward (matches the PyTorch module's semantics, eval mode).
# ----------------------------------------------------------------------------
def encoder_rnn_forward(x, params, hidden, n_layers):
    """x: (B, T, input_dim) batch_first, float32."""
    B, T, D = x.shape
    H = hidden
    hns, cns = [], []
    layer_out = None
    output = None

    for l in range(n_layers):
        p = params[l]
        w_ih = p["w_ih"].astype(MXU_DTYPE)                  # (2, Din, 4H)
        w_hh = p["w_hh"].astype(MXU_DTYPE)                  # (2, H, 4H)
        b = p["b"]                                          # (2, 4H) f32

        # Hoisted input projection for the whole sequence & both directions
        # (one big MXU matmul; bias add fuses into its epilogue under jit).
        if l == 0:
            gx = jnp.einsum("btd,ndg->tnbg", x.astype(MXU_DTYPE), w_ih,
                            preferred_element_type=jnp.float32)
        else:
            # consume the previous layer's (T, 2B, H) bf16 output directly
            # (no inter-layer transpose): contract over (src_dir, H).
            gx = jnp.einsum("tmbh,nmhg->tnbg",
                            layer_out.reshape(T, 2, B, H),
                            w_ih.reshape(2, 2, H, 4 * H),
                            preferred_element_type=jnp.float32)
        gx = gx + b[None, :, None, :]                       # (T, 2, B, 4H)
        # Pre-flip the reverse direction's time axis and fold direction into the
        # row (sublane) dim -> kernel walks t=0..T-1 with static indices.
        gx = jnp.concatenate([gx[:, 0], jnp.flip(gx[:, 1], axis=0)], axis=1)

        last = (l == n_layers - 1)
        out_dtype = jnp.float32 if last else MXU_DTYPE
        out_l, hn_l, cn_l = bilstm_layer(gx, w_hh, flip_out=last,
                                         out_dtype=out_dtype)
        hns.append(hn_l.reshape(2, B, H))
        cns.append(cn_l.reshape(2, B, H))

        if last:
            # (T, 2B, H) already time-flipped in-kernel -> (B, T, 2H), [fwd|rev].
            output = jnp.transpose(out_l.reshape(T, 2, B, H),
                                   (2, 0, 1, 3)).reshape(B, T, 2 * H)
        else:
            layer_out = out_l
        # TODO(synk): nn.LSTM inter-layer dropout is training-mode stochastic;
        # this eval-mode forward applies no dropout.

    hn = jnp.concatenate(hns, axis=0)                       # (2*n_layers, B, H)
    cn = jnp.concatenate(cns, axis=0)

    # new_input = cat(zeros, flip(x, [1]))[:, :-1, :], built without the extra
    # slice-after-concat pass.
    new_input = jnp.concatenate(
        [jnp.zeros((B, 1, D), x.dtype), jnp.flip(x[:, 1:, :], axis=1)], axis=1)

    return output, (hn, cn), new_input


# ----------------------------------------------------------------------------
# Parameter init: uniform(-0.1, 0.1) like the module's init_weights, stored once
# in the kernel-friendly fused-gate, pre-transposed layout:
#   w_ih[d] : (Din, 4H)  so x @ w_ih[d] gives all gate input contributions
#   w_hh[d] : (H, 4H)    so h @ w_hh[d] gives all gate recurrent contributions
#   b[d]    : (4H,)      = bias_ih + bias_hh
# Gate order (i, f, g, o), direction order (forward, reverse).
# ----------------------------------------------------------------------------
def init_params(key, input_dim, hidden, n_layers):
    params = []
    for l in range(n_layers):
        din = input_dim if l == 0 else 2 * hidden
        key, k1, k2, k3, k4 = jax.random.split(key, 5)
        u = lambda k, shp: jax.random.uniform(k, shp, jnp.float32, -0.1, 0.1)
        params.append({
            "w_ih": u(k1, (2, din, 4 * hidden)),
            "w_hh": u(k2, (2, hidden, 4 * hidden)),
            "b": u(k3, (2, 4 * hidden)) + u(k4, (2, 4 * hidden)),
        })
    return params


# ----------------------------------------------------------------------------
# Pure-JAX f32 reference (correctness check only), same parameter layout.
# ----------------------------------------------------------------------------
def _ref_forward(x, params, hidden, n_layers):
    B, T, D = x.shape
    H = hidden
    layer_in = x                                            # (B, T, Din)
    hns, cns = [], []
    for l in range(n_layers):
        p = params[l]
        outs_dir = []
        for d in range(2):
            w_ih, w_hh, b = p["w_ih"][d], p["w_hh"][d], p["b"][d]
            h = jnp.zeros((B, H), jnp.float32)
            c = jnp.zeros((B, H), jnp.float32)
            outs = [None] * T
            steps = range(T) if d == 0 else range(T - 1, -1, -1)
            for t in steps:
                x_t = layer_in[:, t, :]
                gates = x_t @ w_ih + h @ w_hh + b[None, :]
                i = jax.nn.sigmoid(gates[:, 0 * H:1 * H])
                f = jax.nn.sigmoid(gates[:, 1 * H:2 * H])
                g = jnp.tanh(gates[:, 2 * H:3 * H])
                o = jax.nn.sigmoid(gates[:, 3 * H:4 * H])
                c = f * c + i * g
                h = o * jnp.tanh(c)
                outs[t] = h
            outs_dir.append(jnp.stack(outs, axis=1))        # (B, T, H)
            hns.append(h)
            cns.append(c)
        layer_in = jnp.concatenate(outs_dir, axis=-1)       # (B, T, 2H)
    output = jnp.flip(layer_in, axis=1)
    hn, cn = jnp.stack(hns, 0), jnp.stack(cns, 0)
    new_input = jnp.concatenate(
        [jnp.zeros((B, 1, D), x.dtype), jnp.flip(x, axis=1)], axis=1)[:, :-1, :]
    return output, (hn, cn), new_input


if __name__ == "__main__":
    # Small shapes implied by the module: batch=2, seq=8, input_dim=16, hidden=32, 2 layers.
    B, T, INPUT_DIM, HIDDEN, N_LAYERS = 2, 8, 16, 32, 2

    key = jax.random.PRNGKey(0)
    kx, kp = jax.random.split(key)
    x = jax.random.normal(kx, (B, T, INPUT_DIM), jnp.float32)
    params = init_params(kp, INPUT_DIM, HIDDEN, N_LAYERS)

    fwd = jax.jit(functools.partial(encoder_rnn_forward,
                                    hidden=HIDDEN, n_layers=N_LAYERS))
    output, (hn, cn), new_input = fwd(x, params)
    jax.block_until_ready((output, hn, cn, new_input))

    # Sanity check vs. a pure-f32 JAX reference. Tolerance is loosened because
    # the kernel uses bf16 MXU operands / bf16 inter-layer activations
    # (f32 accumulation and f32 gate math everywhere).
    ref = jax.jit(functools.partial(_ref_forward, hidden=HIDDEN, n_layers=N_LAYERS))
    r_out, (r_hn, r_cn), r_ni = ref(x, params)
    jax.block_until_ready((r_out, r_hn, r_cn, r_ni))

    assert output.shape == (B, T, 2 * HIDDEN)
    assert hn.shape == (2 * N_LAYERS, B, HIDDEN) and cn.shape == (2 * N_LAYERS, B, HIDDEN)
    assert new_input.shape == (B, T, INPUT_DIM)
    assert jnp.allclose(output, r_out, atol=3e-2), "output mismatch"
    assert jnp.allclose(hn, r_hn, atol=3e-2), "hn mismatch"
    assert jnp.allclose(cn, r_cn, atol=3e-2), "cn mismatch"
    assert jnp.allclose(new_input, r_ni, atol=1e-6), "new_input mismatch"

    print("KERNEL_OK")
</pallas_src>

<mosaic_0001>
module attributes {stable_mosaic.version = 11 : i64} {
  func.func @_bilstm_layer_kernel(%arg0: memref<8x4x128xf32, #tpu.memory_space<vmem>>, %arg1: memref<2x32x128xbf16, #tpu.memory_space<vmem>>, %arg2: memref<8x4x32xf32, #tpu.memory_space<vmem>>, %arg3: memref<4x32xf32, #tpu.memory_space<vmem>>, %arg4: memref<4x32xf32, #tpu.memory_space<vmem>>) attributes {dimension_semantics = [], scalar_prefetch = 0 : i64, scratch_operands = 0 : i64, tpu.core_type = #tpu.core_type<tc>} {
    %c0 = arith.constant 0 : index
    %c0_0 = arith.constant 0 : index
    %c0_1 = arith.constant 0 : index
    %0 = vector.load %arg1[%c0, %c0_0, %c0_1] : memref<2x32x128xbf16, #tpu.memory_space<vmem>>, vector<1x32x128xbf16>
    %1 = vector.shape_cast %0 : vector<1x32x128xbf16> to vector<32x128xbf16>
    %c1 = arith.constant 1 : index
    %c0_2 = arith.constant 0 : index
    %c0_3 = arith.constant 0 : index
    %2 = vector.load %arg1[%c1, %c0_2, %c0_3] : memref<2x32x128xbf16, #tpu.memory_space<vmem>>, vector<1x32x128xbf16>
    %3 = vector.shape_cast %2 : vector<1x32x128xbf16> to vector<32x128xbf16>
    %4 = tpu.iota {dimensions = array<i32: 0>} : vector<4x128xi32>
    %c2_i32 = arith.constant 2 : i32
    %5 = vector.broadcast %c2_i32 : i32 to vector<4x128xi32>
    %6 = arith.cmpi slt, %4, %5 : vector<4x128xi32>
    %cst = arith.constant 0.000000e+00 : f32
    %7 = vector.broadcast %cst : f32 to vector<4x32xf32>
    %cst_4 = arith.constant 0.000000e+00 : f32
    %8 = vector.broadcast %cst_4 : f32 to vector<4x32xf32>
    %9 = arith.truncf %7 : vector<4x32xf32> to vector<4x32xbf16>
    %cst_5 = arith.constant dense<0.000000e+00> : vector<4x128xf32>
    %10 = tpu.matmul %9, %1, %cst_5 {dimension_numbers = #tpu.dot_dimension_numbers<[1], [0], [0], [1], [0, 0, 1, 1], [], []>} : vector<4x32xbf16>, vector<32x128xbf16>, vector<4x128xf32> -> vector<4x128xf32>
    %cst_6 = arith.constant dense<0.000000e+00> : vector<4x128xf32>
    %11 = tpu.matmul %9, %3, %cst_6 {dimension_numbers = #tpu.dot_dimension_numbers<[1], [0], [0], [1], [0, 0, 1, 1], [], []>} : vector<4x32xbf16>, vector<32x128xbf16>, vector<4x128xf32> -> vector<4x128xf32>
    %12 = arith.select %6, %10, %11 : vector<4x128xi1>, vector<4x128xf32>
    %c0_7 = arith.constant 0 : index
    %c0_8 = arith.constant 0 : index
    %c0_9 = arith.constant 0 : index
    %13 = vector.load %arg0[%c0_7, %c0_8, %c0_9] : memref<8x4x128xf32, #tpu.memory_space<vmem>>, vector<1x4x128xf32>
    %14 = vector.shape_cast %13 : vector<1x4x128xf32> to vector<4x128xf32>
    %15 = arith.addf %14, %12 : vector<4x128xf32>
    %16 = vector.extract_strided_slice %15 {offsets = [0, 0], sizes = [4, 32], strides = [1, 1]} : vector<4x128xf32> to vector<4x32xf32>
    %17 = arith.negf %16 : vector<4x32xf32>
    %18 = math.exp %17 : vector<4x32xf32>
    %cst_10 = arith.constant 1.000000e+00 : f32
    %19 = vector.broadcast %cst_10 : f32 to vector<4x32xf32>
    %20 = arith.addf %19, %18 : vector<4x32xf32>
    %21 = arith.divf %19, %20 : vector<4x32xf32>
    %22 = vector.extract_strided_slice %15 {offsets = [0, 32], sizes = [4, 32], strides = [1, 1]} : vector<4x128xf32> to vector<4x32xf32>
    %23 = arith.negf %22 : vector<4x32xf32>
    %24 = math.exp %23 : vector<4x32xf32>
    %cst_11 = arith.constant 1.000000e+00 : f32
    %25 = vector.broadcast %cst_11 : f32 to vector<4x32xf32>
    %26 = arith.addf %25, %24 : vector<4x32xf32>
    %27 = arith.divf %25, %26 : vector<4x32xf32>
    %28 = vector.extract_strided_slice %15 {offsets = [0, 64], sizes = [4, 32], strides = [1, 1]} : vector<4x128xf32> to vector<4x32xf32>
    %29 = math.tanh %28 : vector<4x32xf32>
    %30 = vector.extract_strided_slice %15 {offsets = [0, 96], sizes = [4, 32], strides = [1, 1]} : vector<4x128xf32> to vector<4x32xf32>
    %31 = arith.negf %30 : vector<4x32xf32>
    %32 = math.exp %31 : vector<4x32xf32>
    %cst_12 = arith.constant 1.000000e+00 : f32
    %33 = vector.broadcast %cst_12 : f32 to vector<4x32xf32>
    %34 = arith.addf %33, %32 : vector<4x32xf32>
    %35 = arith.divf %33, %34 : vector<4x32xf32>
    %36 = arith.mulf %27, %8 : vector<4x32xf32>
    %37 = arith.mulf %21, %29 : vector<4x32xf32>
    %38 = arith.addf %36, %37 : vector<4x32xf32>
    %39 = math.tanh %38 : vector<4x32xf32>
    %40 = arith.mulf %35, %39 : vector<4x32xf32>
    %41 = vector.extract_strided_slice %40 {offsets = [0, 0], sizes = [2, 32], strides = [1, 1]} : vector<4x32xf32> to vector<2x32xf32>
    %c7 = arith.constant 7 : index
    %c0_13 = arith.constant 0 : index
    %c0_14 = arith.constant 0 : index
    %42 = vector.load %arg2[%c7, %c0_13, %c0_14] : memref<8x4x32xf32, #tpu.memory_space<vmem>>, vector<1x2x32xf32>
    %43 = vector.shape_cast %42 : vector<1x2x32xf32> to vector<2x32xf32>
    %44 = vector.shape_cast %41 : vector<2x32xf32> to vector<1x2x32xf32>
    tpu.vector_store %arg2[%c7, %c0_13, %c0_14], %44 {strides = array<i32>} : memref<8x4x32xf32, #tpu.memory_space<vmem>>, vector<1x2x32xf32>,
    %45 = vector.extract_strided_slice %40 {offsets = [2, 0], sizes = [2, 32], strides = [1, 1]} : vector<4x32xf32> to vector<2x32xf32>
    %c0_15 = arith.constant 0 : index
    %c2 = arith.constant 2 : index
    %c0_16 = arith.constant 0 : index
    %46 = vector.load %arg2[%c0_15, %c2, %c0_16] : memref<8x4x32xf32, #tpu.memory_space<vmem>>, vector<1x2x32xf32>
    %47 = vector.shape_cast %46 : vector<1x2x32xf32> to vector<2x32xf32>
    %48 = vector.shape_cast %45 : vector<2x32xf32> to vector<1x2x32xf32>
    tpu.vector_store %arg2[%c0_15, %c2, %c0_16], %48 {strides = array<i32>} : memref<8x4x32xf32, #tpu.memory_space<vmem>>, vector<1x2x32xf32>,
    %49 = arith.truncf %40 : vector<4x32xf32> to vector<4x32xbf16>
    %cst_17 = arith.constant dense<0.000000e+00> : vector<4x128xf32>
    %50 = tpu.matmul %49, %1, %cst_17 {dimension_numbers = #tpu.dot_dimension_numbers<[1], [0], [0], [1], [0, 0, 1, 1], [], []>} : vector<4x32xbf16>, vector<32x128xbf16>, vector<4x128xf32> -> vector<4x128xf32>
    %cst_18 = arith.constant dense<0.000000e+00> : vector<4x128xf32>
    %51 = tpu.matmul %49, %3, %cst_18 {dimension_numbers = #tpu.dot_dimension_numbers<[1], [0], [0], [1], [0, 0, 1, 1], [], []>} : vector<4x32xbf16>, vector<32x128xbf16>, vector<4x128xf32> -> vector<4x128xf32>
    %52 = arith.select %6, %50, %51 : vector<4x128xi1>, vector<4x128xf32>
    %c1_19 = arith.constant 1 : index
    %c0_20 = arith.constant 0 : index
    %c0_21 = arith.constant 0 : index
    %53 = vector.load %arg0[%c1_19, %c0_20, %c0_21] : memref<8x4x128xf32, #tpu.memory_space<vmem>>, vector<1x4x128xf32>
    %54 = vector.shape_cast %53 : vector<1x4x128xf32> to vector<4x128xf32>
    %55 = arith.addf %54, %52 : vector<4x128xf32>
    %56 = vector.extract_strided_slice %55 {offsets = [0, 0], sizes = [4, 32], strides = [1, 1]} : vector<4x128xf32> to vector<4x32xf32>
    %57 = arith.negf %56 : vector<4x32xf32>
    %58 = math.exp %57 : vector<4x32xf32>
    %cst_22 = arith.constant 1.000000e+00 : f32
    %59 = vector.broadcast %cst_22 : f32 to vector<4x32xf32>
    %60 = arith.addf %59, %58 : vector<4x32xf32>
    %61 = arith.divf %59, %60 : vector<4x32xf32>
    %62 = vector.extract_strided_slice %55 {offsets = [0, 32], sizes = [4, 32], strides = [1, 1]} : vector<4x128xf32> to vector<4x32xf32>
    %63 = arith.negf %62 : vector<4x32xf32>
    %64 = math.exp %63 : vector<4x32xf32>
    %cst_23 = arith.constant 1.000000e+00 : f32
    %65 = vector.broadcast %cst_23 : f32 to vector<4x32xf32>
    %66 = arith.addf %65, %64 : vector<4x32xf32>
    %67 = arith.divf %65, %66 : vector<4x32xf32>
    %68 = vector.extract_strided_slice %55 {offsets = [0, 64], sizes = [4, 32], strides = [1, 1]} : vector<4x128xf32> to vector<4x32xf32>
    %69 = math.tanh %68 : vector<4x32xf32>
    %70 = vector.extract_strided_slice %55 {offsets = [0, 96], sizes = [4, 32], strides = [1, 1]} : vector<4x128xf32> to vector<4x32xf32>
    %71 = arith.negf %70 : vector<4x32xf32>
    %72 = math.exp %71 : vector<4x32xf32>
    %cst_24 = arith.constant 1.000000e+00 : f32
    %73 = vector.broadcast %cst_24 : f32 to vector<4x32xf32>
    %74 = arith.addf %73, %72 : vector<4x32xf32>
    %75 = arith.divf %73, %74 : vector<4x32xf32>
    %76 = arith.mulf %67, %38 : vector<4x32xf32>
    %77 = arith.mulf %61, %69 : vector<4x32xf32>
    %78 = arith.addf %76, %77 : vector<4x32xf32>
    %79 = math.tanh %78 : vector<4x32xf32>
    %80 = arith.mulf %75, %79 : vector<4x32xf32>
    %81 = vector.extract_strided_slice %80 {offsets = [0, 0], sizes = [2, 32], strides = [1, 1]} : vector<4x32xf32> to vector<2x32xf32>
    %c6 = arith.constant 6 : index
    %c0_25 = arith.constant 0 : index
    %c0_26 = arith.constant 0 : index
    %82 = vector.load %arg2[%c6, %c0_25, %c0_26] : memref<8x4x32xf32, #tpu.memory_space<vmem>>, vector<1x2x32xf32>
    %83 = vector.shape_cast %82 : vector<1x2x32xf32> to vector<2x32xf32>
    %84 = vector.shape_cast %81 : vector<2x32xf32> to vector<1x2x32xf32>
    tpu.vector_store %arg2[%c6, %c0_25, %c0_26], %84 {strides = array<i32>} : memref<8x4x32xf32, #tpu.memory_space<vmem>>, vector<1x2x32xf32>,
    %85 = vector.extract_strided_slice %80 {offsets = [2, 0], sizes = [2, 32], strides = [1, 1]} : vector<4x32xf32> to vector<2x32xf32>
    %c1_27 = arith.constant 1 : index
    %c2_28 = arith.constant 2 : index
    %c0_29 = arith.constant 0 : index
    %86 = vector.load %arg2[%c1_27, %c2_28, %c0_29] : memref<8x4x32xf32, #tpu.memory_space<vmem>>, vector<1x2x32xf32>
    %87 = vector.shape_cast %86 : vector<1x2x32xf32> to vector<2x32xf32>
    %88 = vector.shape_cast %85 : vector<2x32xf32> to vector<1x2x32xf32>
    tpu.vector_store %arg2[%c1_27, %c2_28, %c0_29], %88 {strides = array<i32>} : memref<8x4x32xf32, #tpu.memory_space<vmem>>, vector<1x2x32xf32>,
    %89 = arith.truncf %80 : vector<4x32xf32> to vector<4x32xbf16>
    %cst_30 = arith.constant dense<0.000000e+00> : vector<4x128xf32>
    %90 = tpu.matmul %89, %1, %cst_30 {dimension_numbers = #tpu.dot_dimension_numbers<[1], [0], [0], [1], [0, 0, 1, 1], [], []>} : vector<4x32xbf16>, vector<32x128xbf16>, vector<4x128xf32> -> vector<4x128xf32>
    %cst_31 = arith.constant dense<0.000000e+00> : vector<4x128xf32>
    %91 = tpu.matmul %89, %3, %cst_31 {dimension_numbers = #tpu.dot_dimension_numbers<[1], [0], [0], [1], [0, 0, 1, 1], [], []>} : vector<4x32xbf16>, vector<32x128xbf16>, vector<4x128xf32> -> vector<4x128xf32>
    %92 = arith.select %6, %90, %91 : vector<4x128xi1>, vector<4x128xf32>
    %c2_32 = arith.constant 2 : index
    %c0_33 = arith.constant 0 : index
    %c0_34 = arith.constant 0 : index
    %93 = vector.load %arg0[%c2_32, %c0_33, %c0_34] : memref<8x4x128xf32, #tpu.memory_space<vmem>>, vector<1x4x128xf32>
    %94 = vector.shape_cast %93 : vector<1x4x128xf32> to vector<4x128xf32>
    %95 = arith.addf %94, %92 : vector<4x128xf32>
    %96 = vector.extract_strided_slice %95 {offsets = [0, 0], sizes = [4, 32], strides = [1, 1]} : vector<4x128xf32> to vector<4x32xf32>
    %97 = arith.negf %96 : vector<4x32xf32>
    %98 = math.exp %97 : vector<4x32xf32>
    %cst_35 = arith.constant 1.000000e+00 : f32
    %99 = vector.broadcast %cst_35 : f32 to vector<4x32xf32>
    %100 = arith.addf %99, %98 : vector<4x32xf32>
    %101 = arith.divf %99, %100 : vector<4x32xf32>
    %102 = vector.extract_strided_slice %95 {offsets = [0, 32], sizes = [4, 32], strides = [1, 1]} : vector<4x128xf32> to vector<4x32xf32>
    %103 = arith.negf %102 : vector<4x32xf32>
    %104 = math.exp %103 : vector<4x32xf32>
    %cst_36 = arith.constant 1.000000e+00 : f32
    %105 = vector.broadcast %cst_36 : f32 to vector<4x32xf32>
    %106 = arith.addf %105, %104 : vector<4x32xf32>
    %107 = arith.divf %105, %106 : vector<4x32xf32>
    %108 = vector.extract_strided_slice %95 {offsets = [0, 64], sizes = [4, 32], strides = [1, 1]} : vector<4x128xf32> to vector<4x32xf32>
    %109 = math.tanh %108 : vector<4x32xf32>
    %110 = vector.extract_strided_slice %95 {offsets = [0, 96], sizes = [4, 32], strides = [1, 1]} : vector<4x128xf32> to vector<4x32xf32>
    %111 = arith.negf %110 : vector<4x32xf32>
    %112 = math.exp %111 : vector<4x32xf32>
    %cst_37 = arith.constant 1.000000e+00 : f32
    %113 = vector.broadcast %cst_37 : f32 to vector<4x32xf32>
    %114 = arith.addf %113, %112 : vector<4x32xf32>
    %115 = arith.divf %113, %114 : vector<4x32xf32>
    %116 = arith.mulf %107, %78 : vector<4x32xf32>
    %117 = arith.mulf %101, %109 : vector<4x32xf32>
    %118 = arith.addf %116, %117 : vector<4x32xf32>
    %119 = math.tanh %118 : vector<4x32xf32>
    %120 = arith.mulf %115, %119 : vector<4x32xf32>
    %121 = vector.extract_strided_slice %120 {offsets = [0, 0], sizes = [2, 32], strides = [1, 1]} : vector<4x32xf32> to vector<2x32xf32>
    %c5 = arith.constant 5 : index
    %c0_38 = arith.constant 0 : index
    %c0_39 = arith.constant 0 : index
    %122 = vector.load %arg2[%c5, %c0_38, %c0_39] : memref<8x4x32xf32, #tpu.memory_space<vmem>>, vector<1x2x32xf32>
    %123 = vector.shape_cast %122 : vector<1x2x32xf32> to vector<2x32xf32>
    %124 = vector.shape_cast %121 : vector<2x32xf32> to vector<1x2x32xf32>
    tpu.vector_store %arg2[%c5, %c0_38, %c0_39], %124 {strides = array<i32>} : memref<8x4x32xf32, #tpu.memory_space<vmem>>, vector<1x2x32xf32>,
    %125 = vector.extract_strided_slice %120 {offsets = [2, 0], sizes = [2, 32], strides = [1, 1]} : vector<4x32xf32> to vector<2x32xf32>
    %c2_40 = arith.constant 2 : index
    %c2_41 = arith.constant 2 : index
    %c0_42 = arith.constant 0 : index
    %126 = vector.load %arg2[%c2_40, %c2_41, %c0_42] : memref<8x4x32xf32, #tpu.memory_space<vmem>>, vector<1x2x32xf32>
    %127 = vector.shape_cast %126 : vector<1x2x32xf32> to vector<2x32xf32>
    %128 = vector.shape_cast %125 : vector<2x32xf32> to vector<1x2x32xf32>
    tpu.vector_store %arg2[%c2_40, %c2_41, %c0_42], %128 {strides = array<i32>} : memref<8x4x32xf32, #tpu.memory_space<vmem>>, vector<1x2x32xf32>,
    %129 = arith.truncf %120 : vector<4x32xf32> to vector<4x32xbf16>
    %cst_43 = arith.constant dense<0.000000e+00> : vector<4x128xf32>
    %130 = tpu.matmul %129, %1, %cst_43 {dimension_numbers = #tpu.dot_dimension_numbers<[1], [0], [0], [1], [0, 0, 1, 1], [], []>} : vector<4x32xbf16>, vector<32x128xbf16>, vector<4x128xf32> -> vector<4x128xf32>
    %cst_44 = arith.constant dense<0.000000e+00> : vector<4x128xf32>
    %131 = tpu.matmul %129, %3, %cst_44 {dimension_numbers = #tpu.dot_dimension_numbers<[1], [0], [0], [1], [0, 0, 1, 1], [], []>} : vector<4x32xbf16>, vector<32x128xbf16>, vector<4x128xf32> -> vector<4x128xf32>
    %132 = arith.select %6, %130, %131 : vector<4x128xi1>, vector<4x128xf32>
    %c3 = arith.constant 3 : index
    %c0_45 = arith.constant 0 : index
    %c0_46 = arith.constant 0 : index
    %133 = vector.load %arg0[%c3, %c0_45, %c0_46] : memref<8x4x128xf32, #tpu.memory_space<vmem>>, vector<1x4x128xf32>
    %134 = vector.shape_cast %133 : vector<1x4x128xf32> to vector<4x128xf32>
    %135 = arith.addf %134, %132 : vector<4x128xf32>
    %136 = vector.extract_strided_slice %135 {offsets = [0, 0], sizes = [4, 32], strides = [1, 1]} : vector<4x128xf32> to vector<4x32xf32>
    %137 = arith.negf %136 : vector<4x32xf32>
    %138 = math.exp %137 : vector<4x32xf32>
    %cst_47 = arith.constant 1.000000e+00 : f32
    %139 = vector.broadcast %cst_47 : f32 to vector<4x32xf32>
    %140 = arith.addf %139, %138 : vector<4x32xf32>
    %141 = arith.divf %139, %140 : vector<4x32xf32>
    %142 = vector.extract_strided_slice %135 {offsets = [0, 32], sizes = [4, 32], strides = [1, 1]} : vector<4x128xf32> to vector<4x32xf32>
    %143 = arith.negf %142 : vector<4x32xf32>
    %144 = math.exp %143 : vector<4x32xf32>
    %cst_48 = arith.constant 1.000000e+00 : f32
    %145 = vector.broadcast %cst_48 : f32 to vector<4x32xf32>
    %146 = arith.addf %145, %144 : vector<4x32xf32>
    %147 = arith.divf %145, %146 : vector<4x32xf32>
    %148 = vector.extract_strided_slice %135 {offsets = [0, 64], sizes = [4, 32], strides = [1, 1]} : vector<4x128xf32> to vector<4x32xf32>
    %149 = math.tanh %148 : vector<4x32xf32>
    %150 = vector.extract_strided_slice %135 {offsets = [0, 96], sizes = [4, 32], strides = [1, 1]} : vector<4x128xf32> to vector<4x32xf32>
    %151 = arith.negf %150 : vector<4x32xf32>
    %152 = math.exp %151 : vector<4x32xf32>
    %cst_49 = arith.constant 1.000000e+00 : f32
    %153 = vector.broadcast %cst_49 : f32 to vector<4x32xf32>
    %154 = arith.addf %153, %152 : vector<4x32xf32>
    %155 = arith.divf %153, %154 : vector<4x32xf32>
    %156 = arith.mulf %147, %118 : vector<4x32xf32>
    %157 = arith.mulf %141, %149 : vector<4x32xf32>
    %158 = arith.addf %156, %157 : vector<4x32xf32>
    %159 = math.tanh %158 : vector<4x32xf32>
    %160 = arith.mulf %155, %159 : vector<4x32xf32>
    %161 = vector.extract_strided_slice %160 {offsets = [0, 0], sizes = [2, 32], strides = [1, 1]} : vector<4x32xf32> to vector<2x32xf32>
    %c4 = arith.constant 4 : index
    %c0_50 = arith.constant 0 : index
    %c0_51 = arith.constant 0 : index
    %162 = vector.load %arg2[%c4, %c0_50, %c0_51] : memref<8x4x32xf32, #tpu.memory_space<vmem>>, vector<1x2x32xf32>
    %163 = vector.shape_cast %162 : vector<1x2x32xf32> to vector<2x32xf32>
    %164 = vector.shape_cast %161 : vector<2x32xf32> to vector<1x2x32xf32>
    tpu.vector_store %arg2[%c4, %c0_50, %c0_51], %164 {strides = array<i32>} : memref<8x4x32xf32, #tpu.memory_space<vmem>>, vector<1x2x32xf32>,
    %165 = vector.extract_strided_slice %160 {offsets = [2, 0], sizes = [2, 32], strides = [1, 1]} : vector<4x32xf32> to vector<2x32xf32>
    %c3_52 = arith.constant 3 : index
    %c2_53 = arith.constant 2 : index
    %c0_54 = arith.constant 0 : index
    %166 = vector.load %arg2[%c3_52, %c2_53, %c0_54] : memref<8x4x32xf32, #tpu.memory_space<vmem>>, vector<1x2x32xf32>
    %167 = vector.shape_cast %166 : vector<1x2x32xf32> to vector<2x32xf32>
    %168 = vector.shape_cast %165 : vector<2x32xf32> to vector<1x2x32xf32>
    tpu.vector_store %arg2[%c3_52, %c2_53, %c0_54], %168 {strides = array<i32>} : memref<8x4x32xf32, #tpu.memory_space<vmem>>, vector<1x2x32xf32>,
    %169 = arith.truncf %160 : vector<4x32xf32> to vector<4x32xbf16>
    %cst_55 = arith.constant dense<0.000000e+00> : vector<4x128xf32>
    %170 = tpu.matmul %169, %1, %cst_55 {dimension_numbers = #tpu.dot_dimension_numbers<[1], [0], [0], [1], [0, 0, 1, 1], [], []>} : vector<4x32xbf16>, vector<32x128xbf16>, vector<4x128xf32> -> vector<4x128xf32>
    %cst_56 = arith.constant dense<0.000000e+00> : vector<4x128xf32>
    %171 = tpu.matmul %169, %3, %cst_56 {dimension_numbers = #tpu.dot_dimension_numbers<[1], [0], [0], [1], [0, 0, 1, 1], [], []>} : vector<4x32xbf16>, vector<32x128xbf16>, vector<4x128xf32> -> vector<4x128xf32>
    %172 = arith.select %6, %170, %171 : vector<4x128xi1>, vector<4x128xf32>
    %c4_57 = arith.constant 4 : index
    %c0_58 = arith.constant 0 : index
    %c0_59 = arith.constant 0 : index
    %173 = vector.load %arg0[%c4_57, %c0_58, %c0_59] : memref<8x4x128xf32, #tpu.memory_space<vmem>>, vector<1x4x128xf32>
    %174 = vector.shape_cast %173 : vector<1x4x128xf32> to vector<4x128xf32>
    %175 = arith.addf %174, %172 : vector<4x128xf32>
    %176 = vector.extract_strided_slice %175 {offsets = [0, 0], sizes = [4, 32], strides = [1, 1]} : vector<4x128xf32> to vector<4x32xf32>
    %177 = arith.negf %176 : vector<4x32xf32>
    %178 = math.exp %177 : vector<4x32xf32>
    %cst_60 = arith.constant 1.000000e+00 : f32
    %179 = vector.broadcast %cst_60 : f32 to vector<4x32xf32>
    %180 = arith.addf %179, %178 : vector<4x32xf32>
    %181 = arith.divf %179, %180 : vector<4x32xf32>
    %182 = vector.extract_strided_slice %175 {offsets = [0, 32], sizes = [4, 32], strides = [1, 1]} : vector<4x128xf32> to vector<4x32xf32>
    %183 = arith.negf %182 : vector<4x32xf32>
    %184 = math.exp %183 : vector<4x32xf32>
    %cst_61 = arith.constant 1.000000e+00 : f32
    %185 = vector.broadcast %cst_61 : f32 to vector<4x32xf32>
    %186 = arith.addf %185, %184 : vector<4x32xf32>
    %187 = arith.divf %185, %186 : vector<4x32xf32>
    %188 = vector.extract_strided_slice %175 {offsets = [0, 64], sizes = [4, 32], strides = [1, 1]} : vector<4x128xf32> to vector<4x32xf32>
    %189 = math.tanh %188 : vector<4x32xf32>
    %190 = vector.extract_strided_slice %175 {offsets = [0, 96], sizes = [4, 32], strides = [1, 1]} : vector<4x128xf32> to vector<4x32xf32>
    %191 = arith.negf %190 : vector<4x32xf32>
    %192 = math.exp %191 : vector<4x32xf32>
    %cst_62 = arith.constant 1.000000e+00 : f32
    %193 = vector.broadcast %cst_62 : f32 to vector<4x32xf32>
    %194 = arith.addf %193, %192 : vector<4x32xf32>
    %195 = arith.divf %193, %194 : vector<4x32xf32>
    %196 = arith.mulf %187, %158 : vector<4x32xf32>
    %197 = arith.mulf %181, %189 : vector<4x32xf32>
    %198 = arith.addf %196, %197 : vector<4x32xf32>
    %199 = math.tanh %198 : vector<4x32xf32>
    %200 = arith.mulf %195, %199 : vector<4x32xf32>
    %201 = vector.extract_strided_slice %200 {offsets = [0, 0], sizes = [2, 32], strides = [1, 1]} : vector<4x32xf32> to vector<2x32xf32>
    %c3_63 = arith.constant 3 : index
    %c0_64 = arith.constant 0 : index
    %c0_65 = arith.constant 0 : index
    %202 = vector.load %arg2[%c3_63, %c0_64, %c0_65] : memref<8x4x32xf32, #tpu.memory_space<vmem>>, vector<1x2x32xf32>
    %203 = vector.shape_cast %202 : vector<1x2x32xf32> to vector<2x32xf32>
    %204 = vector.shape_cast %201 : vector<2x32xf32> to vector<1x2x32xf32>
    tpu.vector_store %arg2[%c3_63, %c0_64, %c0_65], %204 {strides = array<i32>} : memref<8x4x32xf32, #tpu.memory_space<vmem>>, vector<1x2x32xf32>,
    %205 = vector.extract_strided_slice %200 {offsets = [2, 0], sizes = [2, 32], strides = [1, 1]} : vector<4x32xf32> to vector<2x32xf32>
    %c4_66 = arith.constant 4 : index
    %c2_67 = arith.constant 2 : index
    %c0_68 = arith.constant 0 : index
    %206 = vector.load %arg2[%c4_66, %c2_67, %c0_68] : memref<8x4x32xf32, #tpu.memory_space<vmem>>, vector<1x2x32xf32>
    %207 = vector.shape_cast %206 : vector<1x2x32xf32> to vector<2x32xf32>
    %208 = vector.shape_cast %205 : vector<2x32xf32> to vector<1x2x32xf32>
    tpu.vector_store %arg2[%c4_66, %c2_67, %c0_68], %208 {strides = array<i32>} : memref<8x4x32xf32, #tpu.memory_space<vmem>>, vector<1x2x32xf32>,
    %209 = arith.truncf %200 : vector<4x32xf32> to vector<4x32xbf16>
    %cst_69 = arith.constant dense<0.000000e+00> : vector<4x128xf32>
    %210 = tpu.matmul %209, %1, %cst_69 {dimension_numbers = #tpu.dot_dimension_numbers<[1], [0], [0], [1], [0, 0, 1, 1], [], []>} : vector<4x32xbf16>, vector<32x128xbf16>, vector<4x128xf32> -> vector<4x128xf32>
    %cst_70 = arith.constant dense<0.000000e+00> : vector<4x128xf32>
    %211 = tpu.matmul %209, %3, %cst_70 {dimension_numbers = #tpu.dot_dimension_numbers<[1], [0], [0], [1], [0, 0, 1, 1], [], []>} : vector<4x32xbf16>, vector<32x128xbf16>, vector<4x128xf32> -> vector<4x128xf32>
    %212 = arith.select %6, %210, %211 : vector<4x128xi1>, vector<4x128xf32>
    %c5_71 = arith.constant 5 : index
    %c0_72 = arith.constant 0 : index
    %c0_73 = arith.constant 0 : index
    %213 = vector.load %arg0[%c5_71, %c0_72, %c0_73] : memref<8x4x128xf32, #tpu.memory_space<vmem>>, vector<1x4x128xf32>
    %214 = vector.shape_cast %213 : vector<1x4x128xf32> to vector<4x128xf32>
    %215 = arith.addf %214, %212 : vector<4x128xf32>
    %216 = vector.extract_strided_slice %215 {offsets = [0, 0], sizes = [4, 32], strides = [1, 1]} : vector<4x128xf32> to vector<4x32xf32>
    %217 = arith.negf %216 : vector<4x32xf32>
    %218 = math.exp %217 : vector<4x32xf32>
    %cst_74 = arith.constant 1.000000e+00 : f32
    %219 = vector.broadcast %cst_74 : f32 to vector<4x32xf32>
    %220 = arith.addf %219, %218 : vector<4x32xf32>
    %221 = arith.divf %219, %220 : vector<4x32xf32>
    %222 = vector.extract_strided_slice %215 {offsets = [0, 32], sizes = [4, 32], strides = [1, 1]} : vector<4x128xf32> to vector<4x32xf32>
    %223 = arith.negf %222 : vector<4x32xf32>
    %224 = math.exp %223 : vector<4x32xf32>
    %cst_75 = arith.constant 1.000000e+00 : f32
    %225 = vector.broadcast %cst_75 : f32 to vector<4x32xf32>
    %226 = arith.addf %225, %224 : vector<4x32xf32>
    %227 = arith.divf %225, %226 : vector<4x32xf32>
    %228 = vector.extract_strided_slice %215 {offsets = [0, 64], sizes = [4, 32], strides = [1, 1]} : vector<4x128xf32> to vector<4x32xf32>
    %229 = math.tanh %228 : vector<4x32xf32>
    %230 = vector.extract_strided_slice %215 {offsets = [0, 96], sizes = [4, 32], strides = [1, 1]} : vector<4x128xf32> to vector<4x32xf32>
    %231 = arith.negf %230 : vector<4x32xf32>
    %232 = math.exp %231 : vector<4x32xf32>
    %cst_76 = arith.constant 1.000000e+00 : f32
    %233 = vector.broadcast %cst_76 : f32 to vector<4x32xf32>
    %234 = arith.addf %233, %232 : vector<4x32xf32>
    %235 = arith.divf %233, %234 : vector<4x32xf32>
    %236 = arith.mulf %227, %198 : vector<4x32xf32>
    %237 = arith.mulf %221, %229 : vector<4x32xf32>
    %238 = arith.addf %236, %237 : vector<4x32xf32>
    %239 = math.tanh %238 : vector<4x32xf32>
    %240 = arith.mulf %235, %239 : vector<4x32xf32>
    %241 = vector.extract_strided_slice %240 {offsets = [0, 0], sizes = [2, 32], strides = [1, 1]} : vector<4x32xf32> to vector<2x32xf32>
    %c2_77 = arith.constant 2 : index
    %c0_78 = arith.constant 0 : index
    %c0_79 = arith.constant 0 : index
    %242 = vector.load %arg2[%c2_77, %c0_78, %c0_79] : memref<8x4x32xf32, #tpu.memory_space<vmem>>, vector<1x2x32xf32>
    %243 = vector.shape_cast %242 : vector<1x2x32xf32> to vector<2x32xf32>
    %244 = vector.shape_cast %241 : vector<2x32xf32> to vector<1x2x32xf32>
    tpu.vector_store %arg2[%c2_77, %c0_78, %c0_79], %244 {strides = array<i32>} : memref<8x4x32xf32, #tpu.memory_space<vmem>>, vector<1x2x32xf32>,
    %245 = vector.extract_strided_slice %240 {offsets = [2, 0], sizes = [2, 32], strides = [1, 1]} : vector<4x32xf32> to vector<2x32xf32>
    %c5_80 = arith.constant 5 : index
    %c2_81 = arith.constant 2 : index
    %c0_82 = arith.constant 0 : index
    %246 = vector.load %arg2[%c5_80, %c2_81, %c0_82] : memref<8x4x32xf32, #tpu.memory_space<vmem>>, vector<1x2x32xf32>
    %247 = vector.shape_cast %246 : vector<1x2x32xf32> to vector<2x32xf32>
    %248 = vector.shape_cast %245 : vector<2x32xf32> to vector<1x2x32xf32>
    tpu.vector_store %arg2[%c5_80, %c2_81, %c0_82], %248 {strides = array<i32>} : memref<8x4x32xf32, #tpu.memory_space<vmem>>, vector<1x2x32xf32>,
    %249 = arith.truncf %240 : vector<4x32xf32> to vector<4x32xbf16>
    %cst_83 = arith.constant dense<0.000000e+00> : vector<4x128xf32>
    %250 = tpu.matmul %249, %1, %cst_83 {dimension_numbers = #tpu.dot_dimension_numbers<[1], [0], [0], [1], [0, 0, 1, 1], [], []>} : vector<4x32xbf16>, vector<32x128xbf16>, vector<4x128xf32> -> vector<4x128xf32>
    %cst_84 = arith.constant dense<0.000000e+00> : vector<4x128xf32>
    %251 = tpu.matmul %249, %3, %cst_84 {dimension_numbers = #tpu.dot_dimension_numbers<[1], [0], [0], [1], [0, 0, 1, 1], [], []>} : vector<4x32xbf16>, vector<32x128xbf16>, vector<4x128xf32> -> vector<4x128xf32>
    %252 = arith.select %6, %250, %251 : vector<4x128xi1>, vector<4x128xf32>
    %c6_85 = arith.constant 6 : index
    %c0_86 = arith.constant 0 : index
    %c0_87 = arith.constant 0 : index
    %253 = vector.load %arg0[%c6_85, %c0_86, %c0_87] : memref<8x4x128xf32, #tpu.memory_space<vmem>>, vector<1x4x128xf32>
    %254 = vector.shape_cast %253 : vector<1x4x128xf32> to vector<4x128xf32>
    %255 = arith.addf %254, %252 : vector<4x128xf32>
    %256 = vector.extract_strided_slice %255 {offsets = [0, 0], sizes = [4, 32], strides = [1, 1]} : vector<4x128xf32> to vector<4x32xf32>
    %257 = arith.negf %256 : vector<4x32xf32>
    %258 = math.exp %257 : vector<4x32xf32>
    %cst_88 = arith.constant 1.000000e+00 : f32
    %259 = vector.broadcast %cst_88 : f32 to vector<4x32xf32>
    %260 = arith.addf %259, %258 : vector<4x32xf32>
    %261 = arith.divf %259, %260 : vector<4x32xf32>
    %262 = vector.extract_strided_slice %255 {offsets = [0, 32], sizes = [4, 32], strides = [1, 1]} : vector<4x128xf32> to vector<4x32xf32>
    %263 = arith.negf %262 : vector<4x32xf32>
    %264 = math.exp %263 : vector<4x32xf32>
    %cst_89 = arith.constant 1.000000e+00 : f32
    %265 = vector.broadcast %cst_89 : f32 to vector<4x32xf32>
    %266 = arith.addf %265, %264 : vector<4x32xf32>
    %267 = arith.divf %265, %266 : vector<4x32xf32>
    %268 = vector.extract_strided_slice %255 {offsets = [0, 64], sizes = [4, 32], strides = [1, 1]} : vector<4x128xf32> to vector<4x32xf32>
    %269 = math.tanh %268 : vector<4x32xf32>
    %270 = vector.extract_strided_slice %255 {offsets = [0, 96], sizes = [4, 32], strides = [1, 1]} : vector<4x128xf32> to vector<4x32xf32>
    %271 = arith.negf %270 : vector<4x32xf32>
    %272 = math.exp %271 : vector<4x32xf32>
    %cst_90 = arith.constant 1.000000e+00 : f32
    %273 = vector.broadcast %cst_90 : f32 to vector<4x32xf32>
    %274 = arith.addf %273, %272 : vector<4x32xf32>
    %275 = arith.divf %273, %274 : vector<4x32xf32>
    %276 = arith.mulf %267, %238 : vector<4x32xf32>
    %277 = arith.mulf %261, %269 : vector<4x32xf32>
    %278 = arith.addf %276, %277 : vector<4x32xf32>
    %279 = math.tanh %278 : vector<4x32xf32>
    %280 = arith.mulf %275, %279 : vector<4x32xf32>
    %281 = vector.extract_strided_slice %280 {offsets = [0, 0], sizes = [2, 32], strides = [1, 1]} : vector<4x32xf32> to vector<2x32xf32>
    %c1_91 = arith.constant 1 : index
    %c0_92 = arith.constant 0 : index
    %c0_93 = arith.constant 0 : index
    %282 = vector.load %arg2[%c1_91, %c0_92, %c0_93] : memref<8x4x32xf32, #tpu.memory_space<vmem>>, vector<1x2x32xf32>
    %283 = vector.shape_cast %282 : vector<1x2x32xf32> to vector<2x32xf32>
    %284 = vector.shape_cast %281 : vector<2x32xf32> to vector<1x2x32xf32>
    tpu.vector_store %arg2[%c1_91, %c0_92, %c0_93], %284 {strides = array<i32>} : memref<8x4x32xf32, #tpu.memory_space<vmem>>, vector<1x2x32xf32>,
    %285 = vector.extract_strided_slice %280 {offsets = [2, 0], sizes = [2, 32], strides = [1, 1]} : vector<4x32xf32> to vector<2x32xf32>
    %c6_94 = arith.constant 6 : index
    %c2_95 = arith.constant 2 : index
    %c0_96 = arith.constant 0 : index
    %286 = vector.load %arg2[%c6_94, %c2_95, %c0_96] : memref<8x4x32xf32, #tpu.memory_space<vmem>>, vector<1x2x32xf32>
    %287 = vector.shape_cast %286 : vector<1x2x32xf32> to vector<2x32xf32>
    %288 = vector.shape_cast %285 : vector<2x32xf32> to vector<1x2x32xf32>
    tpu.vector_store %arg2[%c6_94, %c2_95, %c0_96], %288 {strides = array<i32>} : memref<8x4x32xf32, #tpu.memory_space<vmem>>, vector<1x2x32xf32>,
    %289 = arith.truncf %280 : vector<4x32xf32> to vector<4x32xbf16>
    %cst_97 = arith.constant dense<0.000000e+00> : vector<4x128xf32>
    %290 = tpu.matmul %289, %1, %cst_97 {dimension_numbers = #tpu.dot_dimension_numbers<[1], [0], [0], [1], [0, 0, 1, 1], [], []>} : vector<4x32xbf16>, vector<32x128xbf16>, vector<4x128xf32> -> vector<4x128xf32>
    %cst_98 = arith.constant dense<0.000000e+00> : vector<4x128xf32>
    %291 = tpu.matmul %289, %3, %cst_98 {dimension_numbers = #tpu.dot_dimension_numbers<[1], [0], [0], [1], [0, 0, 1, 1], [], []>} : vector<4x32xbf16>, vector<32x128xbf16>, vector<4x128xf32> -> vector<4x128xf32>
    %292 = arith.select %6, %290, %291 : vector<4x128xi1>, vector<4x128xf32>
    %c7_99 = arith.constant 7 : index
    %c0_100 = arith.constant 0 : index
    %c0_101 = arith.constant 0 : index
    %293 = vector.load %arg0[%c7_99, %c0_100, %c0_101] : memref<8x4x128xf32, #tpu.memory_space<vmem>>, vector<1x4x128xf32>
    %294 = vector.shape_cast %293 : vector<1x4x128xf32> to vector<4x128xf32>
    %295 = arith.addf %294, %292 : vector<4x128xf32>
    %296 = vector.extract_strided_slice %295 {offsets = [0, 0], sizes = [4, 32], strides = [1, 1]} : vector<4x128xf32> to vector<4x32xf32>
    %297 = arith.negf %296 : vector<4x32xf32>
    %298 = math.exp %297 : vector<4x32xf32>
    %cst_102 = arith.constant 1.000000e+00 : f32
    %299 = vector.broadcast %cst_102 : f32 to vector<4x32xf32>
    %300 = arith.addf %299, %298 : vector<4x32xf32>
    %301 = arith.divf %299, %300 : vector<4x32xf32>
    %302 = vector.extract_strided_slice %295 {offsets = [0, 32], sizes = [4, 32], strides = [1, 1]} : vector<4x128xf32> to vector<4x32xf32>
    %303 = arith.negf %302 : vector<4x32xf32>
    %304 = math.exp %303 : vector<4x32xf32>
    %cst_103 = arith.constant 1.000000e+00 : f32
    %305 = vector.broadcast %cst_103 : f32 to vector<4x32xf32>
    %306 = arith.addf %305, %304 : vector<4x32xf32>
    %307 = arith.divf %305, %306 : vector<4x32xf32>
    %308 = vector.extract_strided_slice %295 {offsets = [0, 64], sizes = [4, 32], strides = [1, 1]} : vector<4x128xf32> to vector<4x32xf32>
    %309 = math.tanh %308 : vector<4x32xf32>
    %310 = vector.extract_strided_slice %295 {offsets = [0, 96], sizes = [4, 32], strides = [1, 1]} : vector<4x128xf32> to vector<4x32xf32>
    %311 = arith.negf %310 : vector<4x32xf32>
    %312 = math.exp %311 : vector<4x32xf32>
    %cst_104 = arith.constant 1.000000e+00 : f32
    %313 = vector.broadcast %cst_104 : f32 to vector<4x32xf32>
    %314 = arith.addf %313, %312 : vector<4x32xf32>
    %315 = arith.divf %313, %314 : vector<4x32xf32>
    %316 = arith.mulf %307, %278 : vector<4x32xf32>
    %317 = arith.mulf %301, %309 : vector<4x32xf32>
    %318 = arith.addf %316, %317 : vector<4x32xf32>
    %319 = math.tanh %318 : vector<4x32xf32>
    %320 = arith.mulf %315, %319 : vector<4x32xf32>
    %321 = vector.extract_strided_slice %320 {offsets = [0, 0], sizes = [2, 32], strides = [1, 1]} : vector<4x32xf32> to vector<2x32xf32>
    %c0_105 = arith.constant 0 : index
    %c0_106 = arith.constant 0 : index
    %c0_107 = arith.constant 0 : index
    %322 = vector.load %arg2[%c0_105, %c0_106, %c0_107] : memref<8x4x32xf32, #tpu.memory_space<vmem>>, vector<1x2x32xf32>
    %323 = vector.shape_cast %322 : vector<1x2x32xf32> to vector<2x32xf32>
    %324 = vector.shape_cast %321 : vector<2x32xf32> to vector<1x2x32xf32>
    tpu.vector_store %arg2[%c0_105, %c0_106, %c0_107], %324 {strides = array<i32>} : memref<8x4x32xf32, #tpu.memory_space<vmem>>, vector<1x2x32xf32>,
    %325 = vector.extract_strided_slice %320 {offsets = [2, 0], sizes = [2, 32], strides = [1, 1]} : vector<4x32xf32> to vector<2x32xf32>
    %c7_108 = arith.constant 7 : index
    %c2_109 = arith.constant 2 : index
    %c0_110 = arith.constant 0 : index
    %326 = vector.load %arg2[%c7_108, %c2_109, %c0_110] : memref<8x4x32xf32, #tpu.memory_space<vmem>>, vector<1x2x32xf32>
    %327 = vector.shape_cast %326 : vector<1x2x32xf32> to vector<2x32xf32>
    %328 = vector.shape_cast %325 : vector<2x32xf32> to vector<1x2x32xf32>
    tpu.vector_store %arg2[%c7_108, %c2_109, %c0_110], %328 {strides = array<i32>} : memref<8x4x32xf32, #tpu.memory_space<vmem>>, vector<1x2x32xf32>,
    %c0_111 = arith.constant 0 : index
    %c0_112 = arith.constant 0 : index
    %329 = vector.load %arg3[%c0_111, %c0_112] : memref<4x32xf32, #tpu.memory_space<vmem>>, vector<4x32xf32>
    tpu.vector_store %arg3[%c0_111, %c0_112], %320 {strides = array<i32>} : memref<4x32xf32, #tpu.memory_space<vmem>>, vector<4x32xf32>,
    %c0_113 = arith.constant 0 : index
    %c0_114 = arith.constant 0 : index
    %330 = vector.load %arg4[%c0_113, %c0_114] : memref<4x32xf32, #tpu.memory_space<vmem>>, vector<4x32xf32>
    tpu.vector_store %arg4[%c0_113, %c0_114], %318 {strides = array<i32>} : memref<4x32xf32, #tpu.memory_space<vmem>>, vector<4x32xf32>,
    return
  }
}

module attributes {stable_mosaic.version = 11 : i64} {
  func.func @_bilstm_layer_kernel(%arg0: memref<8x4x128xf32, #tpu.memory_space<vmem>>, %arg1: memref<2x32x128xbf16, #tpu.memory_space<vmem>>, %arg2: memref<8x4x32xbf16, #tpu.memory_space<vmem>>, %arg3: memref<4x32xf32, #tpu.memory_space<vmem>>, %arg4: memref<4x32xf32, #tpu.memory_space<vmem>>) attributes {dimension_semantics = [], scalar_prefetch = 0 : i64, scratch_operands = 0 : i64, tpu.core_type = #tpu.core_type<tc>} {
    %c0 = arith.constant 0 : index
    %c0_0 = arith.constant 0 : index
    %c0_1 = arith.constant 0 : index
    %0 = vector.load %arg1[%c0, %c0_0, %c0_1] : memref<2x32x128xbf16, #tpu.memory_space<vmem>>, vector<1x32x128xbf16>
    %1 = vector.shape_cast %0 : vector<1x32x128xbf16> to vector<32x128xbf16>
    %c1 = arith.constant 1 : index
    %c0_2 = arith.constant 0 : index
    %c0_3 = arith.constant 0 : index
    %2 = vector.load %arg1[%c1, %c0_2, %c0_3] : memref<2x32x128xbf16, #tpu.memory_space<vmem>>, vector<1x32x128xbf16>
    %3 = vector.shape_cast %2 : vector<1x32x128xbf16> to vector<32x128xbf16>
    %4 = tpu.iota {dimensions = array<i32: 0>} : vector<4x128xi32>
    %c2_i32 = arith.constant 2 : i32
    %5 = vector.broadcast %c2_i32 : i32 to vector<4x128xi32>
    %6 = arith.cmpi slt, %4, %5 : vector<4x128xi32>
    %cst = arith.constant 0.000000e+00 : f32
    %7 = vector.broadcast %cst : f32 to vector<4x32xf32>
    %cst_4 = arith.constant 0.000000e+00 : f32
    %8 = vector.broadcast %cst_4 : f32 to vector<4x32xf32>
    %9 = arith.truncf %7 : vector<4x32xf32> to vector<4x32xbf16>
    %cst_5 = arith.constant dense<0.000000e+00> : vector<4x128xf32>
    %10 = tpu.matmul %9, %1, %cst_5 {dimension_numbers = #tpu.dot_dimension_numbers<[1], [0], [0], [1], [0, 0, 1, 1], [], []>} : vector<4x32xbf16>, vector<32x128xbf16>, vector<4x128xf32> -> vector<4x128xf32>
    %cst_6 = arith.constant dense<0.000000e+00> : vector<4x128xf32>
    %11 = tpu.matmul %9, %3, %cst_6 {dimension_numbers = #tpu.dot_dimension_numbers<[1], [0], [0], [1], [0, 0, 1, 1], [], []>} : vector<4x32xbf16>, vector<32x128xbf16>, vector<4x128xf32> -> vector<4x128xf32>
    %12 = arith.select %6, %10, %11 : vector<4x128xi1>, vector<4x128xf32>
    %c0_7 = arith.constant 0 : index
    %c0_8 = arith.constant 0 : index
    %c0_9 = arith.constant 0 : index
    %13 = vector.load %arg0[%c0_7, %c0_8, %c0_9] : memref<8x4x128xf32, #tpu.memory_space<vmem>>, vector<1x4x128xf32>
    %14 = vector.shape_cast %13 : vector<1x4x128xf32> to vector<4x128xf32>
    %15 = arith.addf %14, %12 : vector<4x128xf32>
    %16 = vector.extract_strided_slice %15 {offsets = [0, 0], sizes = [4, 32], strides = [1, 1]} : vector<4x128xf32> to vector<4x32xf32>
    %17 = arith.negf %16 : vector<4x32xf32>
    %18 = math.exp %17 : vector<4x32xf32>
    %cst_10 = arith.constant 1.000000e+00 : f32
    %19 = vector.broadcast %cst_10 : f32 to vector<4x32xf32>
    %20 = arith.addf %19, %18 : vector<4x32xf32>
    %21 = arith.divf %19, %20 : vector<4x32xf32>
    %22 = vector.extract_strided_slice %15 {offsets = [0, 32], sizes = [4, 32], strides = [1, 1]} : vector<4x128xf32> to vector<4x32xf32>
    %23 = arith.negf %22 : vector<4x32xf32>
    %24 = math.exp %23 : vector<4x32xf32>
    %cst_11 = arith.constant 1.000000e+00 : f32
    %25 = vector.broadcast %cst_11 : f32 to vector<4x32xf32>
    %26 = arith.addf %25, %24 : vector<4x32xf32>
    %27 = arith.divf %25, %26 : vector<4x32xf32>
    %28 = vector.extract_strided_slice %15 {offsets = [0, 64], sizes = [4, 32], strides = [1, 1]} : vector<4x128xf32> to vector<4x32xf32>
    %29 = math.tanh %28 : vector<4x32xf32>
    %30 = vector.extract_strided_slice %15 {offsets = [0, 96], sizes = [4, 32], strides = [1, 1]} : vector<4x128xf32> to vector<4x32xf32>
    %31 = arith.negf %30 : vector<4x32xf32>
    %32 = math.exp %31 : vector<4x32xf32>
    %cst_12 = arith.constant 1.000000e+00 : f32
    %33 = vector.broadcast %cst_12 : f32 to vector<4x32xf32>
    %34 = arith.addf %33, %32 : vector<4x32xf32>
    %35 = arith.divf %33, %34 : vector<4x32xf32>
    %36 = arith.mulf %27, %8 : vector<4x32xf32>
    %37 = arith.mulf %21, %29 : vector<4x32xf32>
    %38 = arith.addf %36, %37 : vector<4x32xf32>
    %39 = math.tanh %38 : vector<4x32xf32>
    %40 = arith.mulf %35, %39 : vector<4x32xf32>
    %41 = arith.truncf %40 : vector<4x32xf32> to vector<4x32xbf16>
    %42 = vector.extract_strided_slice %41 {offsets = [0, 0], sizes = [2, 32], strides = [1, 1]} : vector<4x32xbf16> to vector<2x32xbf16>
    %c0_13 = arith.constant 0 : index
    %c0_14 = arith.constant 0 : index
    %c0_15 = arith.constant 0 : index
    %43 = vector.load %arg2[%c0_13, %c0_14, %c0_15] : memref<8x4x32xbf16, #tpu.memory_space<vmem>>, vector<1x2x32xbf16>
    %44 = vector.shape_cast %43 : vector<1x2x32xbf16> to vector<2x32xbf16>
    %45 = vector.shape_cast %42 : vector<2x32xbf16> to vector<1x2x32xbf16>
    tpu.vector_store %arg2[%c0_13, %c0_14, %c0_15], %45 {strides = array<i32>} : memref<8x4x32xbf16, #tpu.memory_space<vmem>>, vector<1x2x32xbf16>,
    %46 = vector.extract_strided_slice %41 {offsets = [2, 0], sizes = [2, 32], strides = [1, 1]} : vector<4x32xbf16> to vector<2x32xbf16>
    %c7 = arith.constant 7 : index
    %c2 = arith.constant 2 : index
    %c0_16 = arith.constant 0 : index
    %47 = vector.load %arg2[%c7, %c2, %c0_16] : memref<8x4x32xbf16, #tpu.memory_space<vmem>>, vector<1x2x32xbf16>
    %48 = vector.shape_cast %47 : vector<1x2x32xbf16> to vector<2x32xbf16>
    %49 = vector.shape_cast %46 : vector<2x32xbf16> to vector<1x2x32xbf16>
    tpu.vector_store %arg2[%c7, %c2, %c0_16], %49 {strides = array<i32>} : memref<8x4x32xbf16, #tpu.memory_space<vmem>>, vector<1x2x32xbf16>,
    %50 = arith.truncf %40 : vector<4x32xf32> to vector<4x32xbf16>
    %cst_17 = arith.constant dense<0.000000e+00> : vector<4x128xf32>
    %51 = tpu.matmul %50, %1, %cst_17 {dimension_numbers = #tpu.dot_dimension_numbers<[1], [0], [0], [1], [0, 0, 1, 1], [], []>} : vector<4x32xbf16>, vector<32x128xbf16>, vector<4x128xf32> -> vector<4x128xf32>
    %cst_18 = arith.constant dense<0.000000e+00> : vector<4x128xf32>
    %52 = tpu.matmul %50, %3, %cst_18 {dimension_numbers = #tpu.dot_dimension_numbers<[1], [0], [0], [1], [0, 0, 1, 1], [], []>} : vector<4x32xbf16>, vector<32x128xbf16>, vector<4x128xf32> -> vector<4x128xf32>
    %53 = arith.select %6, %51, %52 : vector<4x128xi1>, vector<4x128xf32>
    %c1_19 = arith.constant 1 : index
    %c0_20 = arith.constant 0 : index
    %c0_21 = arith.constant 0 : index
    %54 = vector.load %arg0[%c1_19, %c0_20, %c0_21] : memref<8x4x128xf32, #tpu.memory_space<vmem>>, vector<1x4x128xf32>
    %55 = vector.shape_cast %54 : vector<1x4x128xf32> to vector<4x128xf32>
    %56 = arith.addf %55, %53 : vector<4x128xf32>
    %57 = vector.extract_strided_slice %56 {offsets = [0, 0], sizes = [4, 32], strides = [1, 1]} : vector<4x128xf32> to vector<4x32xf32>
    %58 = arith.negf %57 : vector<4x32xf32>
    %59 = math.exp %58 : vector<4x32xf32>
    %cst_22 = arith.constant 1.000000e+00 : f32
    %60 = vector.broadcast %cst_22 : f32 to vector<4x32xf32>
    %61 = arith.addf %60, %59 : vector<4x32xf32>
    %62 = arith.divf %60, %61 : vector<4x32xf32>
    %63 = vector.extract_strided_slice %56 {offsets = [0, 32], sizes = [4, 32], strides = [1, 1]} : vector<4x128xf32> to vector<4x32xf32>
    %64 = arith.negf %63 : vector<4x32xf32>
    %65 = math.exp %64 : vector<4x32xf32>
    %cst_23 = arith.constant 1.000000e+00 : f32
    %66 = vector.broadcast %cst_23 : f32 to vector<4x32xf32>
    %67 = arith.addf %66, %65 : vector<4x32xf32>
    %68 = arith.divf %66, %67 : vector<4x32xf32>
    %69 = vector.extract_strided_slice %56 {offsets = [0, 64], sizes = [4, 32], strides = [1, 1]} : vector<4x128xf32> to vector<4x32xf32>
    %70 = math.tanh %69 : vector<4x32xf32>
    %71 = vector.extract_strided_slice %56 {offsets = [0, 96], sizes = [4, 32], strides = [1, 1]} : vector<4x128xf32> to vector<4x32xf32>
    %72 = arith.negf %71 : vector<4x32xf32>
    %73 = math.exp %72 : vector<4x32xf32>
    %cst_24 = arith.constant 1.000000e+00 : f32
    %74 = vector.broadcast %cst_24 : f32 to vector<4x32xf32>
    %75 = arith.addf %74, %73 : vector<4x32xf32>
    %76 = arith.divf %74, %75 : vector<4x32xf32>
    %77 = arith.mulf %68, %38 : vector<4x32xf32>
    %78 = arith.mulf %62, %70 : vector<4x32xf32>
    %79 = arith.addf %77, %78 : vector<4x32xf32>
    %80 = math.tanh %79 : vector<4x32xf32>
    %81 = arith.mulf %76, %80 : vector<4x32xf32>
    %82 = arith.truncf %81 : vector<4x32xf32> to vector<4x32xbf16>
    %83 = vector.extract_strided_slice %82 {offsets = [0, 0], sizes = [2, 32], strides = [1, 1]} : vector<4x32xbf16> to vector<2x32xbf16>
    %c1_25 = arith.constant 1 : index
    %c0_26 = arith.constant 0 : index
    %c0_27 = arith.constant 0 : index
    %84 = vector.load %arg2[%c1_25, %c0_26, %c0_27] : memref<8x4x32xbf16, #tpu.memory_space<vmem>>, vector<1x2x32xbf16>
    %85 = vector.shape_cast %84 : vector<1x2x32xbf16> to vector<2x32xbf16>
    %86 = vector.shape_cast %83 : vector<2x32xbf16> to vector<1x2x32xbf16>
    tpu.vector_store %arg2[%c1_25, %c0_26, %c0_27], %86 {strides = array<i32>} : memref<8x4x32xbf16, #tpu.memory_space<vmem>>, vector<1x2x32xbf16>,
    %87 = vector.extract_strided_slice %82 {offsets = [2, 0], sizes = [2, 32], strides = [1, 1]} : vector<4x32xbf16> to vector<2x32xbf16>
    %c6 = arith.constant 6 : index
    %c2_28 = arith.constant 2 : index
    %c0_29 = arith.constant 0 : index
    %88 = vector.load %arg2[%c6, %c2_28, %c0_29] : memref<8x4x32xbf16, #tpu.memory_space<vmem>>, vector<1x2x32xbf16>
    %89 = vector.shape_cast %88 : vector<1x2x32xbf16> to vector<2x32xbf16>
    %90 = vector.shape_cast %87 : vector<2x32xbf16> to vector<1x2x32xbf16>
    tpu.vector_store %arg2[%c6, %c2_28, %c0_29], %90 {strides = array<i32>} : memref<8x4x32xbf16, #tpu.memory_space<vmem>>, vector<1x2x32xbf16>,
    %91 = arith.truncf %81 : vector<4x32xf32> to vector<4x32xbf16>
    %cst_30 = arith.constant dense<0.000000e+00> : vector<4x128xf32>
    %92 = tpu.matmul %91, %1, %cst_30 {dimension_numbers = #tpu.dot_dimension_numbers<[1], [0], [0], [1], [0, 0, 1, 1], [], []>} : vector<4x32xbf16>, vector<32x128xbf16>, vector<4x128xf32> -> vector<4x128xf32>
    %cst_31 = arith.constant dense<0.000000e+00> : vector<4x128xf32>
    %93 = tpu.matmul %91, %3, %cst_31 {dimension_numbers = #tpu.dot_dimension_numbers<[1], [0], [0], [1], [0, 0, 1, 1], [], []>} : vector<4x32xbf16>, vector<32x128xbf16>, vector<4x128xf32> -> vector<4x128xf32>
    %94 = arith.select %6, %92, %93 : vector<4x128xi1>, vector<4x128xf32>
    %c2_32 = arith.constant 2 : index
    %c0_33 = arith.constant 0 : index
    %c0_34 = arith.constant 0 : index
    %95 = vector.load %arg0[%c2_32, %c0_33, %c0_34] : memref<8x4x128xf32, #tpu.memory_space<vmem>>, vector<1x4x128xf32>
    %96 = vector.shape_cast %95 : vector<1x4x128xf32> to vector<4x128xf32>
    %97 = arith.addf %96, %94 : vector<4x128xf32>
    %98 = vector.extract_strided_slice %97 {offsets = [0, 0], sizes = [4, 32], strides = [1, 1]} : vector<4x128xf32> to vector<4x32xf32>
    %99 = arith.negf %98 : vector<4x32xf32>
    %100 = math.exp %99 : vector<4x32xf32>
    %cst_35 = arith.constant 1.000000e+00 : f32
    %101 = vector.broadcast %cst_35 : f32 to vector<4x32xf32>
    %102 = arith.addf %101, %100 : vector<4x32xf32>
    %103 = arith.divf %101, %102 : vector<4x32xf32>
    %104 = vector.extract_strided_slice %97 {offsets = [0, 32], sizes = [4, 32], strides = [1, 1]} : vector<4x128xf32> to vector<4x32xf32>
    %105 = arith.negf %104 : vector<4x32xf32>
    %106 = math.exp %105 : vector<4x32xf32>
    %cst_36 = arith.constant 1.000000e+00 : f32
    %107 = vector.broadcast %cst_36 : f32 to vector<4x32xf32>
    %108 = arith.addf %107, %106 : vector<4x32xf32>
    %109 = arith.divf %107, %108 : vector<4x32xf32>
    %110 = vector.extract_strided_slice %97 {offsets = [0, 64], sizes = [4, 32], strides = [1, 1]} : vector<4x128xf32> to vector<4x32xf32>
    %111 = math.tanh %110 : vector<4x32xf32>
    %112 = vector.extract_strided_slice %97 {offsets = [0, 96], sizes = [4, 32], strides = [1, 1]} : vector<4x128xf32> to vector<4x32xf32>
    %113 = arith.negf %112 : vector<4x32xf32>
    %114 = math.exp %113 : vector<4x32xf32>
    %cst_37 = arith.constant 1.000000e+00 : f32
    %115 = vector.broadcast %cst_37 : f32 to vector<4x32xf32>
    %116 = arith.addf %115, %114 : vector<4x32xf32>
    %117 = arith.divf %115, %116 : vector<4x32xf32>
    %118 = arith.mulf %109, %79 : vector<4x32xf32>
    %119 = arith.mulf %103, %111 : vector<4x32xf32>
    %120 = arith.addf %118, %119 : vector<4x32xf32>
    %121 = math.tanh %120 : vector<4x32xf32>
    %122 = arith.mulf %117, %121 : vector<4x32xf32>
    %123 = arith.truncf %122 : vector<4x32xf32> to vector<4x32xbf16>
    %124 = vector.extract_strided_slice %123 {offsets = [0, 0], sizes = [2, 32], strides = [1, 1]} : vector<4x32xbf16> to vector<2x32xbf16>
    %c2_38 = arith.constant 2 : index
    %c0_39 = arith.constant 0 : index
    %c0_40 = arith.constant 0 : index
    %125 = vector.load %arg2[%c2_38, %c0_39, %c0_40] : memref<8x4x32xbf16, #tpu.memory_space<vmem>>, vector<1x2x32xbf16>
    %126 = vector.shape_cast %125 : vector<1x2x32xbf16> to vector<2x32xbf16>
    %127 = vector.shape_cast %124 : vector<2x32xbf16> to vector<1x2x32xbf16>
    tpu.vector_store %arg2[%c2_38, %c0_39, %c0_40], %127 {strides = array<i32>} : memref<8x4x32xbf16, #tpu.memory_space<vmem>>, vector<1x2x32xbf16>,
    %128 = vector.extract_strided_slice %123 {offsets = [2, 0], sizes = [2, 32], strides = [1, 1]} : vector<4x32xbf16> to vector<2x32xbf16>
    %c5 = arith.constant 5 : index
    %c2_41 = arith.constant 2 : index
    %c0_42 = arith.constant 0 : index
    %129 = vector.load %arg2[%c5, %c2_41, %c0_42] : memref<8x4x32xbf16, #tpu.memory_space<vmem>>, vector<1x2x32xbf16>
    %130 = vector.shape_cast %129 : vector<1x2x32xbf16> to vector<2x32xbf16>
    %131 = vector.shape_cast %128 : vector<2x32xbf16> to vector<1x2x32xbf16>
    tpu.vector_store %arg2[%c5, %c2_41, %c0_42], %131 {strides = array<i32>} : memref<8x4x32xbf16, #tpu.memory_space<vmem>>, vector<1x2x32xbf16>,
    %132 = arith.truncf %122 : vector<4x32xf32> to vector<4x32xbf16>
    %cst_43 = arith.constant dense<0.000000e+00> : vector<4x128xf32>
    %133 = tpu.matmul %132, %1, %cst_43 {dimension_numbers = #tpu.dot_dimension_numbers<[1], [0], [0], [1], [0, 0, 1, 1], [], []>} : vector<4x32xbf16>, vector<32x128xbf16>, vector<4x128xf32> -> vector<4x128xf32>
    %cst_44 = arith.constant dense<0.000000e+00> : vector<4x128xf32>
    %134 = tpu.matmul %132, %3, %cst_44 {dimension_numbers = #tpu.dot_dimension_numbers<[1], [0], [0], [1], [0, 0, 1, 1], [], []>} : vector<4x32xbf16>, vector<32x128xbf16>, vector<4x128xf32> -> vector<4x128xf32>
    %135 = arith.select %6, %133, %134 : vector<4x128xi1>, vector<4x128xf32>
    %c3 = arith.constant 3 : index
    %c0_45 = arith.constant 0 : index
    %c0_46 = arith.constant 0 : index
    %136 = vector.load %arg0[%c3, %c0_45, %c0_46] : memref<8x4x128xf32, #tpu.memory_space<vmem>>, vector<1x4x128xf32>
    %137 = vector.shape_cast %136 : vector<1x4x128xf32> to vector<4x128xf32>
    %138 = arith.addf %137, %135 : vector<4x128xf32>
    %139 = vector.extract_strided_slice %138 {offsets = [0, 0], sizes = [4, 32], strides = [1, 1]} : vector<4x128xf32> to vector<4x32xf32>
    %140 = arith.negf %139 : vector<4x32xf32>
    %141 = math.exp %140 : vector<4x32xf32>
    %cst_47 = arith.constant 1.000000e+00 : f32
    %142 = vector.broadcast %cst_47 : f32 to vector<4x32xf32>
    %143 = arith.addf %142, %141 : vector<4x32xf32>
    %144 = arith.divf %142, %143 : vector<4x32xf32>
    %145 = vector.extract_strided_slice %138 {offsets = [0, 32], sizes = [4, 32], strides = [1, 1]} : vector<4x128xf32> to vector<4x32xf32>
    %146 = arith.negf %145 : vector<4x32xf32>
    %147 = math.exp %146 : vector<4x32xf32>
    %cst_48 = arith.constant 1.000000e+00 : f32
    %148 = vector.broadcast %cst_48 : f32 to vector<4x32xf32>
    %149 = arith.addf %148, %147 : vector<4x32xf32>
    %150 = arith.divf %148, %149 : vector<4x32xf32>
    %151 = vector.extract_strided_slice %138 {offsets = [0, 64], sizes = [4, 32], strides = [1, 1]} : vector<4x128xf32> to vector<4x32xf32>
    %152 = math.tanh %151 : vector<4x32xf32>
    %153 = vector.extract_strided_slice %138 {offsets = [0, 96], sizes = [4, 32], strides = [1, 1]} : vector<4x128xf32> to vector<4x32xf32>
    %154 = arith.negf %153 : vector<4x32xf32>
    %155 = math.exp %154 : vector<4x32xf32>
    %cst_49 = arith.constant 1.000000e+00 : f32
    %156 = vector.broadcast %cst_49 : f32 to vector<4x32xf32>
    %157 = arith.addf %156, %155 : vector<4x32xf32>
    %158 = arith.divf %156, %157 : vector<4x32xf32>
    %159 = arith.mulf %150, %120 : vector<4x32xf32>
    %160 = arith.mulf %144, %152 : vector<4x32xf32>
    %161 = arith.addf %159, %160 : vector<4x32xf32>
    %162 = math.tanh %161 : vector<4x32xf32>
    %163 = arith.mulf %158, %162 : vector<4x32xf32>
    %164 = arith.truncf %163 : vector<4x32xf32> to vector<4x32xbf16>
    %165 = vector.extract_strided_slice %164 {offsets = [0, 0], sizes = [2, 32], strides = [1, 1]} : vector<4x32xbf16> to vector<2x32xbf16>
    %c3_50 = arith.constant 3 : index
    %c0_51 = arith.constant 0 : index
    %c0_52 = arith.constant 0 : index
    %166 = vector.load %arg2[%c3_50, %c0_51, %c0_52] : memref<8x4x32xbf16, #tpu.memory_space<vmem>>, vector<1x2x32xbf16>
    %167 = vector.shape_cast %166 : vector<1x2x32xbf16> to vector<2x32xbf16>
    %168 = vector.shape_cast %165 : vector<2x32xbf16> to vector<1x2x32xbf16>
    tpu.vector_store %arg2[%c3_50, %c0_51, %c0_52], %168 {strides = array<i32>} : memref<8x4x32xbf16, #tpu.memory_space<vmem>>, vector<1x2x32xbf16>,
    %169 = vector.extract_strided_slice %164 {offsets = [2, 0], sizes = [2, 32], strides = [1, 1]} : vector<4x32xbf16> to vector<2x32xbf16>
    %c4 = arith.constant 4 : index
    %c2_53 = arith.constant 2 : index
    %c0_54 = arith.constant 0 : index
    %170 = vector.load %arg2[%c4, %c2_53, %c0_54] : memref<8x4x32xbf16, #tpu.memory_space<vmem>>, vector<1x2x32xbf16>
    %171 = vector.shape_cast %170 : vector<1x2x32xbf16> to vector<2x32xbf16>
    %172 = vector.shape_cast %169 : vector<2x32xbf16> to vector<1x2x32xbf16>
    tpu.vector_store %arg2[%c4, %c2_53, %c0_54], %172 {strides = array<i32>} : memref<8x4x32xbf16, #tpu.memory_space<vmem>>, vector<1x2x32xbf16>,
    %173 = arith.truncf %163 : vector<4x32xf32> to vector<4x32xbf16>
    %cst_55 = arith.constant dense<0.000000e+00> : vector<4x128xf32>
    %174 = tpu.matmul %173, %1, %cst_55 {dimension_numbers = #tpu.dot_dimension_numbers<[1], [0], [0], [1], [0, 0, 1, 1], [], []>} : vector<4x32xbf16>, vector<32x128xbf16>, vector<4x128xf32> -> vector<4x128xf32>
    %cst_56 = arith.constant dense<0.000000e+00> : vector<4x128xf32>
    %175 = tpu.matmul %173, %3, %cst_56 {dimension_numbers = #tpu.dot_dimension_numbers<[1], [0], [0], [1], [0, 0, 1, 1], [], []>} : vector<4x32xbf16>, vector<32x128xbf16>, vector<4x128xf32> -> vector<4x128xf32>
    %176 = arith.select %6, %174, %175 : vector<4x128xi1>, vector<4x128xf32>
    %c4_57 = arith.constant 4 : index
    %c0_58 = arith.constant 0 : index
    %c0_59 = arith.constant 0 : index
    %177 = vector.load %arg0[%c4_57, %c0_58, %c0_59] : memref<8x4x128xf32, #tpu.memory_space<vmem>>, vector<1x4x128xf32>
    %178 = vector.shape_cast %177 : vector<1x4x128xf32> to vector<4x128xf32>
    %179 = arith.addf %178, %176 : vector<4x128xf32>
    %180 = vector.extract_strided_slice %179 {offsets = [0, 0], sizes = [4, 32], strides = [1, 1]} : vector<4x128xf32> to vector<4x32xf32>
    %181 = arith.negf %180 : vector<4x32xf32>
    %182 = math.exp %181 : vector<4x32xf32>
    %cst_60 = arith.constant 1.000000e+00 : f32
    %183 = vector.broadcast %cst_60 : f32 to vector<4x32xf32>
    %184 = arith.addf %183, %182 : vector<4x32xf32>
    %185 = arith.divf %183, %184 : vector<4x32xf32>
    %186 = vector.extract_strided_slice %179 {offsets = [0, 32], sizes = [4, 32], strides = [1, 1]} : vector<4x128xf32> to vector<4x32xf32>
    %187 = arith.negf %186 : vector<4x32xf32>
    %188 = math.exp %187 : vector<4x32xf32>
    %cst_61 = arith.constant 1.000000e+00 : f32
    %189 = vector.broadcast %cst_61 : f32 to vector<4x32xf32>
    %190 = arith.addf %189, %188 : vector<4x32xf32>
    %191 = arith.divf %189, %190 : vector<4x32xf32>
    %192 = vector.extract_strided_slice %179 {offsets = [0, 64], sizes = [4, 32], strides = [1, 1]} : vector<4x128xf32> to vector<4x32xf32>
    %193 = math.tanh %192 : vector<4x32xf32>
    %194 = vector.extract_strided_slice %179 {offsets = [0, 96], sizes = [4, 32], strides = [1, 1]} : vector<4x128xf32> to vector<4x32xf32>
    %195 = arith.negf %194 : vector<4x32xf32>
    %196 = math.exp %195 : vector<4x32xf32>
    %cst_62 = arith.constant 1.000000e+00 : f32
    %197 = vector.broadcast %cst_62 : f32 to vector<4x32xf32>
    %198 = arith.addf %197, %196 : vector<4x32xf32>
    %199 = arith.divf %197, %198 : vector<4x32xf32>
    %200 = arith.mulf %191, %161 : vector<4x32xf32>
    %201 = arith.mulf %185, %193 : vector<4x32xf32>
    %202 = arith.addf %200, %201 : vector<4x32xf32>
    %203 = math.tanh %202 : vector<4x32xf32>
    %204 = arith.mulf %199, %203 : vector<4x32xf32>
    %205 = arith.truncf %204 : vector<4x32xf32> to vector<4x32xbf16>
    %206 = vector.extract_strided_slice %205 {offsets = [0, 0], sizes = [2, 32], strides = [1, 1]} : vector<4x32xbf16> to vector<2x32xbf16>
    %c4_63 = arith.constant 4 : index
    %c0_64 = arith.constant 0 : index
    %c0_65 = arith.constant 0 : index
    %207 = vector.load %arg2[%c4_63, %c0_64, %c0_65] : memref<8x4x32xbf16, #tpu.memory_space<vmem>>, vector<1x2x32xbf16>
    %208 = vector.shape_cast %207 : vector<1x2x32xbf16> to vector<2x32xbf16>
    %209 = vector.shape_cast %206 : vector<2x32xbf16> to vector<1x2x32xbf16>
    tpu.vector_store %arg2[%c4_63, %c0_64, %c0_65], %209 {strides = array<i32>} : memref<8x4x32xbf16, #tpu.memory_space<vmem>>, vector<1x2x32xbf16>,
    %210 = vector.extract_strided_slice %205 {offsets = [2, 0], sizes = [2, 32], strides = [1, 1]} : vector<4x32xbf16> to vector<2x32xbf16>
    %c3_66 = arith.constant 3 : index
    %c2_67 = arith.constant 2 : index
    %c0_68 = arith.constant 0 : index
    %211 = vector.load %arg2[%c3_66, %c2_67, %c0_68] : memref<8x4x32xbf16, #tpu.memory_space<vmem>>, vector<1x2x32xbf16>
    %212 = vector.shape_cast %211 : vector<1x2x32xbf16> to vector<2x32xbf16>
    %213 = vector.shape_cast %210 : vector<2x32xbf16> to vector<1x2x32xbf16>
    tpu.vector_store %arg2[%c3_66, %c2_67, %c0_68], %213 {strides = array<i32>} : memref<8x4x32xbf16, #tpu.memory_space<vmem>>, vector<1x2x32xbf16>,
    %214 = arith.truncf %204 : vector<4x32xf32> to vector<4x32xbf16>
    %cst_69 = arith.constant dense<0.000000e+00> : vector<4x128xf32>
    %215 = tpu.matmul %214, %1, %cst_69 {dimension_numbers = #tpu.dot_dimension_numbers<[1], [0], [0], [1], [0, 0, 1, 1], [], []>} : vector<4x32xbf16>, vector<32x128xbf16>, vector<4x128xf32> -> vector<4x128xf32>
    %cst_70 = arith.constant dense<0.000000e+00> : vector<4x128xf32>
    %216 = tpu.matmul %214, %3, %cst_70 {dimension_numbers = #tpu.dot_dimension_numbers<[1], [0], [0], [1], [0, 0, 1, 1], [], []>} : vector<4x32xbf16>, vector<32x128xbf16>, vector<4x128xf32> -> vector<4x128xf32>
    %217 = arith.select %6, %215, %216 : vector<4x128xi1>, vector<4x128xf32>
    %c5_71 = arith.constant 5 : index
    %c0_72 = arith.constant 0 : index
    %c0_73 = arith.constant 0 : index
    %218 = vector.load %arg0[%c5_71, %c0_72, %c0_73] : memref<8x4x128xf32, #tpu.memory_space<vmem>>, vector<1x4x128xf32>
    %219 = vector.shape_cast %218 : vector<1x4x128xf32> to vector<4x128xf32>
    %220 = arith.addf %219, %217 : vector<4x128xf32>
    %221 = vector.extract_strided_slice %220 {offsets = [0, 0], sizes = [4, 32], strides = [1, 1]} : vector<4x128xf32> to vector<4x32xf32>
    %222 = arith.negf %221 : vector<4x32xf32>
    %223 = math.exp %222 : vector<4x32xf32>
    %cst_74 = arith.constant 1.000000e+00 : f32
    %224 = vector.broadcast %cst_74 : f32 to vector<4x32xf32>
    %225 = arith.addf %224, %223 : vector<4x32xf32>
    %226 = arith.divf %224, %225 : vector<4x32xf32>
    %227 = vector.extract_strided_slice %220 {offsets = [0, 32], sizes = [4, 32], strides = [1, 1]} : vector<4x128xf32> to vector<4x32xf32>
    %228 = arith.negf %227 : vector<4x32xf32>
    %229 = math.exp %228 : vector<4x32xf32>
    %cst_75 = arith.constant 1.000000e+00 : f32
    %230 = vector.broadcast %cst_75 : f32 to vector<4x32xf32>
    %231 = arith.addf %230, %229 : vector<4x32xf32>
    %232 = arith.divf %230, %231 : vector<4x32xf32>
    %233 = vector.extract_strided_slice %220 {offsets = [0, 64], sizes = [4, 32], strides = [1, 1]} : vector<4x128xf32> to vector<4x32xf32>
    %234 = math.tanh %233 : vector<4x32xf32>
    %235 = vector.extract_strided_slice %220 {offsets = [0, 96], sizes = [4, 32], strides = [1, 1]} : vector<4x128xf32> to vector<4x32xf32>
    %236 = arith.negf %235 : vector<4x32xf32>
    %237 = math.exp %236 : vector<4x32xf32>
    %cst_76 = arith.constant 1.000000e+00 : f32
    %238 = vector.broadcast %cst_76 : f32 to vector<4x32xf32>
    %239 = arith.addf %238, %237 : vector<4x32xf32>
    %240 = arith.divf %238, %239 : vector<4x32xf32>
    %241 = arith.mulf %232, %202 : vector<4x32xf32>
    %242 = arith.mulf %226, %234 : vector<4x32xf32>
    %243 = arith.addf %241, %242 : vector<4x32xf32>
    %244 = math.tanh %243 : vector<4x32xf32>
    %245 = arith.mulf %240, %244 : vector<4x32xf32>
    %246 = arith.truncf %245 : vector<4x32xf32> to vector<4x32xbf16>
    %247 = vector.extract_strided_slice %246 {offsets = [0, 0], sizes = [2, 32], strides = [1, 1]} : vector<4x32xbf16> to vector<2x32xbf16>
    %c5_77 = arith.constant 5 : index
    %c0_78 = arith.constant 0 : index
    %c0_79 = arith.constant 0 : index
    %248 = vector.load %arg2[%c5_77, %c0_78, %c0_79] : memref<8x4x32xbf16, #tpu.memory_space<vmem>>, vector<1x2x32xbf16>
    %249 = vector.shape_cast %248 : vector<1x2x32xbf16> to vector<2x32xbf16>
    %250 = vector.shape_cast %247 : vector<2x32xbf16> to vector<1x2x32xbf16>
    tpu.vector_store %arg2[%c5_77, %c0_78, %c0_79], %250 {strides = array<i32>} : memref<8x4x32xbf16, #tpu.memory_space<vmem>>, vector<1x2x32xbf16>,
    %251 = vector.extract_strided_slice %246 {offsets = [2, 0], sizes = [2, 32], strides = [1, 1]} : vector<4x32xbf16> to vector<2x32xbf16>
    %c2_80 = arith.constant 2 : index
    %c2_81 = arith.constant 2 : index
    %c0_82 = arith.constant 0 : index
    %252 = vector.load %arg2[%c2_80, %c2_81, %c0_82] : memref<8x4x32xbf16, #tpu.memory_space<vmem>>, vector<1x2x32xbf16>
    %253 = vector.shape_cast %252 : vector<1x2x32xbf16> to vector<2x32xbf16>
    %254 = vector.shape_cast %251 : vector<2x32xbf16> to vector<1x2x32xbf16>
    tpu.vector_store %arg2[%c2_80, %c2_81, %c0_82], %254 {strides = array<i32>} : memref<8x4x32xbf16, #tpu.memory_space<vmem>>, vector<1x2x32xbf16>,
    %255 = arith.truncf %245 : vector<4x32xf32> to vector<4x32xbf16>
    %cst_83 = arith.constant dense<0.000000e+00> : vector<4x128xf32>
    %256 = tpu.matmul %255, %1, %cst_83 {dimension_numbers = #tpu.dot_dimension_numbers<[1], [0], [0], [1], [0, 0, 1, 1], [], []>} : vector<4x32xbf16>, vector<32x128xbf16>, vector<4x128xf32> -> vector<4x128xf32>
    %cst_84 = arith.constant dense<0.000000e+00> : vector<4x128xf32>
    %257 = tpu.matmul %255, %3, %cst_84 {dimension_numbers = #tpu.dot_dimension_numbers<[1], [0], [0], [1], [0, 0, 1, 1], [], []>} : vector<4x32xbf16>, vector<32x128xbf16>, vector<4x128xf32> -> vector<4x128xf32>
    %258 = arith.select %6, %256, %257 : vector<4x128xi1>, vector<4x128xf32>
    %c6_85 = arith.constant 6 : index
    %c0_86 = arith.constant 0 : index
    %c0_87 = arith.constant 0 : index
    %259 = vector.load %arg0[%c6_85, %c0_86, %c0_87] : memref<8x4x128xf32, #tpu.memory_space<vmem>>, vector<1x4x128xf32>
    %260 = vector.shape_cast %259 : vector<1x4x128xf32> to vector<4x128xf32>
    %261 = arith.addf %260, %258 : vector<4x128xf32>
    %262 = vector.extract_strided_slice %261 {offsets = [0, 0], sizes = [4, 32], strides = [1, 1]} : vector<4x128xf32> to vector<4x32xf32>
    %263 = arith.negf %262 : vector<4x32xf32>
    %264 = math.exp %263 : vector<4x32xf32>
    %cst_88 = arith.constant 1.000000e+00 : f32
    %265 = vector.broadcast %cst_88 : f32 to vector<4x32xf32>
    %266 = arith.addf %265, %264 : vector<4x32xf32>
    %267 = arith.divf %265, %266 : vector<4x32xf32>
    %268 = vector.extract_strided_slice %261 {offsets = [0, 32], sizes = [4, 32], strides = [1, 1]} : vector<4x128xf32> to vector<4x32xf32>
    %269 = arith.negf %268 : vector<4x32xf32>
    %270 = math.exp %269 : vector<4x32xf32>
    %cst_89 = arith.constant 1.000000e+00 : f32
    %271 = vector.broadcast %cst_89 : f32 to vector<4x32xf32>
    %272 = arith.addf %271, %270 : vector<4x32xf32>
    %273 = arith.divf %271, %272 : vector<4x32xf32>
    %274 = vector.extract_strided_slice %261 {offsets = [0, 64], sizes = [4, 32], strides = [1, 1]} : vector<4x128xf32> to vector<4x32xf32>
    %275 = math.tanh %274 : vector<4x32xf32>
    %276 = vector.extract_strided_slice %261 {offsets = [0, 96], sizes = [4, 32], strides = [1, 1]} : vector<4x128xf32> to vector<4x32xf32>
    %277 = arith.negf %276 : vector<4x32xf32>
    %278 = math.exp %277 : vector<4x32xf32>
    %cst_90 = arith.constant 1.000000e+00 : f32
    %279 = vector.broadcast %cst_90 : f32 to vector<4x32xf32>
    %280 = arith.addf %279, %278 : vector<4x32xf32>
    %281 = arith.divf %279, %280 : vector<4x32xf32>
    %282 = arith.mulf %273, %243 : vector<4x32xf32>
    %283 = arith.mulf %267, %275 : vector<4x32xf32>
    %284 = arith.addf %282, %283 : vector<4x32xf32>
    %285 = math.tanh %284 : vector<4x32xf32>
    %286 = arith.mulf %281, %285 : vector<4x32xf32>
    %287 = arith.truncf %286 : vector<4x32xf32> to vector<4x32xbf16>
    %288 = vector.extract_strided_slice %287 {offsets = [0, 0], sizes = [2, 32], strides = [1, 1]} : vector<4x32xbf16> to vector<2x32xbf16>
    %c6_91 = arith.constant 6 : index
    %c0_92 = arith.constant 0 : index
    %c0_93 = arith.constant 0 : index
    %289 = vector.load %arg2[%c6_91, %c0_92, %c0_93] : memref<8x4x32xbf16, #tpu.memory_space<vmem>>, vector<1x2x32xbf16>
    %290 = vector.shape_cast %289 : vector<1x2x32xbf16> to vector<2x32xbf16>
    %291 = vector.shape_cast %288 : vector<2x32xbf16> to vector<1x2x32xbf16>
    tpu.vector_store %arg2[%c6_91, %c0_92, %c0_93], %291 {strides = array<i32>} : memref<8x4x32xbf16, #tpu.memory_space<vmem>>, vector<1x2x32xbf16>,
    %292 = vector.extract_strided_slice %287 {offsets = [2, 0], sizes = [2, 32], strides = [1, 1]} : vector<4x32xbf16> to vector<2x32xbf16>
    %c1_94 = arith.constant 1 : index
    %c2_95 = arith.constant 2 : index
    %c0_96 = arith.constant 0 : index
    %293 = vector.load %arg2[%c1_94, %c2_95, %c0_96] : memref<8x4x32xbf16, #tpu.memory_space<vmem>>, vector<1x2x32xbf16>
    %294 = vector.shape_cast %293 : vector<1x2x32xbf16> to vector<2x32xbf16>
    %295 = vector.shape_cast %292 : vector<2x32xbf16> to vector<1x2x32xbf16>
    tpu.vector_store %arg2[%c1_94, %c2_95, %c0_96], %295 {strides = array<i32>} : memref<8x4x32xbf16, #tpu.memory_space<vmem>>, vector<1x2x32xbf16>,
    %296 = arith.truncf %286 : vector<4x32xf32> to vector<4x32xbf16>
    %cst_97 = arith.constant dense<0.000000e+00> : vector<4x128xf32>
    %297 = tpu.matmul %296, %1, %cst_97 {dimension_numbers = #tpu.dot_dimension_numbers<[1], [0], [0], [1], [0, 0, 1, 1], [], []>} : vector<4x32xbf16>, vector<32x128xbf16>, vector<4x128xf32> -> vector<4x128xf32>
    %cst_98 = arith.constant dense<0.000000e+00> : vector<4x128xf32>
    %298 = tpu.matmul %296, %3, %cst_98 {dimension_numbers = #tpu.dot_dimension_numbers<[1], [0], [0], [1], [0, 0, 1, 1], [], []>} : vector<4x32xbf16>, vector<32x128xbf16>, vector<4x128xf32> -> vector<4x128xf32>
    %299 = arith.select %6, %297, %298 : vector<4x128xi1>, vector<4x128xf32>
    %c7_99 = arith.constant 7 : index
    %c0_100 = arith.constant 0 : index
    %c0_101 = arith.constant 0 : index
    %300 = vector.load %arg0[%c7_99, %c0_100, %c0_101] : memref<8x4x128xf32, #tpu.memory_space<vmem>>, vector<1x4x128xf32>
    %301 = vector.shape_cast %300 : vector<1x4x128xf32> to vector<4x128xf32>
    %302 = arith.addf %301, %299 : vector<4x128xf32>
    %303 = vector.extract_strided_slice %302 {offsets = [0, 0], sizes = [4, 32], strides = [1, 1]} : vector<4x128xf32> to vector<4x32xf32>
    %304 = arith.negf %303 : vector<4x32xf32>
    %305 = math.exp %304 : vector<4x32xf32>
    %cst_102 = arith.constant 1.000000e+00 : f32
    %306 = vector.broadcast %cst_102 : f32 to vector<4x32xf32>
    %307 = arith.addf %306, %305 : vector<4x32xf32>
    %308 = arith.divf %306, %307 : vector<4x32xf32>
    %309 = vector.extract_strided_slice %302 {offsets = [0, 32], sizes = [4, 32], strides = [1, 1]} : vector<4x128xf32> to vector<4x32xf32>
    %310 = arith.negf %309 : vector<4x32xf32>
    %311 = math.exp %310 : vector<4x32xf32>
    %cst_103 = arith.constant 1.000000e+00 : f32
    %312 = vector.broadcast %cst_103 : f32 to vector<4x32xf32>
    %313 = arith.addf %312, %311 : vector<4x32xf32>
    %314 = arith.divf %312, %313 : vector<4x32xf32>
    %315 = vector.extract_strided_slice %302 {offsets = [0, 64], sizes = [4, 32], strides = [1, 1]} : vector<4x128xf32> to vector<4x32xf32>
    %316 = math.tanh %315 : vector<4x32xf32>
    %317 = vector.extract_strided_slice %302 {offsets = [0, 96], sizes = [4, 32], strides = [1, 1]} : vector<4x128xf32> to vector<4x32xf32>
    %318 = arith.negf %317 : vector<4x32xf32>
    %319 = math.exp %318 : vector<4x32xf32>
    %cst_104 = arith.constant 1.000000e+00 : f32
    %320 = vector.broadcast %cst_104 : f32 to vector<4x32xf32>
    %321 = arith.addf %320, %319 : vector<4x32xf32>
    %322 = arith.divf %320, %321 : vector<4x32xf32>
    %323 = arith.mulf %314, %284 : vector<4x32xf32>
    %324 = arith.mulf %308, %316 : vector<4x32xf32>
    %325 = arith.addf %323, %324 : vector<4x32xf32>
    %326 = math.tanh %325 : vector<4x32xf32>
    %327 = arith.mulf %322, %326 : vector<4x32xf32>
    %328 = arith.truncf %327 : vector<4x32xf32> to vector<4x32xbf16>
    %329 = vector.extract_strided_slice %328 {offsets = [0, 0], sizes = [2, 32], strides = [1, 1]} : vector<4x32xbf16> to vector<2x32xbf16>
    %c7_105 = arith.constant 7 : index
    %c0_106 = arith.constant 0 : index
    %c0_107 = arith.constant 0 : index
    %330 = vector.load %arg2[%c7_105, %c0_106, %c0_107] : memref<8x4x32xbf16, #tpu.memory_space<vmem>>, vector<1x2x32xbf16>
    %331 = vector.shape_cast %330 : vector<1x2x32xbf16> to vector<2x32xbf16>
    %332 = vector.shape_cast %329 : vector<2x32xbf16> to vector<1x2x32xbf16>
    tpu.vector_store %arg2[%c7_105, %c0_106, %c0_107], %332 {strides = array<i32>} : memref<8x4x32xbf16, #tpu.memory_space<vmem>>, vector<1x2x32xbf16>,
    %333 = vector.extract_strided_slice %328 {offsets = [2, 0], sizes = [2, 32], strides = [1, 1]} : vector<4x32xbf16> to vector<2x32xbf16>
    %c0_108 = arith.constant 0 : index
    %c2_109 = arith.constant 2 : index
    %c0_110 = arith.constant 0 : index
    %334 = vector.load %arg2[%c0_108, %c2_109, %c0_110] : memref<8x4x32xbf16, #tpu.memory_space<vmem>>, vector<1x2x32xbf16>
    %335 = vector.shape_cast %334 : vector<1x2x32xbf16> to vector<2x32xbf16>
    %336 = vector.shape_cast %333 : vector<2x32xbf16> to vector<1x2x32xbf16>
    tpu.vector_store %arg2[%c0_108, %c2_109, %c0_110], %336 {strides = array<i32>} : memref<8x4x32xbf16, #tpu.memory_space<vmem>>, vector<1x2x32xbf16>,
    %c0_111 = arith.constant 0 : index
    %c0_112 = arith.constant 0 : index
    %337 = vector.load %arg3[%c0_111, %c0_112] : memref<4x32xf32, #tpu.memory_space<vmem>>, vector<4x32xf32>
    tpu.vector_store %arg3[%c0_111, %c0_112], %327 {strides = array<i32>} : memref<4x32xf32, #tpu.memory_space<vmem>>, vector<4x32xf32>,
    %c0_113 = arith.constant 0 : index
    %c0_114 = arith.constant 0 : index
    %338 = vector.load %arg4[%c0_113, %c0_114] : memref<4x32xf32, #tpu.memory_space<vmem>>, vector<4x32xf32>
    tpu.vector_store %arg4[%c0_113, %c0_114], %325 {strides = array<i32>} : memref<4x32xf32, #tpu.memory_space<vmem>>, vector<4x32xf32>,
    return
  }
}

</mosaic_0001>

<llo_original>
// kernel: encoder_rnn_forward.3
$region0: #{encoder_rnn_forward.3}
  #allocation0 [shape = 'u32[]', space=smem, size = 0x4, offset = 0x4, fixed_abs, tag = 'smem constant byte address 0x4 - core index']
  #allocation1 [shape = 'u32[144,128]{1,0:T(1,128)}', space=vmem, size = 0x12000, scoped, tag = 'internal scratch']
  %s0 = inlined_call_operand.vmem [shape: f32[8,4,128], index: 0, kind: input, shape index: {}]
  %s1 = inlined_call_operand.vmem [shape: bf16[2,32,128], index: 1, kind: input, shape index: {}]
  %s2 = inlined_call_operand.vmem [shape: f32[8,4,32], index: 2, kind: output, shape index: {0}]
  %s3 = inlined_call_operand.vmem [shape: f32[4,32], index: 3, kind: output, shape index: {1}]
  %s4 = inlined_call_operand.vmem [shape: f32[4,32], index: 4, kind: output, shape index: {2}]
  %5 = xla_tuple %s2, %s3, %s4
  %s6 = sld [smem:[#allocation0]]
  $region34: #{encoder_rnn_forward.3} parent=0
    _
  %s8 = ssub.s32 1, %s6
  %s9 = scalar_select 0, %s8, %s6
  // Predicated region
  $region2: #{encoder_rnn_forward.3} parent=0 // pred_check
    _
  $region3: #{encoder_rnn_forward.3} parent=0 // pred_check_branch
    %11 = sbr.rel (0) target = $region5
  $region4: #{encoder_rnn_forward.3} parent=0 // pred_region
    _
  $region5: #{encoder_rnn_forward.3} parent=0 // pred_fallthru
    _
  // Predicated region
  $region6: #{encoder_rnn_forward.3} parent=0 // pred_check
    _
  $region7: #{encoder_rnn_forward.3} parent=0 // pred_check_branch
    %13 = sbr.rel (0) target = $region9
  $region8: #{encoder_rnn_forward.3} parent=0 // pred_region
    _
  $region9: #{encoder_rnn_forward.3} parent=0 // pred_fallthru
    _
  %v15 = vld [vmem:[%s1] sm:$0xf]
  %v16 = vld [vmem:[%s1 + $0x4] sm:$0xf]
  %v17 = vld [vmem:[%s1 + $0x8] sm:$0xf]
  %v18 = vld [vmem:[%s1 + $0xc] sm:$0xf]
  %s19 = scalar_lea.vmem %s1, 16
  %v20 = vld [vmem:[%s19] sm:$0xf]
  %v21 = vld [vmem:[%s19 + $0x4] sm:$0xf]
  %v22 = vld [vmem:[%s19 + $0x8] sm:$0xf]
  %v23 = vld [vmem:[%s19 + $0xc] sm:$0xf]
  %v24 = vlaneseq
  %v25 = vshrl.u32 %v24, 7
  %vm26 = vcmp.lt.s32.totalorder %v25, 2
  %v31 = vunpack.c.l.b16 %v15
  %v32 = vunpack.c.l.b16 %v16
  %v33 = vunpack.c.l.b16 %v17
  %v34 = vunpack.c.l.b16 %v18
  %v35 = vpack.c.b16 %v32, %v31
  %v36 = vpack.c.b16 %v34, %v33
  %vm39 = vcmask 261120
  %v41 = vsel %vm39, 0, 0
  %43 = vmatprep.subr.bf16.mxu0 0
  %44 = vmatpush1.bf16.msra.mxu0 0
  %45 = vmatprep.subr.bf16.mxu0 0
  %46 = vmatpush1.bf16.msra.mxu0 0
  %47 = vmatprep.subr.bf16.mxu0 0
  %48 = vmatpush1.bf16.msra.mxu0 0
  %49 = vmatprep.subr.bf16.mxu0 0
  %50 = vmatpush1.bf16.msra.mxu0 0
  %51 = vmatprep.subr.bf16.mxu0 0
  %52 = vmatpush1.bf16.msra.mxu0 0
  %53 = vmatprep.subr.bf16.mxu0 0
  %54 = vmatpush1.bf16.msra.mxu0 0
  %55 = vmatprep.subr.bf16.mxu0 0
  %56 = vmatpush1.bf16.msra.mxu0 %v36
  %57 = vmatprep.subr.bf16.mxu0 0
  %58 = vmatpush1.bf16.msra.mxu0 %v35
  %59 = vmatprep.subr.bf16.mxu0 0
  %60 = vmatpush2.bf16.msra.mxu0 0
  %61 = vmatprep.subr.bf16.mxu0 0
  %62 = vmatpush2.bf16.msra.mxu0 0
  %63 = vmatprep.subr.bf16.mxu0 0
  %64 = vmatpush2.bf16.msra.mxu0 0
  %65 = vmatprep.subr.bf16.mxu0 0
  %66 = vmatpush2.bf16.msra.mxu0 0
  %67 = vmatprep.subr.bf16.mxu0 0
  %68 = vmatpush2.bf16.msra.mxu0 0
  %69 = vmatprep.subr.bf16.mxu0 0
  %70 = vmatpush2.bf16.msra.mxu0 0
  %71 = vmatprep.subr.bf16.mxu0 0
  %72 = vmatpush2.bf16.msra.mxu0 0
  %73 = vmatprep.subr.bf16.mxu0 0
  %74 = vmatpush2.bf16.msra.mxu0 0
  %75 = vmatprep.mubr.bf16.mxu0 0
  %76 = vmatmul.mubr.bf16.gmra.mxu0 %v41
  %v77 = vpop.f32.mrf.mxu0
  %v78 = vadd.f32 0.0, %v77
  %v79 = vpop.f32.mrf.mxu0
  %v80 = vpop.f32.mrf.mxu0
  %v81 = vpop.f32.mrf.mxu0
  %82 = vdwg.mxu0
  %v87 = vunpack.c.l.b16 %v20
  %v88 = vunpack.c.l.b16 %v21
  %v89 = vunpack.c.l.b16 %v22
  %v90 = vunpack.c.l.b16 %v23
  %v91 = vpack.c.b16 %v88, %v87
  %v92 = vpack.c.b16 %v90, %v89
  %95 = vmatprep.subr.bf16.mxu0 0
  %96 = vmatpush1.bf16.msra.mxu0 0
  %97 = vmatprep.subr.bf16.mxu0 0
  %98 = vmatpush1.bf16.msra.mxu0 0
  %99 = vmatprep.subr.bf16.mxu0 0
  %100 = vmatpush1.bf16.msra.mxu0 0
  %101 = vmatprep.subr.bf16.mxu0 0
  %102 = vmatpush1.bf16.msra.mxu0 0
  %103 = vmatprep.subr.bf16.mxu0 0
  %104 = vmatpush1.bf16.msra.mxu0 0
  %105 = vmatprep.subr.bf16.mxu0 0
  %106 = vmatpush1.bf16.msra.mxu0 0
  %107 = vmatprep.subr.bf16.mxu0 0
  %108 = vmatpush1.bf16.msra.mxu0 %v92
  %109 = vmatprep.subr.bf16.mxu0 0
  %110 = vmatpush1.bf16.msra.mxu0 %v91
  %111 = vmatprep.subr.bf16.mxu0 0
  %112 = vmatpush2.bf16.msra.mxu0 0
  %113 = vmatprep.subr.bf16.mxu0 0
  %114 = vmatpush2.bf16.msra.mxu0 0
  %115 = vmatprep.subr.bf16.mxu0 0
  %116 = vmatpush2.bf16.msra.mxu0 0
  %117 = vmatprep.subr.bf16.mxu0 0
  %118 = vmatpush2.bf16.msra.mxu0 0
  %119 = vmatprep.subr.bf16.mxu0 0
  %120 = vmatpush2.bf16.msra.mxu0 0
  %121 = vmatprep.subr.bf16.mxu0 0
  %122 = vmatpush2.bf16.msra.mxu0 0
  %123 = vmatprep.subr.bf16.mxu0 0
  %124 = vmatpush2.bf16.msra.mxu0 0
  %125 = vmatprep.subr.bf16.mxu0 0
  %126 = vmatpush2.bf16.msra.mxu0 0
  %127 = vmatprep.mubr.bf16.mxu0 0
  %128 = vmatmul.mubr.bf16.gmra.mxu0 %v41
  %v129 = vpop.f32.mrf.mxu0
  %v130 = vadd.f32 0.0, %v129
  %v131 = vpop.f32.mrf.mxu0
  %v132 = vpop.f32.mrf.mxu0
  %v133 = vpop.f32.mrf.mxu0
  %134 = vdwg.mxu0
  %v135 = vsel %vm26, %v78, %v130
  %v136 = vld [vmem:[%s0] sm:$0xf]
  %v137 = vadd.f32 %v136, %v135
  %v138 = vxor.u32 %v137, 2147483648
  %v139 = vmul.f32 %v138, 1.442695
  %v140 = vpow.pop %v139
  %v141 = vadd.f32 %v140, 1.0
  %v142 = vrcp.pop %v141
  %v143 = vmul.f32 1.0, %v142
  %v144 = vtanh.pop %v137
  %v145 = vmul.f32 %v143, 0.0
  %147 = vrot.lane.b32.xlu0 %v144, 64
  %v148 = vpop.permute.xlu0 %147
  %v150 = vmul.f32 %v143, %v148
  %152 = vrot.lane.b32.xlu0 %v150, 32
  %v153 = vpop.permute.xlu0 %152
  %v155 = vadd.f32 %v145, %v153
  %v156 = vtanh.pop %v155
  %158 = vrot.lane.b32.xlu0 %v156, 64
  %v159 = vpop.permute.xlu0 %158
  %v161 = vmul.f32 %v143, %v159
  %163 = vrot.lane.b32.xlu0 %v161, 32
  %v164 = vpop.permute.xlu0 %163
  %s166 = scalar_lea.vmem %s2, 28
  %vm167 = vcmask 254976
  %168 = vst.msk [vmem:[%s166] sm:$0x3] %vm167, %v164
  %vm169 = vcmask 257026
  %170 = vst.msk [vmem:[%s2] sm:$0xc] %vm169, %v164
  %v171 = vpack.c.bf16 %v161, %v161
  %173 = vrot.lane.b32.xlu0 %v171, 32
  %v174 = vpop.permute.xlu0 %173
  %v176 = vsel %vm39, %v174, 0
  %178 = vmatprep.subr.bf16.mxu0 0
  %179 = vmatpush1.bf16.msra.mxu0 0
  %180 = vmatprep.subr.bf16.mxu0 0
  %181 = vmatpush1.bf16.msra.mxu0 0
  %182 = vmatprep.subr.bf16.mxu0 0
  %183 = vmatpush1.bf16.msra.mxu0 0
  %184 = vmatprep.subr.bf16.mxu0 0
  %185 = vmatpush1.bf16.msra.mxu0 0
  %186 = vmatprep.subr.bf16.mxu0 0
  %187 = vmatpush1.bf16.msra.mxu0 0
  %188 = vmatprep.subr.bf16.mxu0 0
  %189 = vmatpush1.bf16.msra.mxu0 0
  %190 = vmatprep.subr.bf16.mxu0 0
  %191 = vmatpush1.bf16.msra.mxu0 %v36
  %192 = vmatprep.subr.bf16.mxu0 0
  %193 = vmatpush1.bf16.msra.mxu0 %v35
  %194 = vmatprep.subr.bf16.mxu0 0
  %195 = vmatpush2.bf16.msra.mxu0 0
  %196 = vmatprep.subr.bf16.mxu0 0
  %197 = vmatpush2.bf16.msra.mxu0 0
  %198 = vmatprep.subr.bf16.mxu0 0
  %199 = vmatpush2.bf16.msra.mxu0 0
  %200 = vmatprep.subr.bf16.mxu0 0
  %201 = vmatpush2.bf16.msra.mxu0 0
  %202 = vmatprep.subr.bf16.mxu0 0
  %203 = vmatpush2.bf16.msra.mxu0 0
  %204 = vmatprep.subr.bf16.mxu0 0
  %205 = vmatpush2.bf16.msra.mxu0 0
  %206 = vmatprep.subr.bf16.mxu0 0
  %207 = vmatpush2.bf16.msra.mxu0 0
  %208 = vmatprep.subr.bf16.mxu0 0
  %209 = vmatpush2.bf16.msra.mxu0 0
  %210 = vmatprep.mubr.bf16.mxu0 0
  %211 = vmatmul.mubr.bf16.gmra.mxu0 %v176
  %v212 = vpop.f32.mrf.mxu0
  %v213 = vadd.f32 0.0, %v212
  %v214 = vpop.f32.mrf.mxu0
  %v215 = vpop.f32.mrf.mxu0
  %v216 = vpop.f32.mrf.mxu0
  %217 = vdwg.mxu0
  %218 = vmatprep.subr.bf16.mxu0 0
  %219 = vmatpush1.bf16.msra.mxu0 0
  %220 = vmatprep.subr.bf16.mxu0 0
  %221 = vmatpush1.bf16.msra.mxu0 0
  %222 = vmatprep.subr.bf16.mxu0 0
  %223 = vmatpush1.bf16.msra.mxu0 0
  %224 = vmatprep.subr.bf16.mxu0 0
  %225 = vmatpush1.bf16.msra.mxu0 0
  %226 = vmatprep.subr.bf16.mxu0 0
  %227 = vmatpush1.bf16.msra.mxu0 0
  %228 = vmatprep.subr.bf16.mxu0 0
  %229 = vmatpush1.bf16.msra.mxu0 0
  %230 = vmatprep.subr.bf16.mxu0 0
  %231 = vmatpush1.bf16.msra.mxu0 %v92
  %232 = vmatprep.subr.bf16.mxu0 0
  %233 = vmatpush1.bf16.msra.mxu0 %v91
  %234 = vmatprep.subr.bf16.mxu0 0
  %235 = vmatpush2.bf16.msra.mxu0 0
  %236 = vmatprep.subr.bf16.mxu0 0
  %237 = vmatpush2.bf16.msra.mxu0 0
  %238 = vmatprep.subr.bf16.mxu0 0
  %239 = vmatpush2.bf16.msra.mxu0 0
  %240 = vmatprep.subr.bf16.mxu0 0
  %241 = vmatpush2.bf16.msra.mxu0 0
  %242 = vmatprep.subr.bf16.mxu0 0
  %243 = vmatpush2.bf16.msra.mxu0 0
  %244 = vmatprep.subr.bf16.mxu0 0
  %245 = vmatpush2.bf16.msra.mxu0 0
  %246 = vmatprep.subr.bf16.mxu0 0
  %247 = vmatpush2.bf16.msra.mxu0 0
  %248 = vmatprep.subr.bf16.mxu0 0
  %249 = vmatpush2.bf16.msra.mxu0 0
  %250 = vmatprep.mubr.bf16.mxu0 0
  %251 = vmatmul.mubr.bf16.gmra.mxu0 %v176
  %v252 = vpop.f32.mrf.mxu0
  %v253 = vadd.f32 0.0, %v252
  %v254 = vpop.f32.mrf.mxu0
  %v255 = vpop.f32.mrf.mxu0
  %v256 = vpop.f32.mrf.mxu0
  %257 = vdwg.mxu0
  %v258 = vsel %vm26, %v213, %v253
  %s259 = scalar_lea.vmem %s0, 4
  %v260 = vld [vmem:[%s259] sm:$0xf]
  %v261 = vadd.f32 %v260, %v258
  %v262 = vxor.u32 %v261, 2147483648
  %v263 = vmul.f32 %v262, 1.442695
  %v264 = vpow.pop %v263
  %v265 = vadd.f32 %v264, 1.0
  %v266 = vrcp.pop %v265
  %v267 = vmul.f32 1.0, %v266
  %v268 = vtanh.pop %v261
  %v269 = vmul.f32 %v267, %v155
  %271 = vrot.lane.b32.xlu0 %v268, 64
  %v272 = vpop.permute.xlu0 %271
  %v274 = vmul.f32 %v267, %v272
  %276 = vrot.lane.b32.xlu0 %v274, 32
  %v277 = vpop.permute.xlu0 %276
  %v279 = vadd.f32 %v269, %v277
  %v280 = vtanh.pop %v279
  %282 = vrot.lane.b32.xlu0 %v280, 64
  %v283 = vpop.permute.xlu0 %282
  %v285 = vmul.f32 %v267, %v283
  %287 = vrot.lane.b32.xlu0 %v285, 32
  %v288 = vpop.permute.xlu0 %287
  %s290 = scalar_lea.vmem %s2, 24
  %291 = vst.msk [vmem:[%s290] sm:$0x3] %vm167, %v288
  %s292 = scalar_lea.vmem %s2, 4
  %293 = vst.msk [vmem:[%s292] sm:$0xc] %vm169, %v288
  %v294 = vpack.c.bf16 %v285, %v285
  %296 = vrot.lane.b32.xlu0 %v294, 32
  %v297 = vpop.permute.xlu0 %296
  %v299 = vsel %vm39, %v297, 0
  %301 = vmatprep.subr.bf16.mxu0 0
  %302 = vmatpush1.bf16.msra.mxu0 0
  %303 = vmatprep.subr.bf16.mxu0 0
  %304 = vmatpush1.bf16.msra.mxu0 0
  %305 = vmatprep.subr.bf16.mxu0 0
  %306 = vmatpush1.bf16.msra.mxu0 0
  %307 = vmatprep.subr.bf16.mxu0 0
  %308 = vmatpush1.bf16.msra.mxu0 0
  %309 = vmatprep.subr.bf16.mxu0 0
  %310 = vmatpush1.bf16.msra.mxu0 0
  %311 = vmatprep.subr.bf16.mxu0 0
  %312 = vmatpush1.bf16.msra.mxu0 0
  %313 = vmatprep.subr.bf16.mxu0 0
  %314 = vmatpush1.bf16.msra.mxu0 %v36
  %315 = vmatprep.subr.bf16.mxu0 0
  %316 = vmatpush1.bf16.msra.mxu0 %v35
  %317 = vmatprep.subr.bf16.mxu0 0
  %318 = vmatpush2.bf16.msra.mxu0 0
  %319 = vmatprep.subr.bf16.mxu0 0
  %320 = vmatpush2.bf16.msra.mxu0 0
  %321 = vmatprep.subr.bf16.mxu0 0
  %322 = vmatpush2.bf16.msra.mxu0 0
  %323 = vmatprep.subr.bf16.mxu0 0
  %324 = vmatpush2.bf16.msra.mxu0 0
  %325 = vmatprep.subr.bf16.mxu0 0
  %326 = vmatpush2.bf16.msra.mxu0 0
  %327 = vmatprep.subr.bf16.mxu0 0
  %328 = vmatpush2.bf16.msra.mxu0 0
  %329 = vmatprep.subr.bf16.mxu0 0
  %330 = vmatpush2.bf16.msra.mxu0 0
  %331 = vmatprep.subr.bf16.mxu0 0
  %332 = vmatpush2.bf16.msra.mxu0 0
  %333 = vmatprep.mubr.bf16.mxu0 0
  %334 = vmatmul.mubr.bf16.gmra.mxu0 %v299
  %v335 = vpop.f32.mrf.mxu0
  %v336 = vadd.f32 0.0, %v335
  %v337 = vpop.f32.mrf.mxu0
  %v338 = vpop.f32.mrf.mxu0
  %v339 = vpop.f32.mrf.mxu0
  %340 = vdwg.mxu0
  %341 = vmatprep.subr.bf16.mxu0 0
  %342 = vmatpush1.bf16.msra.mxu0 0
  %343 = vmatprep.subr.bf16.mxu0 0
  %344 = vmatpush1.bf16.msra.mxu0 0
  %345 = vmatprep.subr.bf16.mxu0 0
  %346 = vmatpush1.bf16.msra.mxu0 0
  %347 = vmatprep.subr.bf16.mxu0 0
  %348 = vmatpush1.bf16.msra.mxu0 0
  %349 = vmatprep.subr.bf16.mxu0 0
  %350 = vmatpush1.bf16.msra.mxu0 0
  %351 = vmatprep.subr.bf16.mxu0 0
  %352 = vmatpush1.bf16.msra.mxu0 0
  %353 = vmatprep.subr.bf16.mxu0 0
  %354 = vmatpush1.bf16.msra.mxu0 %v92
  %355 = vmatprep.subr.bf16.mxu0 0
  %356 = vmatpush1.bf16.msra.mxu0 %v91
  %357 = vmatprep.subr.bf16.mxu0 0
  %358 = vmatpush2.bf16.msra.mxu0 0
  %359 = vmatprep.subr.bf16.mxu0 0
  %360 = vmatpush2.bf16.msra.mxu0 0
  %361 = vmatprep.subr.bf16.mxu0 0
  %362 = vmatpush2.bf16.msra.mxu0 0
  %363 = vmatprep.subr.bf16.mxu0 0
  %364 = vmatpush2.bf16.msra.mxu0 0
  %365 = vmatprep.subr.bf16.mxu0 0
  %366 = vmatpush2.bf16.msra.mxu0 0
  %367 = vmatprep.subr.bf16.mxu0 0
  %368 = vmatpush2.bf16.msra.mxu0 0
  %369 = vmatprep.subr.bf16.mxu0 0
  %370 = vmatpush2.bf16.msra.mxu0 0
  %371 = vmatprep.subr.bf16.mxu0 0
  %372 = vmatpush2.bf16.msra.mxu0 0
  %373 = vmatprep.mubr.bf16.mxu0 0
  %374 = vmatmul.mubr.bf16.gmra.mxu0 %v299
  %v375 = vpop.f32.mrf.mxu0
  %v376 = vadd.f32 0.0, %v375
  %v377 = vpop.f32.mrf.mxu0
  %v378 = vpop.f32.mrf.mxu0
  %v379 = vpop.f32.mrf.mxu0
  %380 = vdwg.mxu0
  %v381 = vsel %vm26, %v336, %v376
  %s382 = scalar_lea.vmem %s0, 8
  %v383 = vld [vmem:[%s382] sm:$0xf]
  %v384 = vadd.f32 %v383, %v381
  %v385 = vxor.u32 %v384, 2147483648
  %v386 = vmul.f32 %v385, 1.442695
  %v387 = vpow.pop %v386
  %v388 = vadd.f32 %v387, 1.0
  %v389 = vrcp.pop %v388
  %v390 = vmul.f32 1.0, %v389
  %v391 = vtanh.pop %v384
  %v392 = vmul.f32 %v390, %v279
  %394 = vrot.lane.b32.xlu0 %v391, 64
  %v395 = vpop.permute.xlu0 %394
  %v397 = vmul.f32 %v390, %v395
  %399 = vrot.lane.b32.xlu0 %v397, 32
  %v400 = vpop.permute.xlu0 %399
  %v402 = vadd.f32 %v392, %v400
  %v403 = vtanh.pop %v402
  %405 = vrot.lane.b32.xlu0 %v403, 64
  %v406 = vpop.permute.xlu0 %405
  %v408 = vmul.f32 %v390, %v406
  %410 = vrot.lane.b32.xlu0 %v408, 32
  %v411 = vpop.permute.xlu0 %410
  %s413 = scalar_lea.vmem %s2, 20
  %414 = vst.msk [vmem:[%s413] sm:$0x3] %vm167, %v411
  %s415 = scalar_lea.vmem %s2, 8
  %416 = vst.msk [vmem:[%s415] sm:$0xc] %vm169, %v411
  %v417 = vpack.c.bf16 %v408, %v408
  %419 = vrot.lane.b32.xlu0 %v417, 32
  %v420 = vpop.permute.xlu0 %419
  %v422 = vsel %vm39, %v420, 0
  %424 = vmatprep.subr.bf16.mxu0 0
  %425 = vmatpush1.bf16.msra.mxu0 0
  %426 = vmatprep.subr.bf16.mxu0 0
  %427 = vmatpush1.bf16.msra.mxu0 0
  %428 = vmatprep.subr.bf16.mxu0 0
  %429 = vmatpush1.bf16.msra.mxu0 0
  %430 = vmatprep.subr.bf16.mxu0 0
  %431 = vmatpush1.bf16.msra.mxu0 0
  %432 = vmatprep.subr.bf16.mxu0 0
  %433 = vmatpush1.bf16.msra.mxu0 0
  %434 = vmatprep.subr.bf16.mxu0 0
  %435 = vmatpush1.bf16.msra.mxu0 0
  %436 = vmatprep.subr.bf16.mxu0 0
  %437 = vmatpush1.bf16.msra.mxu0 %v36
  %438 = vmatprep.subr.bf16.mxu0 0
  %439 = vmatpush1.bf16.msra.mxu0 %v35
  %440 = vmatprep.subr.bf16.mxu0 0
  %441 = vmatpush2.bf16.msra.mxu0 0
  %442 = vmatprep.subr.bf16.mxu0 0
  %443 = vmatpush2.bf16.msra.mxu0 0
  %444 = vmatprep.subr.bf16.mxu0 0
  %445 = vmatpush2.bf16.msra.mxu0 0
  %446 = vmatprep.subr.bf16.mxu0 0
  %447 = vmatpush2.bf16.msra.mxu0 0
  %448 = vmatprep.subr.bf16.mxu0 0
  %449 = vmatpush2.bf16.msra.mxu0 0
  %450 = vmatprep.subr.bf16.mxu0 0
  %451 = vmatpush2.bf16.msra.mxu0 0
  %452 = vmatprep.subr.bf16.mxu0 0
  %453 = vmatpush2.bf16.msra.mxu0 0
  %454 = vmatprep.subr.bf16.mxu0 0
  %455 = vmatpush2.bf16.msra.mxu0 0
  %456 = vmatprep.mubr.bf16.mxu0 0
  %457 = vmatmul.mubr.bf16.gmra.mxu0 %v422
  %v458 = vpop.f32.mrf.mxu0
  %v459 = vadd.f32 0.0, %v458
  %v460 = vpop.f32.mrf.mxu0
  %v461 = vpop.f32.mrf.mxu0
  %v462 = vpop.f32.mrf.mxu0
  %463 = vdwg.mxu0
  %464 = vmatprep.subr.bf16.mxu0 0
  %465 = vmatpush1.bf16.msra.mxu0 0
  %466 = vmatprep.subr.bf16.mxu0 0
  %467 = vmatpush1.bf16.msra.mxu0 0
  %468 = vmatprep.subr.bf16.mxu0 0
  %469 = vmatpush1.bf16.msra.mxu0 0
  %470 = vmatprep.subr.bf16.mxu0 0
  %471 = vmatpush1.bf16.msra.mxu0 0
  %472 = vmatprep.subr.bf16.mxu0 0
  %473 = vmatpush1.bf16.msra.mxu0 0
  %474 = vmatprep.subr.bf16.mxu0 0
  %475 = vmatpush1.bf16.msra.mxu0 0
  %476 = vmatprep.subr.bf16.mxu0 0
  %477 = vmatpush1.bf16.msra.mxu0 %v92
  %478 = vmatprep.subr.bf16.mxu0 0
  %479 = vmatpush1.bf16.msra.mxu0 %v91
  %480 = vmatprep.subr.bf16.mxu0 0
  %481 = vmatpush2.bf16.msra.mxu0 0
  %482 = vmatprep.subr.bf16.mxu0 0
  %483 = vmatpush2.bf16.msra.mxu0 0
  %484 = vmatprep.subr.bf16.mxu0 0
  %485 = vmatpush2.bf16.msra.mxu0 0
  %486 = vmatprep.subr.bf16.mxu0 0
  %487 = vmatpush2.bf16.msra.mxu0 0
  %488 = vmatprep.subr.bf16.mxu0 0
  %489 = vmatpush2.bf16.msra.mxu0 0
  %490 = vmatprep.subr.bf16.mxu0 0
  %491 = vmatpush2.bf16.msra.mxu0 0
  %492 = vmatprep.subr.bf16.mxu0 0
  %493 = vmatpush2.bf16.msra.mxu0 0
  %494 = vmatprep.subr.bf16.mxu0 0
  %495 = vmatpush2.bf16.msra.mxu0 0
  %496 = vmatprep.mubr.bf16.mxu0 0
  %497 = vmatmul.mubr.bf16.gmra.mxu0 %v422
  %v498 = vpop.f32.mrf.mxu0
  %v499 = vadd.f32 0.0, %v498
  %v500 = vpop.f32.mrf.mxu0
  %v501 = vpop.f32.mrf.mxu0
  %v502 = vpop.f32.mrf.mxu0
  %503 = vdwg.mxu0
  %v504 = vsel %vm26, %v459, %v499
  %s505 = scalar_lea.vmem %s0, 12
  %v506 = vld [vmem:[%s505] sm:$0xf]
  %v507 = vadd.f32 %v506, %v504
  %v508 = vxor.u32 %v507, 2147483648
  %v509 = vmul.f32 %v508, 1.442695
  %v510 = vpow.pop %v509
  %v511 = vadd.f32 %v510, 1.0
  %v512 = vrcp.pop %v511
  %v513 = vmul.f32 1.0, %v512
  %v514 = vtanh.pop %v507
  %v515 = vmul.f32 %v513, %v402
  %517 = vrot.lane.b32.xlu0 %v514, 64
  %v518 = vpop.permute.xlu0 %517
  %v520 = vmul.f32 %v513, %v518
  %522 = vrot.lane.b32.xlu0 %v520, 32
  %v523 = vpop.permute.xlu0 %522
  %v525 = vadd.f32 %v515, %v523
  %v526 = vtanh.pop %v525
  %528 = vrot.lane.b32.xlu0 %v526, 64
  %v529 = vpop.permute.xlu0 %528
  %v531 = vmul.f32 %v513, %v529
  %533 = vrot.lane.b32.xlu0 %v531, 32
  %v534 = vpop.permute.xlu0 %533
  %s536 = scalar_lea.vmem %s2, 16
  %537 = vst.msk [vmem:[%s536] sm:$0x3] %vm167, %v534
  %s538 = scalar_lea.vmem %s2, 12
  %539 = vst.msk [vmem:[%s538] sm:$0xc] %vm169, %v534
  %v540 = vpack.c.bf16 %v531, %v531
  %542 = vrot.lane.b32.xlu0 %v540, 32
  %v543 = vpop.permute.xlu0 %542
  %v545 = vsel %vm39, %v543, 0
  %547 = vmatprep.subr.bf16.mxu0 0
  %548 = vmatpush1.bf16.msra.mxu0 0
  %549 = vmatprep.subr.bf16.mxu0 0
  %550 = vmatpush1.bf16.msra.mxu0 0
  %551 = vmatprep.subr.bf16.mxu0 0
  %552 = vmatpush1.bf16.msra.mxu0 0
  %553 = vmatprep.subr.bf16.mxu0 0
  %554 = vmatpush1.bf16.msra.mxu0 0
  %555 = vmatprep.subr.bf16.mxu0 0
  %556 = vmatpush1.bf16.msra.mxu0 0
  %557 = vmatprep.subr.bf16.mxu0 0
  %558 = vmatpush1.bf16.msra.mxu0 0
  %559 = vmatprep.subr.bf16.mxu0 0
  %560 = vmatpush1.bf16.msra.mxu0 %v36
  %561 = vmatprep.subr.bf16.mxu0 0
  %562 = vmatpush1.bf16.msra.mxu0 %v35
  %563 = vmatprep.subr.bf16.mxu0 0
  %564 = vmatpush2.bf16.msra.mxu0 0
  %565 = vmatprep.subr.bf16.mxu0 0
  %566 = vmatpush2.bf16.msra.mxu0 0
  %567 = vmatprep.subr.bf16.mxu0 0
  %568 = vmatpush2.bf16.msra.mxu0 0
  %569 = vmatprep.subr.bf16.mxu0 0
  %570 = vmatpush2.bf16.msra.mxu0 0
  %571 = vmatprep.subr.bf16.mxu0 0
  %572 = vmatpush2.bf16.msra.mxu0 0
  %573 = vmatprep.subr.bf16.mxu0 0
  %574 = vmatpush2.bf16.msra.mxu0 0
  %575 = vmatprep.subr.bf16.mxu0 0
  %576 = vmatpush2.bf16.msra.mxu0 0
  %577 = vmatprep.subr.bf16.mxu0 0
  %578 = vmatpush2.bf16.msra.mxu0 0
  %579 = vmatprep.mubr.bf16.mxu0 0
  %580 = vmatmul.mubr.bf16.gmra.mxu0 %v545
  %v581 = vpop.f32.mrf.mxu0
  %v582 = vadd.f32 0.0, %v581
  %v583 = vpop.f32.mrf.mxu0
  %v584 = vpop.f32.mrf.mxu0
  %v585 = vpop.f32.mrf.mxu0
  %586 = vdwg.mxu0
  %587 = vmatprep.subr.bf16.mxu0 0
  %588 = vmatpush1.bf16.msra.mxu0 0
  %589 = vmatprep.subr.bf16.mxu0 0
  %590 = vmatpush1.bf16.msra.mxu0 0
  %591 = vmatprep.subr.bf16.mxu0 0
  %592 = vmatpush1.bf16.msra.mxu0 0
  %593 = vmatprep.subr.bf16.mxu0 0
  %594 = vmatpush1.bf16.msra.mxu0 0
  %595 = vmatprep.subr.bf16.mxu0 0
  %596 = vmatpush1.bf16.msra.mxu0 0
  %597 = vmatprep.subr.bf16.mxu0 0
  %598 = vmatpush1.bf16.msra.mxu0 0
  %599 = vmatprep.subr.bf16.mxu0 0
  %600 = vmatpush1.bf16.msra.mxu0 %v92
  %601 = vmatprep.subr.bf16.mxu0 0
  %602 = vmatpush1.bf16.msra.mxu0 %v91
  %603 = vmatprep.subr.bf16.mxu0 0
  %604 = vmatpush2.bf16.msra.mxu0 0
  %605 = vmatprep.subr.bf16.mxu0 0
  %606 = vmatpush2.bf16.msra.mxu0 0
  %607 = vmatprep.subr.bf16.mxu0 0
  %608 = vmatpush2.bf16.msra.mxu0 0
  %609 = vmatprep.subr.bf16.mxu0 0
  %610 = vmatpush2.bf16.msra.mxu0 0
  %611 = vmatprep.subr.bf16.mxu0 0
  %612 = vmatpush2.bf16.msra.mxu0 0
  %613 = vmatprep.subr.bf16.mxu0 0
  %614 = vmatpush2.bf16.msra.mxu0 0
  %615 = vmatprep.subr.bf16.mxu0 0
  %616 = vmatpush2.bf16.msra.mxu0 0
  %617 = vmatprep.subr.bf16.mxu0 0
  %618 = vmatpush2.bf16.msra.mxu0 0
  %619 = vmatprep.mubr.bf16.mxu0 0
  %620 = vmatmul.mubr.bf16.gmra.mxu0 %v545
  %v621 = vpop.f32.mrf.mxu0
  %v622 = vadd.f32 0.0, %v621
  %v623 = vpop.f32.mrf.mxu0
  %v624 = vpop.f32.mrf.mxu0
  %v625 = vpop.f32.mrf.mxu0
  %626 = vdwg.mxu0
  %v627 = vsel %vm26, %v582, %v622
  %s628 = scalar_lea.vmem %s0, 16
  %v629 = vld [vmem:[%s628] sm:$0xf]
  %v630 = vadd.f32 %v629, %v627
  %v631 = vxor.u32 %v630, 2147483648
  %v632 = vmul.f32 %v631, 1.442695
  %v633 = vpow.pop %v632
  %v634 = vadd.f32 %v633, 1.0
  %v635 = vrcp.pop %v634
  %v636 = vmul.f32 1.0, %v635
  %v637 = vtanh.pop %v630
  %v638 = vmul.f32 %v636, %v525
  %640 = vrot.lane.b32.xlu0 %v637, 64
  %v641 = vpop.permute.xlu0 %640
  %v643 = vmul.f32 %v636, %v641
  %645 = vrot.lane.b32.xlu0 %v643, 32
  %v646 = vpop.permute.xlu0 %645
  %v648 = vadd.f32 %v638, %v646
  %v649 = vtanh.pop %v648
  %651 = vrot.lane.b32.xlu0 %v649, 64
  %v652 = vpop.permute.xlu0 %651
  %v654 = vmul.f32 %v636, %v652
  %656 = vrot.lane.b32.xlu0 %v654, 32
  %v657 = vpop.permute.xlu0 %656
  %659 = vst.msk [vmem:[%s538] sm:$0x3] %vm167, %v657
  %660 = vst.msk [vmem:[%s536] sm:$0xc] %vm169, %v657
  %v661 = vpack.c.bf16 %v654, %v654
  %663 = vrot.lane.b32.xlu0 %v661, 32
  %v664 = vpop.permute.xlu0 %663
  %v666 = vsel %vm39, %v664, 0
  %668 = vmatprep.subr.bf16.mxu0 0
  %669 = vmatpush1.bf16.msra.mxu0 0
  %670 = vmatprep.subr.bf16.mxu0 0
  %671 = vmatpush1.bf16.msra.mxu0 0
  %672 = vmatprep.subr.bf16.mxu0 0
  %673 = vmatpush1.bf16.msra.mxu0 0
  %674 = vmatprep.subr.bf16.mxu0 0
  %675 = vmatpush1.bf16.msra.mxu0 0
  %676 = vmatprep.subr.bf16.mxu0 0
  %677 = vmatpush1.bf16.msra.mxu0 0
  %678 = vmatprep.subr.bf16.mxu0 0
  %679 = vmatpush1.bf16.msra.mxu0 0
  %680 = vmatprep.subr.bf16.mxu0 0
  %681 = vmatpush1.bf16.msra.mxu0 %v36
  %682 = vmatprep.subr.bf16.mxu0 0
  %683 = vmatpush1.bf16.msra.mxu0 %v35
  %684 = vmatprep.subr.bf16.mxu0 0
  %685 = vmatpush2.bf16.msra.mxu0 0
  %686 = vmatprep.subr.bf16.mxu0 0
  %687 = vmatpush2.bf16.msra.mxu0 0
  %688 = vmatprep.subr.bf16.mxu0 0
  %689 = vmatpush2.bf16.msra.mxu0 0
  %690 = vmatprep.subr.bf16.mxu0 0
  %691 = vmatpush2.bf16.msra.mxu0 0
  %692 = vmatprep.subr.bf16.mxu0 0
  %693 = vmatpush2.bf16.msra.mxu0 0
  %694 = vmatprep.subr.bf16.mxu0 0
  %695 = vmatpush2.bf16.msra.mxu0 0
  %696 = vmatprep.subr.bf16.mxu0 0
  %697 = vmatpush2.bf16.msra.mxu0 0
  %698 = vmatprep.subr.bf16.mxu0 0
  %699 = vmatpush2.bf16.msra.mxu0 0
  %700 = vmatprep.mubr.bf16.mxu0 0
  %701 = vmatmul.mubr.bf16.gmra.mxu0 %v666
  %v702 = vpop.f32.mrf.mxu0
  %v703 = vadd.f32 0.0, %v702
  %v704 = vpop.f32.mrf.mxu0
  %v705 = vpop.f32.mrf.mxu0
  %v706 = vpop.f32.mrf.mxu0
  %707 = vdwg.mxu0
  %708 = vmatprep.subr.bf16.mxu0 0
  %709 = vmatpush1.bf16.msra.mxu0 0
  %710 = vmatprep.subr.bf16.mxu0 0
  %711 = vmatpush1.bf16.msra.mxu0 0
  %712 = vmatprep.subr.bf16.mxu0 0
  %713 = vmatpush1.bf16.msra.mxu0 0
  %714 = vmatprep.subr.bf16.mxu0 0
  %715 = vmatpush1.bf16.msra.mxu0 0
  %716 = vmatprep.subr.bf16.mxu0 0
  %717 = vmatpush1.bf16.msra.mxu0 0
  %718 = vmatprep.subr.bf16.mxu0 0
  %719 = vmatpush1.bf16.msra.mxu0 0
  %720 = vmatprep.subr.bf16.mxu0 0
  %721 = vmatpush1.bf16.msra.mxu0 %v92
  %722 = vmatprep.subr.bf16.mxu0 0
  %723 = vmatpush1.bf16.msra.mxu0 %v91
  %724 = vmatprep.subr.bf16.mxu0 0
  %725 = vmatpush2.bf16.msra.mxu0 0
  %726 = vmatprep.subr.bf16.mxu0 0
  %727 = vmatpush2.bf16.msra.mxu0 0
  %728 = vmatprep.subr.bf16.mxu0 0
  %729 = vmatpush2.bf16.msra.mxu0 0
  %730 = vmatprep.subr.bf16.mxu0 0
  %731 = vmatpush2.bf16.msra.mxu0 0
  %732 = vmatprep.subr.bf16.mxu0 0
  %733 = vmatpush2.bf16.msra.mxu0 0
  %734 = vmatprep.subr.bf16.mxu0 0
  %735 = vmatpush2.bf16.msra.mxu0 0
  %736 = vmatprep.subr.bf16.mxu0 0
  %737 = vmatpush2.bf16.msra.mxu0 0
  %738 = vmatprep.subr.bf16.mxu0 0
  %739 = vmatpush2.bf16.msra.mxu0 0
  %740 = vmatprep.mubr.bf16.mxu0 0
  %741 = vmatmul.mubr.bf16.gmra.mxu0 %v666
  %v742 = vpop.f32.mrf.mxu0
  %v743 = vadd.f32 0.0, %v742
  %v744 = vpop.f32.mrf.mxu0
  %v745 = vpop.f32.mrf.mxu0
  %v746 = vpop.f32.mrf.mxu0
  %747 = vdwg.mxu0
  %v748 = vsel %vm26, %v703, %v743
  %s749 = scalar_lea.vmem %s0, 20
  %v750 = vld [vmem:[%s749] sm:$0xf]
  %v751 = vadd.f32 %v750, %v748
  %v752 = vxor.u32 %v751, 2147483648
  %v753 = vmul.f32 %v752, 1.442695
  %v754 = vpow.pop %v753
  %v755 = vadd.f32 %v754, 1.0
  %v756 = vrcp.pop %v755
  %v757 = vmul.f32 1.0, %v756
  %v758 = vtanh.pop %v751
  %v759 = vmul.f32 %v757, %v648
  %761 = vrot.lane.b32.xlu0 %v758, 64
  %v762 = vpop.permute.xlu0 %761
  %v764 = vmul.f32 %v757, %v762
  %766 = vrot.lane.b32.xlu0 %v764, 32
  %v767 = vpop.permute.xlu0 %766
  %v769 = vadd.f32 %v759, %v767
  %v770 = vtanh.pop %v769
  %772 = vrot.lane.b32.xlu0 %v770, 64
  %v773 = vpop.permute.xlu0 %772
  %v775 = vmul.f32 %v757, %v773
  %777 = vrot.lane.b32.xlu0 %v775, 32
  %v778 = vpop.permute.xlu0 %777
  %780 = vst.msk [vmem:[%s415] sm:$0x3] %vm167, %v778
  %781 = vst.msk [vmem:[%s413] sm:$0xc] %vm169, %v778
  %v782 = vpack.c.bf16 %v775, %v775
  %784 = vrot.lane.b32.xlu0 %v782, 32
  %v785 = vpop.permute.xlu0 %784
  %v787 = vsel %vm39, %v785, 0
  %789 = vmatprep.subr.bf16.mxu0 0
  %790 = vmatpush1.bf16.msra.mxu0 0
  %791 = vmatprep.subr.bf16.mxu0 0
  %792 = vmatpush1.bf16.msra.mxu0 0
  %793 = vmatprep.subr.bf16.mxu0 0
  %794 = vmatpush1.bf16.msra.mxu0 0
  %795 = vmatprep.subr.bf16.mxu0 0
  %796 = vmatpush1.bf16.msra.mxu0 0
  %797 = vmatprep.subr.bf16.mxu0 0
  %798 = vmatpush1.bf16.msra.mxu0 0
  %799 = vmatprep.subr.bf16.mxu0 0
  %800 = vmatpush1.bf16.msra.mxu0 0
  %801 = vmatprep.subr.bf16.mxu0 0
  %802 = vmatpush1.bf16.msra.mxu0 %v36
  %803 = vmatprep.subr.bf16.mxu0 0
  %804 = vmatpush1.bf16.msra.mxu0 %v35
  %805 = vmatprep.subr.bf16.mxu0 0
  %806 = vmatpush2.bf16.msra.mxu0 0
  %807 = vmatprep.subr.bf16.mxu0 0
  %808 = vmatpush2.bf16.msra.mxu0 0
  %809 = vmatprep.subr.bf16.mxu0 0
  %810 = vmatpush2.bf16.msra.mxu0 0
  %811 = vmatprep.subr.bf16.mxu0 0
  %812 = vmatpush2.bf16.msra.mxu0 0
  %813 = vmatprep.subr.bf16.mxu0 0
  %814 = vmatpush2.bf16.msra.mxu0 0
  %815 = vmatprep.subr.bf16.mxu0 0
  %816 = vmatpush2.bf16.msra.mxu0 0
  %817 = vmatprep.subr.bf16.mxu0 0
  %818 = vmatpush2.bf16.msra.mxu0 0
  %819 = vmatprep.subr.bf16.mxu0 0
  %820 = vmatpush2.bf16.msra.mxu0 0
  %821 = vmatprep.mubr.bf16.mxu0 0
  %822 = vmatmul.mubr.bf16.gmra.mxu0 %v787
  %v823 = vpop.f32.mrf.mxu0
  %v824 = vadd.f32 0.0, %v823
  %v825 = vpop.f32.mrf.mxu0
  %v826 = vpop.f32.mrf.mxu0
  %v827 = vpop.f32.mrf.mxu0
  %828 = vdwg.mxu0
  %829 = vmatprep.subr.bf16.mxu0 0
  %830 = vmatpush1.bf16.msra.mxu0 0
  %831 = vmatprep.subr.bf16.mxu0 0
  %832 = vmatpush1.bf16.msra.mxu0 0
  %833 = vmatprep.subr.bf16.mxu0 0
  %834 = vmatpush1.bf16.msra.mxu0 0
  %835 = vmatprep.subr.bf16.mxu0 0
  %836 = vmatpush1.bf16.msra.mxu0 0
  %837 = vmatprep.subr.bf16.mxu0 0
  %838 = vmatpush1.bf16.msra.mxu0 0
  %839 = vmatprep.subr.bf16.mxu0 0
  %840 = vmatpush1.bf16.msra.mxu0 0
  %841 = vmatprep.subr.bf16.mxu0 0
  %842 = vmatpush1.bf16.msra.mxu0 %v92
  %843 = vmatprep.subr.bf16.mxu0 0
  %844 = vmatpush1.bf16.msra.mxu0 %v91
  %845 = vmatprep.subr.bf16.mxu0 0
  %846 = vmatpush2.bf16.msra.mxu0 0
  %847 = vmatprep.subr.bf16.mxu0 0
  %848 = vmatpush2.bf16.msra.mxu0 0
  %849 = vmatprep.subr.bf16.mxu0 0
  %850 = vmatpush2.bf16.msra.mxu0 0
  %851 = vmatprep.subr.bf16.mxu0 0
  %852 = vmatpush2.bf16.msra.mxu0 0
  %853 = vmatprep.subr.bf16.mxu0 0
  %854 = vmatpush2.bf16.msra.mxu0 0
  %855 = vmatprep.subr.bf16.mxu0 0
  %856 = vmatpush2.bf16.msra.mxu0 0
  %857 = vmatprep.subr.bf16.mxu0 0
  %858 = vmatpush2.bf16.msra.mxu0 0
  %859 = vmatprep.subr.bf16.mxu0 0
  %860 = vmatpush2.bf16.msra.mxu0 0
  %861 = vmatprep.mubr.bf16.mxu0 0
  %862 = vmatmul.mubr.bf16.gmra.mxu0 %v787
  %v863 = vpop.f32.mrf.mxu0
  %v864 = vadd.f32 0.0, %v863
  %v865 = vpop.f32.mrf.mxu0
  %v866 = vpop.f32.mrf.mxu0
  %v867 = vpop.f32.mrf.mxu0
  %868 = vdwg.mxu0
  %v869 = vsel %vm26, %v824, %v864
  %s870 = scalar_lea.vmem %s0, 24
  %v871 = vld [vmem:[%s870] sm:$0xf]
  %v872 = vadd.f32 %v871, %v869
  %v873 = vxor.u32 %v872, 2147483648
  %v874 = vmul.f32 %v873, 1.442695
  %v875 = vpow.pop %v874
  %v876 = vadd.f32 %v875, 1.0
  %v877 = vrcp.pop %v876
  %v878 = vmul.f32 1.0, %v877
  %v879 = vtanh.pop %v872
  %v880 = vmul.f32 %v878, %v769
  %882 = vrot.lane.b32.xlu0 %v879, 64
  %v883 = vpop.permute.xlu0 %882
  %v885 = vmul.f32 %v878, %v883
  %887 = vrot.lane.b32.xlu0 %v885, 32
  %v888 = vpop.permute.xlu0 %887
  %v890 = vadd.f32 %v880, %v888
  %v891 = vtanh.pop %v890
  %893 = vrot.lane.b32.xlu0 %v891, 64
  %v894 = vpop.permute.xlu0 %893
  %v896 = vmul.f32 %v878, %v894
  %898 = vrot.lane.b32.xlu0 %v896, 32
  %v899 = vpop.permute.xlu0 %898
  %901 = vst.msk [vmem:[%s292] sm:$0x3] %vm167, %v899
  %902 = vst.msk [vmem:[%s290] sm:$0xc] %vm169, %v899
  %v903 = vpack.c.bf16 %v896, %v896
  %905 = vrot.lane.b32.xlu0 %v903, 32
  %v906 = vpop.permute.xlu0 %905
  %v908 = vsel %vm39, %v906, 0
  %910 = vmatprep.subr.bf16.mxu0 0
  %911 = vmatpush1.bf16.msra.mxu0 0
  %912 = vmatprep.subr.bf16.mxu0 0
  %913 = vmatpush1.bf16.msra.mxu0 0
  %914 = vmatprep.subr.bf16.mxu0 0
  %915 = vmatpush1.bf16.msra.mxu0 0
  %916 = vmatprep.subr.bf16.mxu0 0
  %917 = vmatpush1.bf16.msra.mxu0 0
  %918 = vmatprep.subr.bf16.mxu0 0
  %919 = vmatpush1.bf16.msra.mxu0 0
  %920 = vmatprep.subr.bf16.mxu0 0
  %921 = vmatpush1.bf16.msra.mxu0 0
  %922 = vmatprep.subr.bf16.mxu0 0
  %923 = vmatpush1.bf16.msra.mxu0 %v36
  %924 = vmatprep.subr.bf16.mxu0 0
  %925 = vmatpush1.bf16.msra.mxu0 %v35
  %926 = vmatprep.subr.bf16.mxu0 0
  %927 = vmatpush2.bf16.msra.mxu0 0
  %928 = vmatprep.subr.bf16.mxu0 0
  %929 = vmatpush2.bf16.msra.mxu0 0
  %930 = vmatprep.subr.bf16.mxu0 0
  %931 = vmatpush2.bf16.msra.mxu0 0
  %932 = vmatprep.subr.bf16.mxu0 0
  %933 = vmatpush2.bf16.msra.mxu0 0
  %934 = vmatprep.subr.bf16.mxu0 0
  %935 = vmatpush2.bf16.msra.mxu0 0
  %936 = vmatprep.subr.bf16.mxu0 0
  %937 = vmatpush2.bf16.msra.mxu0 0
  %938 = vmatprep.subr.bf16.mxu0 0
  %939 = vmatpush2.bf16.msra.mxu0 0
  %940 = vmatprep.subr.bf16.mxu0 0
  %941 = vmatpush2.bf16.msra.mxu0 0
  %942 = vmatprep.mubr.bf16.mxu0 0
  %943 = vmatmul.mubr.bf16.gmra.mxu0 %v908
  %v944 = vpop.f32.mrf.mxu0
  %v945 = vadd.f32 0.0, %v944
  %v946 = vpop.f32.mrf.mxu0
  %v947 = vpop.f32.mrf.mxu0
  %v948 = vpop.f32.mrf.mxu0
  %949 = vdwg.mxu0
  %950 = vmatprep.subr.bf16.mxu0 0
  %951 = vmatpush1.bf16.msra.mxu0 0
  %952 = vmatprep.subr.bf16.mxu0 0
  %953 = vmatpush1.bf16.msra.mxu0 0
  %954 = vmatprep.subr.bf16.mxu0 0
  %955 = vmatpush1.bf16.msra.mxu0 0
  %956 = vmatprep.subr.bf16.mxu0 0
  %957 = vmatpush1.bf16.msra.mxu0 0
  %958 = vmatprep.subr.bf16.mxu0 0
  %959 = vmatpush1.bf16.msra.mxu0 0
  %960 = vmatprep.subr.bf16.mxu0 0
  %961 = vmatpush1.bf16.msra.mxu0 0
  %962 = vmatprep.subr.bf16.mxu0 0
  %963 = vmatpush1.bf16.msra.mxu0 %v92
  %964 = vmatprep.subr.bf16.mxu0 0
  %965 = vmatpush1.bf16.msra.mxu0 %v91
  %966 = vmatprep.subr.bf16.mxu0 0
  %967 = vmatpush2.bf16.msra.mxu0 0
  %968 = vmatprep.subr.bf16.mxu0 0
  %969 = vmatpush2.bf16.msra.mxu0 0
  %970 = vmatprep.subr.bf16.mxu0 0
  %971 = vmatpush2.bf16.msra.mxu0 0
  %972 = vmatprep.subr.bf16.mxu0 0
  %973 = vmatpush2.bf16.msra.mxu0 0
  %974 = vmatprep.subr.bf16.mxu0 0
  %975 = vmatpush2.bf16.msra.mxu0 0
  %976 = vmatprep.subr.bf16.mxu0 0
  %977 = vmatpush2.bf16.msra.mxu0 0
  %978 = vmatprep.subr.bf16.mxu0 0
  %979 = vmatpush2.bf16.msra.mxu0 0
  %980 = vmatprep.subr.bf16.mxu0 0
  %981 = vmatpush2.bf16.msra.mxu0 0
  %982 = vmatprep.mubr.bf16.mxu0 0
  %983 = vmatmul.mubr.bf16.gmra.mxu0 %v908
  %v984 = vpop.f32.mrf.mxu0
  %v985 = vadd.f32 0.0, %v984
  %v986 = vpop.f32.mrf.mxu0
  %v987 = vpop.f32.mrf.mxu0
  %v988 = vpop.f32.mrf.mxu0
  %989 = vdwg.mxu0
  %v990 = vsel %vm26, %v945, %v985
  %s991 = scalar_lea.vmem %s0, 28
  %v992 = vld [vmem:[%s991] sm:$0xf]
  %v993 = vadd.f32 %v992, %v990
  %v994 = vxor.u32 %v993, 2147483648
  %v995 = vmul.f32 %v994, 1.442695
  %v996 = vpow.pop %v995
  %v997 = vadd.f32 %v996, 1.0
  %v998 = vrcp.pop %v997
  %v999 = vmul.f32 1.0, %v998
  %v1000 = vtanh.pop %v993
  %v1001 = vmul.f32 %v999, %v890
  %1003 = vrot.lane.b32.xlu0 %v1000, 64
  %v1004 = vpop.permute.xlu0 %1003
  %v1006 = vmul.f32 %v999, %v1004
  %1008 = vrot.lane.b32.xlu0 %v1006, 32
  %v1009 = vpop.permute.xlu0 %1008
  %v1011 = vadd.f32 %v1001, %v1009
  %v1012 = vtanh.pop %v1011
  %1014 = vrot.lane.b32.xlu0 %v1012, 64
  %v1015 = vpop.permute.xlu0 %1014
  %v1017 = vmul.f32 %v999, %v1015
  %1019 = vrot.lane.b32.xlu0 %v1017, 32
  %v1020 = vpop.permute.xlu0 %1019
  %1022 = vst.msk [vmem:[%s2] sm:$0x3] %vm167, %v1020
  %1023 = vst.msk [vmem:[%s166] sm:$0xc] %vm169, %v1020
  %vm1024 = vcmask 257024
  %1025 = vst.msk [vmem:[%s3] sm:$0xf] %vm1024, %v1020
  %1027 = vrot.lane.b32.xlu0 %v1011, 96
  %v1028 = vpop.permute.xlu0 %1027
  %1030 = vst.msk [vmem:[%s4] sm:$0xf] %vm1024, %v1028
  // Predicated region
  $region10: #{encoder_rnn_forward.3} parent=0 // pred_check
    _
  $region11: #{encoder_rnn_forward.3} parent=0 // pred_check_branch
    %1032 = sbr.rel (0) target = $region13
  $region12: #{encoder_rnn_forward.3} parent=0 // pred_region
    _
  $region13: #{encoder_rnn_forward.3} parent=0 // pred_fallthru
    _
  // Predicated region
  $region14: #{encoder_rnn_forward.3} parent=0 // pred_check
    _
  $region15: #{encoder_rnn_forward.3} parent=0 // pred_check_branch
    %1034 = sbr.rel (0) target = $region17
  $region16: #{encoder_rnn_forward.3} parent=0 // pred_region
    _
  $region17: #{encoder_rnn_forward.3} parent=0 // pred_fallthru
    _
  // Predicated region
  $region18: #{encoder_rnn_forward.3} parent=0 // pred_check
    _
  $region19: #{encoder_rnn_forward.3} parent=0 // pred_check_branch
    %1036 = sbr.rel (0) target = $region21
  $region20: #{encoder_rnn_forward.3} parent=0 // pred_region
    _
  $region21: #{encoder_rnn_forward.3} parent=0 // pred_fallthru
    _
  // Predicated region
  $region22: #{encoder_rnn_forward.3} parent=0 // pred_check
    _
  $region23: #{encoder_rnn_forward.3} parent=0 // pred_check_branch
    %1038 = sbr.rel (0) target = $region25
  $region24: #{encoder_rnn_forward.3} parent=0 // pred_region
    _
  $region25: #{encoder_rnn_forward.3} parent=0 // pred_fallthru
    _
  // Predicated region
  $region26: #{encoder_rnn_forward.3} parent=0 // pred_check
    _
  $region27: #{encoder_rnn_forward.3} parent=0 // pred_check_branch
    %1040 = sbr.rel (0) target = $region29
  $region28: #{encoder_rnn_forward.3} parent=0 // pred_region
    _
  $region29: #{encoder_rnn_forward.3} parent=0 // pred_fallthru
    _
  // Predicated region
  $region30: #{encoder_rnn_forward.3} parent=0 // pred_check
    _
  $region31: #{encoder_rnn_forward.3} parent=0 // pred_check_branch
    %1042 = sbr.rel (0) target = $region33
  $region32: #{encoder_rnn_forward.3} parent=0 // pred_region
    _
  $region33: #{encoder_rnn_forward.3} parent=0 // pred_fallthru
    _

// kernel: encoder_rnn_forward.2
$region0: #{encoder_rnn_forward.2}
  #allocation0 [shape = 'u32[]', space=smem, size = 0x4, offset = 0x4, fixed_abs, tag = 'smem constant byte address 0x4 - core index']
  #allocation1 [shape = 'u32[144,128]{1,0:T(1,128)}', space=vmem, size = 0x12000, scoped, tag = 'internal scratch']
  %s0 = inlined_call_operand.vmem [shape: f32[8,4,128], index: 0, kind: input, shape index: {}]
  %s1 = inlined_call_operand.vmem [shape: bf16[2,32,128], index: 1, kind: input, shape index: {}]
  %s2 = inlined_call_operand.vmem [shape: bf16[8,4,32], index: 2, kind: output, shape index: {0}]
  %s3 = inlined_call_operand.vmem [shape: f32[4,32], index: 3, kind: output, shape index: {1}]
  %s4 = inlined_call_operand.vmem [shape: f32[4,32], index: 4, kind: output, shape index: {2}]
  %5 = xla_tuple %s2, %s3, %s4
  %s6 = sld [smem:[#allocation0]]
  $region34: #{encoder_rnn_forward.2} parent=0
    _
  %s8 = ssub.s32 1, %s6
  %s9 = scalar_select 0, %s8, %s6
  // Predicated region
  $region2: #{encoder_rnn_forward.2} parent=0 // pred_check
    _
  $region3: #{encoder_rnn_forward.2} parent=0 // pred_check_branch
    %11 = sbr.rel (0) target = $region5
  $region4: #{encoder_rnn_forward.2} parent=0 // pred_region
    _
  $region5: #{encoder_rnn_forward.2} parent=0 // pred_fallthru
    _
  // Predicated region
  $region6: #{encoder_rnn_forward.2} parent=0 // pred_check
    _
  $region7: #{encoder_rnn_forward.2} parent=0 // pred_check_branch
    %13 = sbr.rel (0) target = $region9
  $region8: #{encoder_rnn_forward.2} parent=0 // pred_region
    _
  $region9: #{encoder_rnn_forward.2} parent=0 // pred_fallthru
    _
  %v15 = vld [vmem:[%s1] sm:$0xf]
  %v16 = vld [vmem:[%s1 + $0x4] sm:$0xf]
  %v17 = vld [vmem:[%s1 + $0x8] sm:$0xf]
  %v18 = vld [vmem:[%s1 + $0xc] sm:$0xf]
  %s19 = scalar_lea.vmem %s1, 16
  %v20 = vld [vmem:[%s19] sm:$0xf]
  %v21 = vld [vmem:[%s19 + $0x4] sm:$0xf]
  %v22 = vld [vmem:[%s19 + $0x8] sm:$0xf]
  %v23 = vld [vmem:[%s19 + $0xc] sm:$0xf]
  %v24 = vlaneseq
  %v25 = vshrl.u32 %v24, 7
  %vm26 = vcmp.lt.s32.totalorder %v25, 2
  %v31 = vunpack.c.l.b16 %v15
  %v32 = vunpack.c.l.b16 %v16
  %v33 = vunpack.c.l.b16 %v17
  %v34 = vunpack.c.l.b16 %v18
  %v35 = vpack.c.b16 %v32, %v31
  %v36 = vpack.c.b16 %v34, %v33
  %vm39 = vcmask 261120
  %v41 = vsel %vm39, 0, 0
  %43 = vmatprep.subr.bf16.mxu0 0
  %44 = vmatpush1.bf16.msra.mxu0 0
  %45 = vmatprep.subr.bf16.mxu0 0
  %46 = vmatpush1.bf16.msra.mxu0 0
  %47 = vmatprep.subr.bf16.mxu0 0
  %48 = vmatpush1.bf16.msra.mxu0 0
  %49 = vmatprep.subr.bf16.mxu0 0
  %50 = vmatpush1.bf16.msra.mxu0 0
  %51 = vmatprep.subr.bf16.mxu0 0
  %52 = vmatpush1.bf16.msra.mxu0 0
  %53 = vmatprep.subr.bf16.mxu0 0
  %54 = vmatpush1.bf16.msra.mxu0 0
  %55 = vmatprep.subr.bf16.mxu0 0
  %56 = vmatpush1.bf16.msra.mxu0 %v36
  %57 = vmatprep.subr.bf16.mxu0 0
  %58 = vmatpush1.bf16.msra.mxu0 %v35
  %59 = vmatprep.subr.bf16.mxu0 0
  %60 = vmatpush2.bf16.msra.mxu0 0
  %61 = vmatprep.subr.bf16.mxu0 0
  %62 = vmatpush2.bf16.msra.mxu0 0
  %63 = vmatprep.subr.bf16.mxu0 0
  %64 = vmatpush2.bf16.msra.mxu0 0
  %65 = vmatprep.subr.bf16.mxu0 0
  %66 = vmatpush2.bf16.msra.mxu0 0
  %67 = vmatprep.subr.bf16.mxu0 0
  %68 = vmatpush2.bf16.msra.mxu0 0
  %69 = vmatprep.subr.bf16.mxu0 0
  %70 = vmatpush2.bf16.msra.mxu0 0
  %71 = vmatprep.subr.bf16.mxu0 0
  %72 = vmatpush2.bf16.msra.mxu0 0
  %73 = vmatprep.subr.bf16.mxu0 0
  %74 = vmatpush2.bf16.msra.mxu0 0
  %75 = vmatprep.mubr.bf16.mxu0 0
  %76 = vmatmul.mubr.bf16.gmra.mxu0 %v41
  %v77 = vpop.f32.mrf.mxu0
  %v78 = vadd.f32 0.0, %v77
  %v79 = vpop.f32.mrf.mxu0
  %v80 = vpop.f32.mrf.mxu0
  %v81 = vpop.f32.mrf.mxu0
  %82 = vdwg.mxu0
  %v87 = vunpack.c.l.b16 %v20
  %v88 = vunpack.c.l.b16 %v21
  %v89 = vunpack.c.l.b16 %v22
  %v90 = vunpack.c.l.b16 %v23
  %v91 = vpack.c.b16 %v88, %v87
  %v92 = vpack.c.b16 %v90, %v89
  %95 = vmatprep.subr.bf16.mxu0 0
  %96 = vmatpush1.bf16.msra.mxu0 0
  %97 = vmatprep.subr.bf16.mxu0 0
  %98 = vmatpush1.bf16.msra.mxu0 0
  %99 = vmatprep.subr.bf16.mxu0 0
  %100 = vmatpush1.bf16.msra.mxu0 0
  %101 = vmatprep.subr.bf16.mxu0 0
  %102 = vmatpush1.bf16.msra.mxu0 0
  %103 = vmatprep.subr.bf16.mxu0 0
  %104 = vmatpush1.bf16.msra.mxu0 0
  %105 = vmatprep.subr.bf16.mxu0 0
  %106 = vmatpush1.bf16.msra.mxu0 0
  %107 = vmatprep.subr.bf16.mxu0 0
  %108 = vmatpush1.bf16.msra.mxu0 %v92
  %109 = vmatprep.subr.bf16.mxu0 0
  %110 = vmatpush1.bf16.msra.mxu0 %v91
  %111 = vmatprep.subr.bf16.mxu0 0
  %112 = vmatpush2.bf16.msra.mxu0 0
  %113 = vmatprep.subr.bf16.mxu0 0
  %114 = vmatpush2.bf16.msra.mxu0 0
  %115 = vmatprep.subr.bf16.mxu0 0
  %116 = vmatpush2.bf16.msra.mxu0 0
  %117 = vmatprep.subr.bf16.mxu0 0
  %118 = vmatpush2.bf16.msra.mxu0 0
  %119 = vmatprep.subr.bf16.mxu0 0
  %120 = vmatpush2.bf16.msra.mxu0 0
  %121 = vmatprep.subr.bf16.mxu0 0
  %122 = vmatpush2.bf16.msra.mxu0 0
  %123 = vmatprep.subr.bf16.mxu0 0
  %124 = vmatpush2.bf16.msra.mxu0 0
  %125 = vmatprep.subr.bf16.mxu0 0
  %126 = vmatpush2.bf16.msra.mxu0 0
  %127 = vmatprep.mubr.bf16.mxu0 0
  %128 = vmatmul.mubr.bf16.gmra.mxu0 %v41
  %v129 = vpop.f32.mrf.mxu0
  %v130 = vadd.f32 0.0, %v129
  %v131 = vpop.f32.mrf.mxu0
  %v132 = vpop.f32.mrf.mxu0
  %v133 = vpop.f32.mrf.mxu0
  %134 = vdwg.mxu0
  %v135 = vsel %vm26, %v78, %v130
  %v136 = vld [vmem:[%s0] sm:$0xf]
  %v137 = vadd.f32 %v136, %v135
  %v138 = vxor.u32 %v137, 2147483648
  %v139 = vmul.f32 %v138, 1.442695
  %v140 = vpow.pop %v139
  %v141 = vadd.f32 %v140, 1.0
  %v142 = vrcp.pop %v141
  %v143 = vmul.f32 1.0, %v142
  %v144 = vtanh.pop %v137
  %v145 = vmul.f32 %v143, 0.0
  %147 = vrot.lane.b32.xlu0 %v144, 64
  %v148 = vpop.permute.xlu0 %147
  %v150 = vmul.f32 %v143, %v148
  %152 = vrot.lane.b32.xlu0 %v150, 32
  %v153 = vpop.permute.xlu0 %152
  %v155 = vadd.f32 %v145, %v153
  %v156 = vtanh.pop %v155
  %158 = vrot.lane.b32.xlu0 %v156, 64
  %v159 = vpop.permute.xlu0 %158
  %v161 = vmul.f32 %v143, %v159
  %v162 = vpack.c.bf16 %v161, %v161
  %v165 = vunpack.c.l.s4 1983009808
  %v166 = vunpack.c.0.s8 %v165
  %v167 = vlaneseq
  %v168 = vshrl.u32 %v167, 7
  %v169 = vsub.s32 %v166, %v168
  %v170 = vrot.slane %v162, %v169
  %171 = vrot.lane.b32.xlu0 %v170, 32
  %v172 = vpop.permute.xlu0 %171
  %vm174 = vcmask 253952
  %175 = vst.msk [vmem:[%s2] sm:$0x1] %vm174, %v172
  %s176 = scalar_lea.vmem %s2, 14
  %vm177 = vcmask 254977
  %178 = vst.msk [vmem:[%s176] sm:$0x2] %vm177, %v172
  %179 = vrot.lane.b32.xlu0 %v162, 32
  %v180 = vpop.permute.xlu0 %179
  %v182 = vsel %vm39, %v180, 0
  %184 = vmatprep.subr.bf16.mxu0 0
  %185 = vmatpush1.bf16.msra.mxu0 0
  %186 = vmatprep.subr.bf16.mxu0 0
  %187 = vmatpush1.bf16.msra.mxu0 0
  %188 = vmatprep.subr.bf16.mxu0 0
  %189 = vmatpush1.bf16.msra.mxu0 0
  %190 = vmatprep.subr.bf16.mxu0 0
  %191 = vmatpush1.bf16.msra.mxu0 0
  %192 = vmatprep.subr.bf16.mxu0 0
  %193 = vmatpush1.bf16.msra.mxu0 0
  %194 = vmatprep.subr.bf16.mxu0 0
  %195 = vmatpush1.bf16.msra.mxu0 0
  %196 = vmatprep.subr.bf16.mxu0 0
  %197 = vmatpush1.bf16.msra.mxu0 %v36
  %198 = vmatprep.subr.bf16.mxu0 0
  %199 = vmatpush1.bf16.msra.mxu0 %v35
  %200 = vmatprep.subr.bf16.mxu0 0
  %201 = vmatpush2.bf16.msra.mxu0 0
  %202 = vmatprep.subr.bf16.mxu0 0
  %203 = vmatpush2.bf16.msra.mxu0 0
  %204 = vmatprep.subr.bf16.mxu0 0
  %205 = vmatpush2.bf16.msra.mxu0 0
  %206 = vmatprep.subr.bf16.mxu0 0
  %207 = vmatpush2.bf16.msra.mxu0 0
  %208 = vmatprep.subr.bf16.mxu0 0
  %209 = vmatpush2.bf16.msra.mxu0 0
  %210 = vmatprep.subr.bf16.mxu0 0
  %211 = vmatpush2.bf16.msra.mxu0 0
  %212 = vmatprep.subr.bf16.mxu0 0
  %213 = vmatpush2.bf16.msra.mxu0 0
  %214 = vmatprep.subr.bf16.mxu0 0
  %215 = vmatpush2.bf16.msra.mxu0 0
  %216 = vmatprep.mubr.bf16.mxu0 0
  %217 = vmatmul.mubr.bf16.gmra.mxu0 %v182
  %v218 = vpop.f32.mrf.mxu0
  %v219 = vadd.f32 0.0, %v218
  %v220 = vpop.f32.mrf.mxu0
  %v221 = vpop.f32.mrf.mxu0
  %v222 = vpop.f32.mrf.mxu0
  %223 = vdwg.mxu0
  %224 = vmatprep.subr.bf16.mxu0 0
  %225 = vmatpush1.bf16.msra.mxu0 0
  %226 = vmatprep.subr.bf16.mxu0 0
  %227 = vmatpush1.bf16.msra.mxu0 0
  %228 = vmatprep.subr.bf16.mxu0 0
  %229 = vmatpush1.bf16.msra.mxu0 0
  %230 = vmatprep.subr.bf16.mxu0 0
  %231 = vmatpush1.bf16.msra.mxu0 0
  %232 = vmatprep.subr.bf16.mxu0 0
  %233 = vmatpush1.bf16.msra.mxu0 0
  %234 = vmatprep.subr.bf16.mxu0 0
  %235 = vmatpush1.bf16.msra.mxu0 0
  %236 = vmatprep.subr.bf16.mxu0 0
  %237 = vmatpush1.bf16.msra.mxu0 %v92
  %238 = vmatprep.subr.bf16.mxu0 0
  %239 = vmatpush1.bf16.msra.mxu0 %v91
  %240 = vmatprep.subr.bf16.mxu0 0
  %241 = vmatpush2.bf16.msra.mxu0 0
  %242 = vmatprep.subr.bf16.mxu0 0
  %243 = vmatpush2.bf16.msra.mxu0 0
  %244 = vmatprep.subr.bf16.mxu0 0
  %245 = vmatpush2.bf16.msra.mxu0 0
  %246 = vmatprep.subr.bf16.mxu0 0
  %247 = vmatpush2.bf16.msra.mxu0 0
  %248 = vmatprep.subr.bf16.mxu0 0
  %249 = vmatpush2.bf16.msra.mxu0 0
  %250 = vmatprep.subr.bf16.mxu0 0
  %251 = vmatpush2.bf16.msra.mxu0 0
  %252 = vmatprep.subr.bf16.mxu0 0
  %253 = vmatpush2.bf16.msra.mxu0 0
  %254 = vmatprep.subr.bf16.mxu0 0
  %255 = vmatpush2.bf16.msra.mxu0 0
  %256 = vmatprep.mubr.bf16.mxu0 0
  %257 = vmatmul.mubr.bf16.gmra.mxu0 %v182
  %v258 = vpop.f32.mrf.mxu0
  %v259 = vadd.f32 0.0, %v258
  %v260 = vpop.f32.mrf.mxu0
  %v261 = vpop.f32.mrf.mxu0
  %v262 = vpop.f32.mrf.mxu0
  %263 = vdwg.mxu0
  %v264 = vsel %vm26, %v219, %v259
  %s265 = scalar_lea.vmem %s0, 4
  %v266 = vld [vmem:[%s265] sm:$0xf]
  %v267 = vadd.f32 %v266, %v264
  %v268 = vxor.u32 %v267, 2147483648
  %v269 = vmul.f32 %v268, 1.442695
  %v270 = vpow.pop %v269
  %v271 = vadd.f32 %v270, 1.0
  %v272 = vrcp.pop %v271
  %v273 = vmul.f32 1.0, %v272
  %v274 = vtanh.pop %v267
  %v275 = vmul.f32 %v273, %v155
  %277 = vrot.lane.b32.xlu0 %v274, 64
  %v278 = vpop.permute.xlu0 %277
  %v280 = vmul.f32 %v273, %v278
  %282 = vrot.lane.b32.xlu0 %v280, 32
  %v283 = vpop.permute.xlu0 %282
  %v285 = vadd.f32 %v275, %v283
  %v286 = vtanh.pop %v285
  %288 = vrot.lane.b32.xlu0 %v286, 64
  %v289 = vpop.permute.xlu0 %288
  %v291 = vmul.f32 %v273, %v289
  %v292 = vpack.c.bf16 %v291, %v291
  %v295 = vunpack.c.l.s4 1983009808
  %v296 = vunpack.c.0.s8 %v295
  %v297 = vlaneseq
  %v298 = vshrl.u32 %v297, 7
  %v299 = vsub.s32 %v296, %v298
  %v300 = vrot.slane %v292, %v299
  %301 = vrot.lane.b32.xlu0 %v300, 32
  %v302 = vpop.permute.xlu0 %301
  %s304 = scalar_lea.vmem %s2, 2
  %305 = vst.msk [vmem:[%s304] sm:$0x1] %vm174, %v302
  %s306 = scalar_lea.vmem %s2, 12
  %307 = vst.msk [vmem:[%s306] sm:$0x2] %vm177, %v302
  %308 = vrot.lane.b32.xlu0 %v292, 32
  %v309 = vpop.permute.xlu0 %308
  %v311 = vsel %vm39, %v309, 0
  %313 = vmatprep.subr.bf16.mxu0 0
  %314 = vmatpush1.bf16.msra.mxu0 0
  %315 = vmatprep.subr.bf16.mxu0 0
  %316 = vmatpush1.bf16.msra.mxu0 0
  %317 = vmatprep.subr.bf16.mxu0 0
  %318 = vmatpush1.bf16.msra.mxu0 0
  %319 = vmatprep.subr.bf16.mxu0 0
  %320 = vmatpush1.bf16.msra.mxu0 0
  %321 = vmatprep.subr.bf16.mxu0 0
  %322 = vmatpush1.bf16.msra.mxu0 0
  %323 = vmatprep.subr.bf16.mxu0 0
  %324 = vmatpush1.bf16.msra.mxu0 0
  %325 = vmatprep.subr.bf16.mxu0 0
  %326 = vmatpush1.bf16.msra.mxu0 %v36
  %327 = vmatprep.subr.bf16.mxu0 0
  %328 = vmatpush1.bf16.msra.mxu0 %v35
  %329 = vmatprep.subr.bf16.mxu0 0
  %330 = vmatpush2.bf16.msra.mxu0 0
  %331 = vmatprep.subr.bf16.mxu0 0
  %332 = vmatpush2.bf16.msra.mxu0 0
  %333 = vmatprep.subr.bf16.mxu0 0
  %334 = vmatpush2.bf16.msra.mxu0 0
  %335 = vmatprep.subr.bf16.mxu0 0
  %336 = vmatpush2.bf16.msra.mxu0 0
  %337 = vmatprep.subr.bf16.mxu0 0
  %338 = vmatpush2.bf16.msra.mxu0 0
  %339 = vmatprep.subr.bf16.mxu0 0
  %340 = vmatpush2.bf16.msra.mxu0 0
  %341 = vmatprep.subr.bf16.mxu0 0
  %342 = vmatpush2.bf16.msra.mxu0 0
  %343 = vmatprep.subr.bf16.mxu0 0
  %344 = vmatpush2.bf16.msra.mxu0 0
  %345 = vmatprep.mubr.bf16.mxu0 0
  %346 = vmatmul.mubr.bf16.gmra.mxu0 %v311
  %v347 = vpop.f32.mrf.mxu0
  %v348 = vadd.f32 0.0, %v347
  %v349 = vpop.f32.mrf.mxu0
  %v350 = vpop.f32.mrf.mxu0
  %v351 = vpop.f32.mrf.mxu0
  %352 = vdwg.mxu0
  %353 = vmatprep.subr.bf16.mxu0 0
  %354 = vmatpush1.bf16.msra.mxu0 0
  %355 = vmatprep.subr.bf16.mxu0 0
  %356 = vmatpush1.bf16.msra.mxu0 0
  %357 = vmatprep.subr.bf16.mxu0 0
  %358 = vmatpush1.bf16.msra.mxu0 0
  %359 = vmatprep.subr.bf16.mxu0 0
  %360 = vmatpush1.bf16.msra.mxu0 0
  %361 = vmatprep.subr.bf16.mxu0 0
  %362 = vmatpush1.bf16.msra.mxu0 0
  %363 = vmatprep.subr.bf16.mxu0 0
  %364 = vmatpush1.bf16.msra.mxu0 0
  %365 = vmatprep.subr.bf16.mxu0 0
  %366 = vmatpush1.bf16.msra.mxu0 %v92
  %367 = vmatprep.subr.bf16.mxu0 0
  %368 = vmatpush1.bf16.msra.mxu0 %v91
  %369 = vmatprep.subr.bf16.mxu0 0
  %370 = vmatpush2.bf16.msra.mxu0 0
  %371 = vmatprep.subr.bf16.mxu0 0
  %372 = vmatpush2.bf16.msra.mxu0 0
  %373 = vmatprep.subr.bf16.mxu0 0
  %374 = vmatpush2.bf16.msra.mxu0 0
  %375 = vmatprep.subr.bf16.mxu0 0
  %376 = vmatpush2.bf16.msra.mxu0 0
  %377 = vmatprep.subr.bf16.mxu0 0
  %378 = vmatpush2.bf16.msra.mxu0 0
  %379 = vmatprep.subr.bf16.mxu0 0
  %380 = vmatpush2.bf16.msra.mxu0 0
  %381 = vmatprep.subr.bf16.mxu0 0
  %382 = vmatpush2.bf16.msra.mxu0 0
  %383 = vmatprep.subr.bf16.mxu0 0
  %384 = vmatpush2.bf16.msra.mxu0 0
  %385 = vmatprep.mubr.bf16.mxu0 0
  %386 = vmatmul.mubr.bf16.gmra.mxu0 %v311
  %v387 = vpop.f32.mrf.mxu0
  %v388 = vadd.f32 0.0, %v387
  %v389 = vpop.f32.mrf.mxu0
  %v390 = vpop.f32.mrf.mxu0
  %v391 = vpop.f32.mrf.mxu0
  %392 = vdwg.mxu0
  %v393 = vsel %vm26, %v348, %v388
  %s394 = scalar_lea.vmem %s0, 8
  %v395 = vld [vmem:[%s394] sm:$0xf]
  %v396 = vadd.f32 %v395, %v393
  %v397 = vxor.u32 %v396, 2147483648
  %v398 = vmul.f32 %v397, 1.442695
  %v399 = vpow.pop %v398
  %v400 = vadd.f32 %v399, 1.0
  %v401 = vrcp.pop %v400
  %v402 = vmul.f32 1.0, %v401
  %v403 = vtanh.pop %v396
  %v404 = vmul.f32 %v402, %v285
  %406 = vrot.lane.b32.xlu0 %v403, 64
  %v407 = vpop.permute.xlu0 %406
  %v409 = vmul.f32 %v402, %v407
  %411 = vrot.lane.b32.xlu0 %v409, 32
  %v412 = vpop.permute.xlu0 %411
  %v414 = vadd.f32 %v404, %v412
  %v415 = vtanh.pop %v414
  %417 = vrot.lane.b32.xlu0 %v415, 64
  %v418 = vpop.permute.xlu0 %417
  %v420 = vmul.f32 %v402, %v418
  %v421 = vpack.c.bf16 %v420, %v420
  %v424 = vunpack.c.l.s4 1983009808
  %v425 = vunpack.c.0.s8 %v424
  %v426 = vlaneseq
  %v427 = vshrl.u32 %v426, 7
  %v428 = vsub.s32 %v425, %v427
  %v429 = vrot.slane %v421, %v428
  %430 = vrot.lane.b32.xlu0 %v429, 32
  %v431 = vpop.permute.xlu0 %430
  %s433 = scalar_lea.vmem %s2, 4
  %434 = vst.msk [vmem:[%s433] sm:$0x1] %vm174, %v431
  %s435 = scalar_lea.vmem %s2, 10
  %436 = vst.msk [vmem:[%s435] sm:$0x2] %vm177, %v431
  %437 = vrot.lane.b32.xlu0 %v421, 32
  %v438 = vpop.permute.xlu0 %437
  %v440 = vsel %vm39, %v438, 0
  %442 = vmatprep.subr.bf16.mxu0 0
  %443 = vmatpush1.bf16.msra.mxu0 0
  %444 = vmatprep.subr.bf16.mxu0 0
  %445 = vmatpush1.bf16.msra.mxu0 0
  %446 = vmatprep.subr.bf16.mxu0 0
  %447 = vmatpush1.bf16.msra.mxu0 0
  %448 = vmatprep.subr.bf16.mxu0 0
  %449 = vmatpush1.bf16.msra.mxu0 0
  %450 = vmatprep.subr.bf16.mxu0 0
  %451 = vmatpush1.bf16.msra.mxu0 0
  %452 = vmatprep.subr.bf16.mxu0 0
  %453 = vmatpush1.bf16.msra.mxu0 0
  %454 = vmatprep.subr.bf16.mxu0 0
  %455 = vmatpush1.bf16.msra.mxu0 %v36
  %456 = vmatprep.subr.bf16.mxu0 0
  %457 = vmatpush1.bf16.msra.mxu0 %v35
  %458 = vmatprep.subr.bf16.mxu0 0
  %459 = vmatpush2.bf16.msra.mxu0 0
  %460 = vmatprep.subr.bf16.mxu0 0
  %461 = vmatpush2.bf16.msra.mxu0 0
  %462 = vmatprep.subr.bf16.mxu0 0
  %463 = vmatpush2.bf16.msra.mxu0 0
  %464 = vmatprep.subr.bf16.mxu0 0
  %465 = vmatpush2.bf16.msra.mxu0 0
  %466 = vmatprep.subr.bf16.mxu0 0
  %467 = vmatpush2.bf16.msra.mxu0 0
  %468 = vmatprep.subr.bf16.mxu0 0
  %469 = vmatpush2.bf16.msra.mxu0 0
  %470 = vmatprep.subr.bf16.mxu0 0
  %471 = vmatpush2.bf16.msra.mxu0 0
  %472 = vmatprep.subr.bf16.mxu0 0
  %473 = vmatpush2.bf16.msra.mxu0 0
  %474 = vmatprep.mubr.bf16.mxu0 0
  %475 = vmatmul.mubr.bf16.gmra.mxu0 %v440
  %v476 = vpop.f32.mrf.mxu0
  %v477 = vadd.f32 0.0, %v476
  %v478 = vpop.f32.mrf.mxu0
  %v479 = vpop.f32.mrf.mxu0
  %v480 = vpop.f32.mrf.mxu0
  %481 = vdwg.mxu0
  %482 = vmatprep.subr.bf16.mxu0 0
  %483 = vmatpush1.bf16.msra.mxu0 0
  %484 = vmatprep.subr.bf16.mxu0 0
  %485 = vmatpush1.bf16.msra.mxu0 0
  %486 = vmatprep.subr.bf16.mxu0 0
  %487 = vmatpush1.bf16.msra.mxu0 0
  %488 = vmatprep.subr.bf16.mxu0 0
  %489 = vmatpush1.bf16.msra.mxu0 0
  %490 = vmatprep.subr.bf16.mxu0 0
  %491 = vmatpush1.bf16.msra.mxu0 0
  %492 = vmatprep.subr.bf16.mxu0 0
  %493 = vmatpush1.bf16.msra.mxu0 0
  %494 = vmatprep.subr.bf16.mxu0 0
  %495 = vmatpush1.bf16.msra.mxu0 %v92
  %496 = vmatprep.subr.bf16.mxu0 0
  %497 = vmatpush1.bf16.msra.mxu0 %v91
  %498 = vmatprep.subr.bf16.mxu0 0
  %499 = vmatpush2.bf16.msra.mxu0 0
  %500 = vmatprep.subr.bf16.mxu0 0
  %501 = vmatpush2.bf16.msra.mxu0 0
  %502 = vmatprep.subr.bf16.mxu0 0
  %503 = vmatpush2.bf16.msra.mxu0 0
  %504 = vmatprep.subr.bf16.mxu0 0
  %505 = vmatpush2.bf16.msra.mxu0 0
  %506 = vmatprep.subr.bf16.mxu0 0
  %507 = vmatpush2.bf16.msra.mxu0 0
  %508 = vmatprep.subr.bf16.mxu0 0
  %509 = vmatpush2.bf16.msra.mxu0 0
  %510 = vmatprep.subr.bf16.mxu0 0
  %511 = vmatpush2.bf16.msra.mxu0 0
  %512 = vmatprep.subr.bf16.mxu0 0
  %513 = vmatpush2.bf16.msra.mxu0 0
  %514 = vmatprep.mubr.bf16.mxu0 0
  %515 = vmatmul.mubr.bf16.gmra.mxu0 %v440
  %v516 = vpop.f32.mrf.mxu0
  %v517 = vadd.f32 0.0, %v516
  %v518 = vpop.f32.mrf.mxu0
  %v519 = vpop.f32.mrf.mxu0
  %v520 = vpop.f32.mrf.mxu0
  %521 = vdwg.mxu0
  %v522 = vsel %vm26, %v477, %v517
  %s523 = scalar_lea.vmem %s0, 12
  %v524 = vld [vmem:[%s523] sm:$0xf]
  %v525 = vadd.f32 %v524, %v522
  %v526 = vxor.u32 %v525, 2147483648
  %v527 = vmul.f32 %v526, 1.442695
  %v528 = vpow.pop %v527
  %v529 = vadd.f32 %v528, 1.0
  %v530 = vrcp.pop %v529
  %v531 = vmul.f32 1.0, %v530
  %v532 = vtanh.pop %v525
  %v533 = vmul.f32 %v531, %v414
  %535 = vrot.lane.b32.xlu0 %v532, 64
  %v536 = vpop.permute.xlu0 %535
  %v538 = vmul.f32 %v531, %v536
  %540 = vrot.lane.b32.xlu0 %v538, 32
  %v541 = vpop.permute.xlu0 %540
  %v543 = vadd.f32 %v533, %v541
  %v544 = vtanh.pop %v543
  %546 = vrot.lane.b32.xlu0 %v544, 64
  %v547 = vpop.permute.xlu0 %546
  %v549 = vmul.f32 %v531, %v547
  %v550 = vpack.c.bf16 %v549, %v549
  %v553 = vunpack.c.l.s4 1983009808
  %v554 = vunpack.c.0.s8 %v553
  %v555 = vlaneseq
  %v556 = vshrl.u32 %v555, 7
  %v557 = vsub.s32 %v554, %v556
  %v558 = vrot.slane %v550, %v557
  %559 = vrot.lane.b32.xlu0 %v558, 32
  %v560 = vpop.permute.xlu0 %559
  %s562 = scalar_lea.vmem %s2, 6
  %563 = vst.msk [vmem:[%s562] sm:$0x1] %vm174, %v560
  %s564 = scalar_lea.vmem %s2, 8
  %565 = vst.msk [vmem:[%s564] sm:$0x2] %vm177, %v560
  %566 = vrot.lane.b32.xlu0 %v550, 32
  %v567 = vpop.permute.xlu0 %566
  %v569 = vsel %vm39, %v567, 0
  %571 = vmatprep.subr.bf16.mxu0 0
  %572 = vmatpush1.bf16.msra.mxu0 0
  %573 = vmatprep.subr.bf16.mxu0 0
  %574 = vmatpush1.bf16.msra.mxu0 0
  %575 = vmatprep.subr.bf16.mxu0 0
  %576 = vmatpush1.bf16.msra.mxu0 0
  %577 = vmatprep.subr.bf16.mxu0 0
  %578 = vmatpush1.bf16.msra.mxu0 0
  %579 = vmatprep.subr.bf16.mxu0 0
  %580 = vmatpush1.bf16.msra.mxu0 0
  %581 = vmatprep.subr.bf16.mxu0 0
  %582 = vmatpush1.bf16.msra.mxu0 0
  %583 = vmatprep.subr.bf16.mxu0 0
  %584 = vmatpush1.bf16.msra.mxu0 %v36
  %585 = vmatprep.subr.bf16.mxu0 0
  %586 = vmatpush1.bf16.msra.mxu0 %v35
  %587 = vmatprep.subr.bf16.mxu0 0
  %588 = vmatpush2.bf16.msra.mxu0 0
  %589 = vmatprep.subr.bf16.mxu0 0
  %590 = vmatpush2.bf16.msra.mxu0 0
  %591 = vmatprep.subr.bf16.mxu0 0
  %592 = vmatpush2.bf16.msra.mxu0 0
  %593 = vmatprep.subr.bf16.mxu0 0
  %594 = vmatpush2.bf16.msra.mxu0 0
  %595 = vmatprep.subr.bf16.mxu0 0
  %596 = vmatpush2.bf16.msra.mxu0 0
  %597 = vmatprep.subr.bf16.mxu0 0
  %598 = vmatpush2.bf16.msra.mxu0 0
  %599 = vmatprep.subr.bf16.mxu0 0
  %600 = vmatpush2.bf16.msra.mxu0 0
  %601 = vmatprep.subr.bf16.mxu0 0
  %602 = vmatpush2.bf16.msra.mxu0 0
  %603 = vmatprep.mubr.bf16.mxu0 0
  %604 = vmatmul.mubr.bf16.gmra.mxu0 %v569
  %v605 = vpop.f32.mrf.mxu0
  %v606 = vadd.f32 0.0, %v605
  %v607 = vpop.f32.mrf.mxu0
  %v608 = vpop.f32.mrf.mxu0
  %v609 = vpop.f32.mrf.mxu0
  %610 = vdwg.mxu0
  %611 = vmatprep.subr.bf16.mxu0 0
  %612 = vmatpush1.bf16.msra.mxu0 0
  %613 = vmatprep.subr.bf16.mxu0 0
  %614 = vmatpush1.bf16.msra.mxu0 0
  %615 = vmatprep.subr.bf16.mxu0 0
  %616 = vmatpush1.bf16.msra.mxu0 0
  %617 = vmatprep.subr.bf16.mxu0 0
  %618 = vmatpush1.bf16.msra.mxu0 0
  %619 = vmatprep.subr.bf16.mxu0 0
  %620 = vmatpush1.bf16.msra.mxu0 0
  %621 = vmatprep.subr.bf16.mxu0 0
  %622 = vmatpush1.bf16.msra.mxu0 0
  %623 = vmatprep.subr.bf16.mxu0 0
  %624 = vmatpush1.bf16.msra.mxu0 %v92
  %625 = vmatprep.subr.bf16.mxu0 0
  %626 = vmatpush1.bf16.msra.mxu0 %v91
  %627 = vmatprep.subr.bf16.mxu0 0
  %628 = vmatpush2.bf16.msra.mxu0 0
  %629 = vmatprep.subr.bf16.mxu0 0
  %630 = vmatpush2.bf16.msra.mxu0 0
  %631 = vmatprep.subr.bf16.mxu0 0
  %632 = vmatpush2.bf16.msra.mxu0 0
  %633 = vmatprep.subr.bf16.mxu0 0
  %634 = vmatpush2.bf16.msra.mxu0 0
  %635 = vmatprep.subr.bf16.mxu0 0
  %636 = vmatpush2.bf16.msra.mxu0 0
  %637 = vmatprep.subr.bf16.mxu0 0
  %638 = vmatpush2.bf16.msra.mxu0 0
  %639 = vmatprep.subr.bf16.mxu0 0
  %640 = vmatpush2.bf16.msra.mxu0 0
  %641 = vmatprep.subr.bf16.mxu0 0
  %642 = vmatpush2.bf16.msra.mxu0 0
  %643 = vmatprep.mubr.bf16.mxu0 0
  %644 = vmatmul.mubr.bf16.gmra.mxu0 %v569
  %v645 = vpop.f32.mrf.mxu0
  %v646 = vadd.f32 0.0, %v645
  %v647 = vpop.f32.mrf.mxu0
  %v648 = vpop.f32.mrf.mxu0
  %v649 = vpop.f32.mrf.mxu0
  %650 = vdwg.mxu0
  %v651 = vsel %vm26, %v606, %v646
  %s652 = scalar_lea.vmem %s0, 16
  %v653 = vld [vmem:[%s652] sm:$0xf]
  %v654 = vadd.f32 %v653, %v651
  %v655 = vxor.u32 %v654, 2147483648
  %v656 = vmul.f32 %v655, 1.442695
  %v657 = vpow.pop %v656
  %v658 = vadd.f32 %v657, 1.0
  %v659 = vrcp.pop %v658
  %v660 = vmul.f32 1.0, %v659
  %v661 = vtanh.pop %v654
  %v662 = vmul.f32 %v660, %v543
  %664 = vrot.lane.b32.xlu0 %v661, 64
  %v665 = vpop.permute.xlu0 %664
  %v667 = vmul.f32 %v660, %v665
  %669 = vrot.lane.b32.xlu0 %v667, 32
  %v670 = vpop.permute.xlu0 %669
  %v672 = vadd.f32 %v662, %v670
  %v673 = vtanh.pop %v672
  %675 = vrot.lane.b32.xlu0 %v673, 64
  %v676 = vpop.permute.xlu0 %675
  %v678 = vmul.f32 %v660, %v676
  %v679 = vpack.c.bf16 %v678, %v678
  %v682 = vunpack.c.l.s4 1983009808
  %v683 = vunpack.c.0.s8 %v682
  %v684 = vlaneseq
  %v685 = vshrl.u32 %v684, 7
  %v686 = vsub.s32 %v683, %v685
  %v687 = vrot.slane %v679, %v686
  %688 = vrot.lane.b32.xlu0 %v687, 32
  %v689 = vpop.permute.xlu0 %688
  %691 = vst.msk [vmem:[%s564] sm:$0x1] %vm174, %v689
  %692 = vst.msk [vmem:[%s562] sm:$0x2] %vm177, %v689
  %693 = vrot.lane.b32.xlu0 %v679, 32
  %v694 = vpop.permute.xlu0 %693
  %v696 = vsel %vm39, %v694, 0
  %698 = vmatprep.subr.bf16.mxu0 0
  %699 = vmatpush1.bf16.msra.mxu0 0
  %700 = vmatprep.subr.bf16.mxu0 0
  %701 = vmatpush1.bf16.msra.mxu0 0
  %702 = vmatprep.subr.bf16.mxu0 0
  %703 = vmatpush1.bf16.msra.mxu0 0
  %704 = vmatprep.subr.bf16.mxu0 0
  %705 = vmatpush1.bf16.msra.mxu0 0
  %706 = vmatprep.subr.bf16.mxu0 0
  %707 = vmatpush1.bf16.msra.mxu0 0
  %708 = vmatprep.subr.bf16.mxu0 0
  %709 = vmatpush1.bf16.msra.mxu0 0
  %710 = vmatprep.subr.bf16.mxu0 0
  %711 = vmatpush1.bf16.msra.mxu0 %v36
  %712 = vmatprep.subr.bf16.mxu0 0
  %713 = vmatpush1.bf16.msra.mxu0 %v35
  %714 = vmatprep.subr.bf16.mxu0 0
  %715 = vmatpush2.bf16.msra.mxu0 0
  %716 = vmatprep.subr.bf16.mxu0 0
  %717 = vmatpush2.bf16.msra.mxu0 0
  %718 = vmatprep.subr.bf16.mxu0 0
  %719 = vmatpush2.bf16.msra.mxu0 0
  %720 = vmatprep.subr.bf16.mxu0 0
  %721 = vmatpush2.bf16.msra.mxu0 0
  %722 = vmatprep.subr.bf16.mxu0 0
  %723 = vmatpush2.bf16.msra.mxu0 0
  %724 = vmatprep.subr.bf16.mxu0 0
  %725 = vmatpush2.bf16.msra.mxu0 0
  %726 = vmatprep.subr.bf16.mxu0 0
  %727 = vmatpush2.bf16.msra.mxu0 0
  %728 = vmatprep.subr.bf16.mxu0 0
  %729 = vmatpush2.bf16.msra.mxu0 0
  %730 = vmatprep.mubr.bf16.mxu0 0
  %731 = vmatmul.mubr.bf16.gmra.mxu0 %v696
  %v732 = vpop.f32.mrf.mxu0
  %v733 = vadd.f32 0.0, %v732
  %v734 = vpop.f32.mrf.mxu0
  %v735 = vpop.f32.mrf.mxu0
  %v736 = vpop.f32.mrf.mxu0
  %737 = vdwg.mxu0
  %738 = vmatprep.subr.bf16.mxu0 0
  %739 = vmatpush1.bf16.msra.mxu0 0
  %740 = vmatprep.subr.bf16.mxu0 0
  %741 = vmatpush1.bf16.msra.mxu0 0
  %742 = vmatprep.subr.bf16.mxu0 0
  %743 = vmatpush1.bf16.msra.mxu0 0
  %744 = vmatprep.subr.bf16.mxu0 0
  %745 = vmatpush1.bf16.msra.mxu0 0
  %746 = vmatprep.subr.bf16.mxu0 0
  %747 = vmatpush1.bf16.msra.mxu0 0
  %748 = vmatprep.subr.bf16.mxu0 0
  %749 = vmatpush1.bf16.msra.mxu0 0
  %750 = vmatprep.subr.bf16.mxu0 0
  %751 = vmatpush1.bf16.msra.mxu0 %v92
  %752 = vmatprep.subr.bf16.mxu0 0
  %753 = vmatpush1.bf16.msra.mxu0 %v91
  %754 = vmatprep.subr.bf16.mxu0 0
  %755 = vmatpush2.bf16.msra.mxu0 0
  %756 = vmatprep.subr.bf16.mxu0 0
  %757 = vmatpush2.bf16.msra.mxu0 0
  %758 = vmatprep.subr.bf16.mxu0 0
  %759 = vmatpush2.bf16.msra.mxu0 0
  %760 = vmatprep.subr.bf16.mxu0 0
  %761 = vmatpush2.bf16.msra.mxu0 0
  %762 = vmatprep.subr.bf16.mxu0 0
  %763 = vmatpush2.bf16.msra.mxu0 0
  %764 = vmatprep.subr.bf16.mxu0 0
  %765 = vmatpush2.bf16.msra.mxu0 0
  %766 = vmatprep.subr.bf16.mxu0 0
  %767 = vmatpush2.bf16.msra.mxu0 0
  %768 = vmatprep.subr.bf16.mxu0 0
  %769 = vmatpush2.bf16.msra.mxu0 0
  %770 = vmatprep.mubr.bf16.mxu0 0
  %771 = vmatmul.mubr.bf16.gmra.mxu0 %v696
  %v772 = vpop.f32.mrf.mxu0
  %v773 = vadd.f32 0.0, %v772
  %v774 = vpop.f32.mrf.mxu0
  %v775 = vpop.f32.mrf.mxu0
  %v776 = vpop.f32.mrf.mxu0
  %777 = vdwg.mxu0
  %v778 = vsel %vm26, %v733, %v773
  %s779 = scalar_lea.vmem %s0, 20
  %v780 = vld [vmem:[%s779] sm:$0xf]
  %v781 = vadd.f32 %v780, %v778
  %v782 = vxor.u32 %v781, 2147483648
  %v783 = vmul.f32 %v782, 1.442695
  %v784 = vpow.pop %v783
  %v785 = vadd.f32 %v784, 1.0
  %v786 = vrcp.pop %v785
  %v787 = vmul.f32 1.0, %v786
  %v788 = vtanh.pop %v781
  %v789 = vmul.f32 %v787, %v672
  %791 = vrot.lane.b32.xlu0 %v788, 64
  %v792 = vpop.permute.xlu0 %791
  %v794 = vmul.f32 %v787, %v792
  %796 = vrot.lane.b32.xlu0 %v794, 32
  %v797 = vpop.permute.xlu0 %796
  %v799 = vadd.f32 %v789, %v797
  %v800 = vtanh.pop %v799
  %802 = vrot.lane.b32.xlu0 %v800, 64
  %v803 = vpop.permute.xlu0 %802
  %v805 = vmul.f32 %v787, %v803
  %v806 = vpack.c.bf16 %v805, %v805
  %v809 = vunpack.c.l.s4 1983009808
  %v810 = vunpack.c.0.s8 %v809
  %v811 = vlaneseq
  %v812 = vshrl.u32 %v811, 7
  %v813 = vsub.s32 %v810, %v812
  %v814 = vrot.slane %v806, %v813
  %815 = vrot.lane.b32.xlu0 %v814, 32
  %v816 = vpop.permute.xlu0 %815
  %818 = vst.msk [vmem:[%s435] sm:$0x1] %vm174, %v816
  %819 = vst.msk [vmem:[%s433] sm:$0x2] %vm177, %v816
  %820 = vrot.lane.b32.xlu0 %v806, 32
  %v821 = vpop.permute.xlu0 %820
  %v823 = vsel %vm39, %v821, 0
  %825 = vmatprep.subr.bf16.mxu0 0
  %826 = vmatpush1.bf16.msra.mxu0 0
  %827 = vmatprep.subr.bf16.mxu0 0
  %828 = vmatpush1.bf16.msra.mxu0 0
  %829 = vmatprep.subr.bf16.mxu0 0
  %830 = vmatpush1.bf16.msra.mxu0 0
  %831 = vmatprep.subr.bf16.mxu0 0
  %832 = vmatpush1.bf16.msra.mxu0 0
  %833 = vmatprep.subr.bf16.mxu0 0
  %834 = vmatpush1.bf16.msra.mxu0 0
  %835 = vmatprep.subr.bf16.mxu0 0
  %836 = vmatpush1.bf16.msra.mxu0 0
  %837 = vmatprep.subr.bf16.mxu0 0
  %838 = vmatpush1.bf16.msra.mxu0 %v36
  %839 = vmatprep.subr.bf16.mxu0 0
  %840 = vmatpush1.bf16.msra.mxu0 %v35
  %841 = vmatprep.subr.bf16.mxu0 0
  %842 = vmatpush2.bf16.msra.mxu0 0
  %843 = vmatprep.subr.bf16.mxu0 0
  %844 = vmatpush2.bf16.msra.mxu0 0
  %845 = vmatprep.subr.bf16.mxu0 0
  %846 = vmatpush2.bf16.msra.mxu0 0
  %847 = vmatprep.subr.bf16.mxu0 0
  %848 = vmatpush2.bf16.msra.mxu0 0
  %849 = vmatprep.subr.bf16.mxu0 0
  %850 = vmatpush2.bf16.msra.mxu0 0
  %851 = vmatprep.subr.bf16.mxu0 0
  %852 = vmatpush2.bf16.msra.mxu0 0
  %853 = vmatprep.subr.bf16.mxu0 0
  %854 = vmatpush2.bf16.msra.mxu0 0
  %855 = vmatprep.subr.bf16.mxu0 0
  %856 = vmatpush2.bf16.msra.mxu0 0
  %857 = vmatprep.mubr.bf16.mxu0 0
  %858 = vmatmul.mubr.bf16.gmra.mxu0 %v823
  %v859 = vpop.f32.mrf.mxu0
  %v860 = vadd.f32 0.0, %v859
  %v861 = vpop.f32.mrf.mxu0
  %v862 = vpop.f32.mrf.mxu0
  %v863 = vpop.f32.mrf.mxu0
  %864 = vdwg.mxu0
  %865 = vmatprep.subr.bf16.mxu0 0
  %866 = vmatpush1.bf16.msra.mxu0 0
  %867 = vmatprep.subr.bf16.mxu0 0
  %868 = vmatpush1.bf16.msra.mxu0 0
  %869 = vmatprep.subr.bf16.mxu0 0
  %870 = vmatpush1.bf16.msra.mxu0 0
  %871 = vmatprep.subr.bf16.mxu0 0
  %872 = vmatpush1.bf16.msra.mxu0 0
  %873 = vmatprep.subr.bf16.mxu0 0
  %874 = vmatpush1.bf16.msra.mxu0 0
  %875 = vmatprep.subr.bf16.mxu0 0
  %876 = vmatpush1.bf16.msra.mxu0 0
  %877 = vmatprep.subr.bf16.mxu0 0
  %878 = vmatpush1.bf16.msra.mxu0 %v92
  %879 = vmatprep.subr.bf16.mxu0 0
  %880 = vmatpush1.bf16.msra.mxu0 %v91
  %881 = vmatprep.subr.bf16.mxu0 0
  %882 = vmatpush2.bf16.msra.mxu0 0
  %883 = vmatprep.subr.bf16.mxu0 0
  %884 = vmatpush2.bf16.msra.mxu0 0
  %885 = vmatprep.subr.bf16.mxu0 0
  %886 = vmatpush2.bf16.msra.mxu0 0
  %887 = vmatprep.subr.bf16.mxu0 0
  %888 = vmatpush2.bf16.msra.mxu0 0
  %889 = vmatprep.subr.bf16.mxu0 0
  %890 = vmatpush2.bf16.msra.mxu0 0
  %891 = vmatprep.subr.bf16.mxu0 0
  %892 = vmatpush2.bf16.msra.mxu0 0
  %893 = vmatprep.subr.bf16.mxu0 0
  %894 = vmatpush2.bf16.msra.mxu0 0
  %895 = vmatprep.subr.bf16.mxu0 0
  %896 = vmatpush2.bf16.msra.mxu0 0
  %897 = vmatprep.mubr.bf16.mxu0 0
  %898 = vmatmul.mubr.bf16.gmra.mxu0 %v823
  %v899 = vpop.f32.mrf.mxu0
  %v900 = vadd.f32 0.0, %v899
  %v901 = vpop.f32.mrf.mxu0
  %v902 = vpop.f32.mrf.mxu0
  %v903 = vpop.f32.mrf.mxu0
  %904 = vdwg.mxu0
  %v905 = vsel %vm26, %v860, %v900
  %s906 = scalar_lea.vmem %s0, 24
  %v907 = vld [vmem:[%s906] sm:$0xf]
  %v908 = vadd.f32 %v907, %v905
  %v909 = vxor.u32 %v908, 2147483648
  %v910 = vmul.f32 %v909, 1.442695
  %v911 = vpow.pop %v910
  %v912 = vadd.f32 %v911, 1.0
  %v913 = vrcp.pop %v912
  %v914 = vmul.f32 1.0, %v913
  %v915 = vtanh.pop %v908
  %v916 = vmul.f32 %v914, %v799
  %918 = vrot.lane.b32.xlu0 %v915, 64
  %v919 = vpop.permute.xlu0 %918
  %v921 = vmul.f32 %v914, %v919
  %923 = vrot.lane.b32.xlu0 %v921, 32
  %v924 = vpop.permute.xlu0 %923
  %v926 = vadd.f32 %v916, %v924
  %v927 = vtanh.pop %v926
  %929 = vrot.lane.b32.xlu0 %v927, 64
  %v930 = vpop.permute.xlu0 %929
  %v932 = vmul.f32 %v914, %v930
  %v933 = vpack.c.bf16 %v932, %v932
  %v936 = vunpack.c.l.s4 1983009808
  %v937 = vunpack.c.0.s8 %v936
  %v938 = vlaneseq
  %v939 = vshrl.u32 %v938, 7
  %v940 = vsub.s32 %v937, %v939
  %v941 = vrot.slane %v933, %v940
  %942 = vrot.lane.b32.xlu0 %v941, 32
  %v943 = vpop.permute.xlu0 %942
  %945 = vst.msk [vmem:[%s306] sm:$0x1] %vm174, %v943
  %946 = vst.msk [vmem:[%s304] sm:$0x2] %vm177, %v943
  %947 = vrot.lane.b32.xlu0 %v933, 32
  %v948 = vpop.permute.xlu0 %947
  %v950 = vsel %vm39, %v948, 0
  %952 = vmatprep.subr.bf16.mxu0 0
  %953 = vmatpush1.bf16.msra.mxu0 0
  %954 = vmatprep.subr.bf16.mxu0 0
  %955 = vmatpush1.bf16.msra.mxu0 0
  %956 = vmatprep.subr.bf16.mxu0 0
  %957 = vmatpush1.bf16.msra.mxu0 0
  %958 = vmatprep.subr.bf16.mxu0 0
  %959 = vmatpush1.bf16.msra.mxu0 0
  %960 = vmatprep.subr.bf16.mxu0 0
  %961 = vmatpush1.bf16.msra.mxu0 0
  %962 = vmatprep.subr.bf16.mxu0 0
  %963 = vmatpush1.bf16.msra.mxu0 0
  %964 = vmatprep.subr.bf16.mxu0 0
  %965 = vmatpush1.bf16.msra.mxu0 %v36
  %966 = vmatprep.subr.bf16.mxu0 0
  %967 = vmatpush1.bf16.msra.mxu0 %v35
  %968 = vmatprep.subr.bf16.mxu0 0
  %969 = vmatpush2.bf16.msra.mxu0 0
  %970 = vmatprep.subr.bf16.mxu0 0
  %971 = vmatpush2.bf16.msra.mxu0 0
  %972 = vmatprep.subr.bf16.mxu0 0
  %973 = vmatpush2.bf16.msra.mxu0 0
  %974 = vmatprep.subr.bf16.mxu0 0
  %975 = vmatpush2.bf16.msra.mxu0 0
  %976 = vmatprep.subr.bf16.mxu0 0
  %977 = vmatpush2.bf16.msra.mxu0 0
  %978 = vmatprep.subr.bf16.mxu0 0
  %979 = vmatpush2.bf16.msra.mxu0 0
  %980 = vmatprep.subr.bf16.mxu0 0
  %981 = vmatpush2.bf16.msra.mxu0 0
  %982 = vmatprep.subr.bf16.mxu0 0
  %983 = vmatpush2.bf16.msra.mxu0 0
  %984 = vmatprep.mubr.bf16.mxu0 0
  %985 = vmatmul.mubr.bf16.gmra.mxu0 %v950
  %v986 = vpop.f32.mrf.mxu0
  %v987 = vadd.f32 0.0, %v986
  %v988 = vpop.f32.mrf.mxu0
  %v989 = vpop.f32.mrf.mxu0
  %v990 = vpop.f32.mrf.mxu0
  %991 = vdwg.mxu0
  %992 = vmatprep.subr.bf16.mxu0 0
  %993 = vmatpush1.bf16.msra.mxu0 0
  %994 = vmatprep.subr.bf16.mxu0 0
  %995 = vmatpush1.bf16.msra.mxu0 0
  %996 = vmatprep.subr.bf16.mxu0 0
  %997 = vmatpush1.bf16.msra.mxu0 0
  %998 = vmatprep.subr.bf16.mxu0 0
  %999 = vmatpush1.bf16.msra.mxu0 0
  %1000 = vmatprep.subr.bf16.mxu0 0
  %1001 = vmatpush1.bf16.msra.mxu0 0
  %1002 = vmatprep.subr.bf16.mxu0 0
  %1003 = vmatpush1.bf16.msra.mxu0 0
  %1004 = vmatprep.subr.bf16.mxu0 0
  %1005 = vmatpush1.bf16.msra.mxu0 %v92
  %1006 = vmatprep.subr.bf16.mxu0 0
  %1007 = vmatpush1.bf16.msra.mxu0 %v91
  %1008 = vmatprep.subr.bf16.mxu0 0
  %1009 = vmatpush2.bf16.msra.mxu0 0
  %1010 = vmatprep.subr.bf16.mxu0 0
  %1011 = vmatpush2.bf16.msra.mxu0 0
  %1012 = vmatprep.subr.bf16.mxu0 0
  %1013 = vmatpush2.bf16.msra.mxu0 0
  %1014 = vmatprep.subr.bf16.mxu0 0
  %1015 = vmatpush2.bf16.msra.mxu0 0
  %1016 = vmatprep.subr.bf16.mxu0 0
  %1017 = vmatpush2.bf16.msra.mxu0 0
  %1018 = vmatprep.subr.bf16.mxu0 0
  %1019 = vmatpush2.bf16.msra.mxu0 0
  %1020 = vmatprep.subr.bf16.mxu0 0
  %1021 = vmatpush2.bf16.msra.mxu0 0
  %1022 = vmatprep.subr.bf16.mxu0 0
  %1023 = vmatpush2.bf16.msra.mxu0 0
  %1024 = vmatprep.mubr.bf16.mxu0 0
  %1025 = vmatmul.mubr.bf16.gmra.mxu0 %v950
  %v1026 = vpop.f32.mrf.mxu0
  %v1027 = vadd.f32 0.0, %v1026
  %v1028 = vpop.f32.mrf.mxu0
  %v1029 = vpop.f32.mrf.mxu0
  %v1030 = vpop.f32.mrf.mxu0
  %1031 = vdwg.mxu0
  %v1032 = vsel %vm26, %v987, %v1027
  %s1033 = scalar_lea.vmem %s0, 28
  %v1034 = vld [vmem:[%s1033] sm:$0xf]
  %v1035 = vadd.f32 %v1034, %v1032
  %v1036 = vxor.u32 %v1035, 2147483648
  %v1037 = vmul.f32 %v1036, 1.442695
  %v1038 = vpow.pop %v1037
  %v1039 = vadd.f32 %v1038, 1.0
  %v1040 = vrcp.pop %v1039
  %v1041 = vmul.f32 1.0, %v1040
  %v1042 = vtanh.pop %v1035
  %v1043 = vmul.f32 %v1041, %v926
  %1045 = vrot.lane.b32.xlu0 %v1042, 64
  %v1046 = vpop.permute.xlu0 %1045
  %v1048 = vmul.f32 %v1041, %v1046
  %1050 = vrot.lane.b32.xlu0 %v1048, 32
  %v1051 = vpop.permute.xlu0 %1050
  %v1053 = vadd.f32 %v1043, %v1051
  %v1054 = vtanh.pop %v1053
  %1056 = vrot.lane.b32.xlu0 %v1054, 64
  %v1057 = vpop.permute.xlu0 %1056
  %v1059 = vmul.f32 %v1041, %v1057
  %v1060 = vpack.c.bf16 %v1059, %v1059
  %v1063 = vunpack.c.l.s4 1983009808
  %v1064 = vunpack.c.0.s8 %v1063
  %v1065 = vlaneseq
  %v1066 = vshrl.u32 %v1065, 7
  %v1067 = vsub.s32 %v1064, %v1066
  %v1068 = vrot.slane %v1060, %v1067
  %1069 = vrot.lane.b32.xlu0 %v1068, 32
  %v1070 = vpop.permute.xlu0 %1069
  %1072 = vst.msk [vmem:[%s176] sm:$0x1] %vm174, %v1070
  %1073 = vst.msk [vmem:[%s2] sm:$0x2] %vm177, %v1070
  %1075 = vrot.lane.b32.xlu0 %v1059, 32
  %v1076 = vpop.permute.xlu0 %1075
  %vm1078 = vcmask 257024
  %1079 = vst.msk [vmem:[%s3] sm:$0xf] %vm1078, %v1076
  %1081 = vrot.lane.b32.xlu0 %v1053, 96
  %v1082 = vpop.permute.xlu0 %1081
  %1084 = vst.msk [vmem:[%s4] sm:$0xf] %vm1078, %v1082
  // Predicated region
  $region10: #{encoder_rnn_forward.2} parent=0 // pred_check
    _
  $region11: #{encoder_rnn_forward.2} parent=0 // pred_check_branch
    %1086 = sbr.rel (0) target = $region13
  $region12: #{encoder_rnn_forward.2} parent=0 // pred_region
    _
  $region13: #{encoder_rnn_forward.2} parent=0 // pred_fallthru
    _
  // Predicated region
  $region14: #{encoder_rnn_forward.2} parent=0 // pred_check
    _
  $region15: #{encoder_rnn_forward.2} parent=0 // pred_check_branch
    %1088 = sbr.rel (0) target = $region17
  $region16: #{encoder_rnn_forward.2} parent=0 // pred_region
    _
  $region17: #{encoder_rnn_forward.2} parent=0 // pred_fallthru
    _
  // Predicated region
  $region18: #{encoder_rnn_forward.2} parent=0 // pred_check
    _
  $region19: #{encoder_rnn_forward.2} parent=0 // pred_check_branch
    %1090 = sbr.rel (0) target = $region21
  $region20: #{encoder_rnn_forward.2} parent=0 // pred_region
    _
  $region21: #{encoder_rnn_forward.2} parent=0 // pred_fallthru
    _
  // Predicated region
  $region22: #{encoder_rnn_forward.2} parent=0 // pred_check
    _
  $region23: #{encoder_rnn_forward.2} parent=0 // pred_check_branch
    %1092 = sbr.rel (0) target = $region25
  $region24: #{encoder_rnn_forward.2} parent=0 // pred_region
    _
  $region25: #{encoder_rnn_forward.2} parent=0 // pred_fallthru
    _
  // Predicated region
  $region26: #{encoder_rnn_forward.2} parent=0 // pred_check
    _
  $region27: #{encoder_rnn_forward.2} parent=0 // pred_check_branch
    %1094 = sbr.rel (0) target = $region29
  $region28: #{encoder_rnn_forward.2} parent=0 // pred_region
    _
  $region29: #{encoder_rnn_forward.2} parent=0 // pred_fallthru
    _
  // Predicated region
  $region30: #{encoder_rnn_forward.2} parent=0 // pred_check
    _
  $region31: #{encoder_rnn_forward.2} parent=0 // pred_check_branch
    %1096 = sbr.rel (0) target = $region33
  $region32: #{encoder_rnn_forward.2} parent=0 // pred_region
    _
  $region33: #{encoder_rnn_forward.2} parent=0 // pred_fallthru
    _

</llo_original>
